<compile_context>
chip_gen: v6e
topology: v6e:2x2x1
jax: 0.10.0
libtpu: 0.0.40
codegen_flags: <defaults>
</compile_context>

<pallas_src>
import jax
import jax.numpy as jnp
from jax.experimental import pallas as pl
from jax.experimental.pallas import tpu as pltpu


def _lr_kernel(wemb_ref, v_ref, bterm_ref, posr_ref,
               wmx_ref, wvp_ref, wposblk_ref, wc_ref, bc_ref,
               out_ref):
    Bt, S, E = wemb_ref.shape
    _, N, Dv = v_ref.shape
    NP = posr_ref.shape[2]
    H = wmx_ref.shape[1]
    GH, A = wc_ref.shape
    G = GH // H
    f32 = jnp.float32

    # ---- unpack packed weights (static slices) ------------------------------
    Wq = wmx_ref[0:E, :]                 # bf16 [E, H]
    Wv = wmx_ref[E:E + Dv, :]            # bf16 [Dv, H]
    bq = wvp_ref[0:1, :]                 # f32 [1, H]
    bv = wvp_ref[1:2, :]                 # f32 [1, H]
    watt = wvp_ref[2:3, :]               # f32 [1, H]

    # ---- q_emb.forward_all (GRU stand-in: per-timestep linear + tanh) -------
    we2 = wemb_ref[...].reshape(Bt * S, E)
    q_seq = jnp.tanh(
        jnp.dot(we2, Wq, preferred_element_type=f32).reshape(Bt, S, H) + bq)

    # ---- q_att: self-attention pooling (VPU/XLU; no 1-column MXU push) ------
    ql = jnp.sum(q_seq * watt, axis=-1, keepdims=True)            # [Bt,S,1]
    qm = jnp.max(ql, axis=1, keepdims=True)
    qe = jnp.exp(ql - qm)
    qa = qe / jnp.sum(qe, axis=1, keepdims=True)
    q_self = jnp.sum(qa * q_seq, axis=1)                          # [Bt,H]

    # ---- v_relation: projection + implicit-position relation attention ------
    v2 = v_ref[...].reshape(Bt * N, Dv)
    v_proj = (jnp.dot(v2, Wv, preferred_element_type=f32).reshape(Bt, N, H)
              + bv)                                               # [Bt,N,H]

    # rel[b,i,j] = sum_p pos[b,i,j,p]*wpos[p] as one lane-dense MXU matmul
    # against a block-diagonal (N*P, N) weight (pos pre-flattened to N*P).
    pos2 = posr_ref[...].reshape(Bt * N, NP)
    rel = jnp.dot(pos2, wposblk_ref[...],
                  preferred_element_type=f32).reshape(Bt, N, N)
    rm = jnp.max(rel, axis=-1, keepdims=True)
    re = jnp.exp(rel - rm)
    ra = re / jnp.sum(re, axis=-1, keepdims=True)                 # [Bt,N,N]

    # v_rel[b,i,h] = sum_j ra[b,i,j]*v_proj[b,j,h]  -> N small; VPU FMAs
    # instead of Bt tiny batched MXU dots.
    v_rel = ra[:, :, 0:1] * v_proj[:, 0:1, :]
    for j in range(1, N):
        v_rel = v_rel + ra[:, :, j:j + 1] * v_proj[:, j:j + 1, :]
    v_emb = jnp.maximum(v_proj + v_rel, 0.0)                      # [Bt,N,H]

    # ---- joint_R: glimpse attention over objects (per-glimpse VPU path) -----
    q_pool = jnp.mean(q_seq, axis=1)                              # [Bt,H]
    att_parts = []
    pooled_parts = []
    for g in range(G):
        wjq_g = wvp_ref[3 + g:4 + g, :]                           # [1,H]
        wjv_g = wvp_ref[3 + G + g:4 + G + g, :]                   # [1,H]
        q_term = jnp.sum(q_pool * wjq_g, axis=-1, keepdims=True)  # [Bt,1]
        jv = jnp.sum(v_emb * wjv_g, axis=-1)                      # [Bt,N]
        jl = jv + bterm_ref[:, g * N:(g + 1) * N] + q_term        # [Bt,N]
        jm = jnp.max(jl, axis=-1, keepdims=True)
        je = jnp.exp(jl - jm)
        ja = je / jnp.sum(je, axis=-1, keepdims=True)             # [Bt,N]
        att_parts.append(ja)
        # pooled_g[b,h] = sum_n ja[b,n]*v_emb[b,n,h]  (VPU mul + sublane reduce)
        pooled_parts.append(jnp.sum(ja[:, :, None] * v_emb, axis=1))  # [Bt,H]

    # ---- right_classifier: single merged (Bt,G*H)x(G*H,A) dot ---------------
    pooled = jnp.concatenate(pooled_parts, axis=-1)               # [Bt,G*H]
    logits = (jnp.dot(pooled, wc_ref[...], preferred_element_type=f32)
              + bc_ref[...])                                      # [Bt,A]

    # ---- single lane-contiguous packed store: [logits | qemb | att] ----------
    out_ref[...] = jnp.concatenate([logits, q_self] + att_parts,
                                   axis=-1).astype(out_ref.dtype)


def _full_spec(shape):
    nd = len(shape)
    return pl.BlockSpec(shape, lambda i, _nd=nd: (0,) * _nd)


def _two_tensorcores():
    """True on chips with 2 TensorCores sharing a grid ('parallel' megacore)."""
    try:
        kind = jax.devices()[0].device_kind.lower()
    except Exception:
        return False
    return ("v7" in kind) or ("v4" in kind) or ("v5p" in kind)


def lr_model_forward(params, v, c, b, q,
                     implicit_pos_emb_L, implicit_pos_emb_R,
                     sem_adj_matrix_L=None, sem_adj_matrix_R=None,
                     spa_adj_matrix_L=None, spa_adj_matrix_R=None,
                     block_batch=256):
    # make_mask(v)/make_mask(c) are computed but never consumed in the original
    # forward; `c` therefore never reaches the kernel (dead DMA removed).
    B, N, Dv = v.shape
    S = q.shape[1]
    E = params['emb_table'].shape[1]
    H = params['Wq'].shape[1]
    G = params['Wjv'].shape[1]
    A = params['bc'].shape[1]
    P = implicit_pos_emb_R.shape[-1]
    PW = A + H + G * N                      # packed output lane width

    # ---- generation-aware batch-tile selection -------------------------------
    two_core = _two_tensorcores()
    Bt = min(block_batch, B)
    Bt = ((Bt + 15) // 16) * 16             # 16-aligned: Bt*S/Bt*N hit MXU rows
    if two_core and B >= 32:
        # keep >= 2 grid steps so both TensorCores get work
        Bt = min(Bt, ((-(-B // 2) + 15) // 16) * 16)
    n_steps = -(-B // Bt)
    if two_core and n_steps > 1 and (n_steps % 2 == 1):
        n_steps += 1                        # even steps load-balance the 2 TCs
    B_pad = n_steps * Bt

    def pad_b(x):
        if x.shape[0] == B_pad:
            return x
        return jnp.pad(x, [(0, B_pad - x.shape[0])] + [(0, 0)] * (x.ndim - 1))

    # rnn.pack_sequence / pad_packed_sequence on equal-length sequences + the
    # permute(1, 0) is an identity on the [B, S] layout used here.
    # Word-embedding gather stays in glue JAX (data-dependent gather).
    bf16, f32 = jnp.bfloat16, jnp.float32
    wemb_x = params['emb_table'][pad_b(q)].astype(bf16)           # [B_pad,S,E]
    v_p = pad_b(v).astype(bf16)                                   # [B_pad,N,Dv]
    # Flatten (N, P) -> lane-dense N*P so the position reduction is one clean
    # MXU matmul; bf16 halves the dominant pos DMA.
    pos_p = pad_b(implicit_pos_emb_R).reshape(B_pad, N, N * P).astype(bf16)
    # b @ Wb precomputed here (contraction depth 4 is a waste of an MXU push);
    # delivered g-major as (B, G*N) so the kernel only lane-slices it.
    b_term = jnp.einsum('bnd,dg->bng', b.astype(f32),
                        params['Wb'].astype(f32))
    b_term = pad_b(jnp.transpose(b_term, (0, 2, 1)).reshape(B, G * N))

    # Packed weights: MXU weights in bf16, small VPU weights/biases in f32.
    w_mx = jnp.concatenate([params['Wq'], params['Wv']], axis=0).astype(bf16)
    w_vp = jnp.concatenate([params['bq'], params['bv'],
                            params['watt'].T,
                            params['Wjq'].T, params['Wjv'].T],
                           axis=0).astype(f32)                    # [3+2G, H]
    # Block-diagonal expansion: wpos_blk[j*P+p, j'] = wpos[p] * (j == j').
    eye_n = jnp.eye(N, dtype=f32)
    wpos_blk = (eye_n[:, None, :] * params['wpos'].reshape(1, P, 1)
                ).reshape(N * P, N).astype(bf16)
    w_c = params['Wc'].reshape(G * H, A).astype(f32)
    bc = params['bc'].astype(f32)

    grid_spec = pltpu.PrefetchScalarGridSpec(
        num_scalar_prefetch=0,
        grid=(n_steps,),
        in_specs=[
            pl.BlockSpec((Bt, S, E), lambda i: (i, 0, 0)),
            pl.BlockSpec((Bt, N, Dv), lambda i: (i, 0, 0)),
            pl.BlockSpec((Bt, G * N), lambda i: (i, 0)),
            pl.BlockSpec((Bt, N, N * P), lambda i: (i, 0, 0)),
            _full_spec(w_mx.shape),
            _full_spec(w_vp.shape),
            _full_spec(wpos_blk.shape),
            _full_spec(w_c.shape),
            _full_spec(bc.shape),
        ],
        out_specs=pl.BlockSpec((Bt, PW), lambda i: (i, 0)),
    )

    packed = pl.pallas_call(
        _lr_kernel,
        out_shape=jax.ShapeDtypeStruct((B_pad, PW), jnp.float32),
        grid_spec=grid_spec,
        compiler_params=pltpu.CompilerParams(
            dimension_semantics=("parallel",),
            vmem_limit_bytes=48 * 1024 * 1024),
    )(wemb_x, v_p, b_term, pos_p, w_mx, w_vp, wpos_blk, w_c, bc)

    packed = packed[:B]
    logits = packed[:, :A]
    q_emb_self_att = packed[:, A:A + H]
    att = packed[:, A + H:].reshape(B, G, N)
    return {'logits': (None, None, logits), 'q_emb': q_emb_self_att, 'att': att}


def _reference(params, v, c, b, q, pos_R):
    """Pure-JAX f32 mirror of the kernel math (correctness check)."""
    wemb_x = params['emb_table'][q].astype(jnp.float32)
    q_seq = jnp.tanh(wemb_x @ params['Wq'] + params['bq'])
    ql = q_seq @ params['watt']
    qa = jax.nn.softmax(ql, axis=1)
    q_self = jnp.sum(qa * q_seq, axis=1)
    v_proj = v @ params['Wv'] + params['bv']
    rel = jnp.sum(pos_R * params['wpos'][None, None], axis=-1)
    ra = jax.nn.softmax(rel, axis=-1)
    v_rel = jnp.einsum('bij,bjh->bih', ra, v_proj)
    v_emb = jnp.maximum(v_proj + v_rel, 0.0)
    q_pool = jnp.mean(q_seq, axis=1)
    jl = v_emb @ params['Wjv'] + (q_pool @ params['Wjq'])[:, None] + b @ params['Wb']
    ja = jax.nn.softmax(jl, axis=1)
    att = jnp.swapaxes(ja, 1, 2)
    pooled = jnp.einsum('bng,bnh->bgh', ja, v_emb)
    logits = params['bc'] + jnp.einsum('bgh,gha->ba', pooled, params['Wc'])
    return logits, q_self, att


if __name__ == "__main__":
    # Small deterministic shapes.
    B, N, Dv, S, E, H, G, A, P, Bd, V = 2, 8, 32, 8, 32, 32, 2, 16, 16, 4, 50

    key = jax.random.PRNGKey(0)
    ks = jax.random.split(key, 20)

    params = {
        'emb_table': 0.1 * jax.random.normal(ks[0], (V, E), jnp.float32),
        'Wq':   0.1 * jax.random.normal(ks[1], (E, H), jnp.float32),
        'bq':   0.1 * jax.random.normal(ks[2], (1, H), jnp.float32),
        'watt': 0.1 * jax.random.normal(ks[3], (H, 1), jnp.float32),
        'Wv':   0.1 * jax.random.normal(ks[4], (Dv, H), jnp.float32),
        'bv':   0.1 * jax.random.normal(ks[5], (1, H), jnp.float32),
        'wpos': 0.1 * jax.random.normal(ks[6], (1, P), jnp.float32),
        'Wjq':  0.1 * jax.random.normal(ks[7], (H, G), jnp.float32),
        'Wjv':  0.1 * jax.random.normal(ks[8], (H, G), jnp.float32),
        'Wb':   0.1 * jax.random.normal(ks[9], (Bd, G), jnp.float32),
        'Wc':   0.1 * jax.random.normal(ks[10], (G, H, A), jnp.float32),
        'bc':   0.1 * jax.random.normal(ks[11], (1, A), jnp.float32),
    }

    v = jax.random.normal(ks[12], (B, N, Dv), jnp.float32)
    v = v.at[:, -1, :].set(0.0)  # one all-zero object (make_mask is dead anyway)
    c = jax.random.normal(ks[13], (B, N, Dv), jnp.float32)
    b = jax.random.uniform(ks[14], (B, N, Bd), jnp.float32)
    q = jax.random.randint(ks[15], (B, S), 0, V, jnp.int32)
    implicit_pos_emb_L = jax.random.normal(ks[16], (B, N, N, P), jnp.float32)
    implicit_pos_emb_R = jax.random.normal(ks[17], (B, N, N, P), jnp.float32)

    out = lr_model_forward(params, v, c, b, q,
                           implicit_pos_emb_L, implicit_pos_emb_R)
    logits = jax.block_until_ready(out['logits'][2])
    q_emb = jax.block_until_ready(out['q_emb'])
    att = jax.block_until_ready(out['att'])

    ref_logits, ref_qemb, ref_att = _reference(params, v, c, b, q,
                                               implicit_pos_emb_R)
    # bf16 MXU operands -> relaxed tolerance vs. the f32 reference.
    assert jnp.allclose(logits, ref_logits, atol=2e-2), "logits mismatch"
    assert jnp.allclose(q_emb, ref_qemb, atol=2e-2), "q_emb mismatch"
    assert jnp.allclose(att, ref_att, atol=2e-2), "att mismatch"

    print("KERNEL_OK")
</pallas_src>

<mosaic_0001>
module attributes {stable_mosaic.version = 11 : i64} {
  func.func @_lr_kernel(%arg0: i32, %arg1: memref<16x8x32xbf16, #tpu.memory_space<vmem>>, %arg2: memref<16x8x32xbf16, #tpu.memory_space<vmem>>, %arg3: memref<16x16xf32, #tpu.memory_space<vmem>>, %arg4: memref<16x8x128xbf16, #tpu.memory_space<vmem>>, %arg5: memref<64x32xbf16, #tpu.memory_space<vmem>>, %arg6: memref<7x32xf32, #tpu.memory_space<vmem>>, %arg7: memref<128x8xbf16, #tpu.memory_space<vmem>>, %arg8: memref<64x16xf32, #tpu.memory_space<vmem>>, %arg9: memref<1x16xf32, #tpu.memory_space<vmem>>, %arg10: memref<16x64xf32, #tpu.memory_space<vmem>>) attributes {dimension_semantics = [#tpu.dimension_semantics<parallel>], iteration_bounds = array<i64: 1>, scalar_prefetch = 0 : i64, scratch_operands = 0 : i64, tpu.core_type = #tpu.core_type<tc>, window_params = [{transform_indices = @transform_0, window_bounds = array<i64: 16, 8, 32>}, {transform_indices = @transform_1, window_bounds = array<i64: 16, 8, 32>}, {transform_indices = @transform_2, window_bounds = array<i64: 16, 16>}, {transform_indices = @transform_3, window_bounds = array<i64: 16, 8, 128>}, {pipeline_mode = #tpu.pipeline_mode<synchronous>, transform_indices = @transform_4, window_bounds = array<i64: 64, 32>}, {pipeline_mode = #tpu.pipeline_mode<synchronous>, transform_indices = @transform_5, window_bounds = array<i64: 7, 32>}, {pipeline_mode = #tpu.pipeline_mode<synchronous>, transform_indices = @transform_6, window_bounds = array<i64: 128, 8>}, {pipeline_mode = #tpu.pipeline_mode<synchronous>, transform_indices = @transform_7, window_bounds = array<i64: 64, 16>}, {pipeline_mode = #tpu.pipeline_mode<synchronous>, transform_indices = @transform_8, window_bounds = array<i64: 1, 16>}, {transform_indices = @transform_9, window_bounds = array<i64: 16, 64>}]} {
    %c0 = arith.constant 0 : index
    %c0_0 = arith.constant 0 : index
    %0 = vector.load %arg5[%c0, %c0_0] : memref<64x32xbf16, #tpu.memory_space<vmem>>, vector<32x32xbf16>
    %c32 = arith.constant 32 : index
    %c0_1 = arith.constant 0 : index
    %1 = vector.load %arg5[%c32, %c0_1] : memref<64x32xbf16, #tpu.memory_space<vmem>>, vector<32x32xbf16>
    %c0_2 = arith.constant 0 : index
    %c0_3 = arith.constant 0 : index
    %2 = vector.load %arg6[%c0_2, %c0_3] : memref<7x32xf32, #tpu.memory_space<vmem>>, vector<1x32xf32>
    %c1 = arith.constant 1 : index
    %c0_4 = arith.constant 0 : index
    %3 = vector.load %arg6[%c1, %c0_4] : memref<7x32xf32, #tpu.memory_space<vmem>>, vector<1x32xf32>
    %c2 = arith.constant 2 : index
    %c0_5 = arith.constant 0 : index
    %4 = vector.load %arg6[%c2, %c0_5] : memref<7x32xf32, #tpu.memory_space<vmem>>, vector<1x32xf32>
    %c0_6 = arith.constant 0 : index
    %c0_7 = arith.constant 0 : index
    %c0_8 = arith.constant 0 : index
    %5 = vector.load %arg1[%c0_6, %c0_7, %c0_8] : memref<16x8x32xbf16, #tpu.memory_space<vmem>>, vector<16x8x32xbf16>
    %6 = vector.shape_cast %5 : vector<16x8x32xbf16> to vector<128x32xbf16>
    %cst = arith.constant dense<0.000000e+00> : vector<128x32xf32>
    %7 = tpu.matmul %6, %0, %cst {dimension_numbers = #tpu.dot_dimension_numbers<[1], [0], [0], [1], [0, 0, 1, 1], [], []>} : vector<128x32xbf16>, vector<32x32xbf16>, vector<128x32xf32> -> vector<128x32xf32>
    %8 = vector.shape_cast %7 : vector<128x32xf32> to vector<16x8x32xf32>
    %9 = vector.shape_cast %2 : vector<1x32xf32> to vector<1x1x32xf32>
    %10 = vector.broadcast %9 : vector<1x1x32xf32> to vector<16x8x32xf32>
    %11 = arith.addf %8, %10 : vector<16x8x32xf32>
    %12 = math.tanh %11 : vector<16x8x32xf32>
    %13 = vector.shape_cast %4 : vector<1x32xf32> to vector<1x1x32xf32>
    %14 = vector.broadcast %13 : vector<1x1x32xf32> to vector<16x8x32xf32>
    %15 = arith.mulf %12, %14 : vector<16x8x32xf32>
    %cst_9 = arith.constant dense<0.000000e+00> : vector<16x8xf32>
    %16 = vector.multi_reduction <add>, %15, %cst_9 [2] : vector<16x8x32xf32> to vector<16x8xf32>
    %17 = vector.shape_cast %16 : vector<16x8xf32> to vector<16x8x1xf32>
    %cst_10 = arith.constant dense<0xFF800000> : vector<16x1xf32>
    %18 = vector.multi_reduction <maximumf>, %17, %cst_10 [1] : vector<16x8x1xf32> to vector<16x1xf32>
    %19 = vector.shape_cast %18 : vector<16x1xf32> to vector<16x1x1xf32>
    %20 = vector.broadcast %19 : vector<16x1x1xf32> to vector<16x8x1xf32>
    %21 = arith.subf %17, %20 : vector<16x8x1xf32>
    %22 = math.exp %21 : vector<16x8x1xf32>
    %cst_11 = arith.constant dense<0.000000e+00> : vector<16x1xf32>
    %23 = vector.multi_reduction <add>, %22, %cst_11 [1] : vector<16x8x1xf32> to vector<16x1xf32>
    %24 = vector.shape_cast %23 : vector<16x1xf32> to vector<16x1x1xf32>
    %25 = vector.broadcast %24 : vector<16x1x1xf32> to vector<16x8x1xf32>
    %26 = arith.divf %22, %25 : vector<16x8x1xf32>
    %27 = vector.broadcast %26 : vector<16x8x1xf32> to vector<16x8x32xf32>
    %28 = arith.mulf %27, %12 : vector<16x8x32xf32>
    %cst_12 = arith.constant dense<0.000000e+00> : vector<16x32xf32>
    %29 = vector.multi_reduction <add>, %28, %cst_12 [1] : vector<16x8x32xf32> to vector<16x32xf32>
    %c0_13 = arith.constant 0 : index
    %c0_14 = arith.constant 0 : index
    %c0_15 = arith.constant 0 : index
    %30 = vector.load %arg2[%c0_13, %c0_14, %c0_15] : memref<16x8x32xbf16, #tpu.memory_space<vmem>>, vector<16x8x32xbf16>
    %31 = vector.shape_cast %30 : vector<16x8x32xbf16> to vector<128x32xbf16>
    %cst_16 = arith.constant dense<0.000000e+00> : vector<128x32xf32>
    %32 = tpu.matmul %31, %1, %cst_16 {dimension_numbers = #tpu.dot_dimension_numbers<[1], [0], [0], [1], [0, 0, 1, 1], [], []>} : vector<128x32xbf16>, vector<32x32xbf16>, vector<128x32xf32> -> vector<128x32xf32>
    %33 = vector.shape_cast %32 : vector<128x32xf32> to vector<16x8x32xf32>
    %34 = vector.shape_cast %3 : vector<1x32xf32> to vector<1x1x32xf32>
    %35 = vector.broadcast %34 : vector<1x1x32xf32> to vector<16x8x32xf32>
    %36 = arith.addf %33, %35 : vector<16x8x32xf32>
    %c0_17 = arith.constant 0 : index
    %c0_18 = arith.constant 0 : index
    %c0_19 = arith.constant 0 : index
    %37 = vector.load %arg4[%c0_17, %c0_18, %c0_19] : memref<16x8x128xbf16, #tpu.memory_space<vmem>>, vector<16x8x128xbf16>
    %38 = vector.shape_cast %37 : vector<16x8x128xbf16> to vector<128x128xbf16>
    %c0_20 = arith.constant 0 : index
    %c0_21 = arith.constant 0 : index
    %39 = vector.load %arg7[%c0_20, %c0_21] : memref<128x8xbf16, #tpu.memory_space<vmem>>, vector<128x8xbf16>
    %cst_22 = arith.constant dense<0.000000e+00> : vector<128x8xf32>
    %40 = tpu.matmul %38, %39, %cst_22 {dimension_numbers = #tpu.dot_dimension_numbers<[1], [0], [0], [1], [0, 0, 1, 1], [], []>} : vector<128x128xbf16>, vector<128x8xbf16>, vector<128x8xf32> -> vector<128x8xf32>
    %41 = vector.shape_cast %40 : vector<128x8xf32> to vector<16x8x8xf32>
    %cst_23 = arith.constant dense<0xFF800000> : vector<16x8xf32>
    %42 = vector.multi_reduction <maximumf>, %41, %cst_23 [2] : vector<16x8x8xf32> to vector<16x8xf32>
    %43 = vector.shape_cast %42 : vector<16x8xf32> to vector<16x8x1xf32>
    %44 = vector.broadcast %43 : vector<16x8x1xf32> to vector<16x8x8xf32>
    %45 = arith.subf %41, %44 : vector<16x8x8xf32>
    %46 = math.exp %45 : vector<16x8x8xf32>
    %cst_24 = arith.constant dense<0.000000e+00> : vector<16x8xf32>
    %47 = vector.multi_reduction <add>, %46, %cst_24 [2] : vector<16x8x8xf32> to vector<16x8xf32>
    %48 = vector.shape_cast %47 : vector<16x8xf32> to vector<16x8x1xf32>
    %49 = vector.broadcast %48 : vector<16x8x1xf32> to vector<16x8x8xf32>
    %50 = arith.divf %46, %49 : vector<16x8x8xf32>
    %51 = vector.extract_strided_slice %50 {offsets = [0, 0, 0], sizes = [16, 8, 1], strides = [1, 1, 1]} : vector<16x8x8xf32> to vector<16x8x1xf32>
    %52 = vector.extract_strided_slice %36 {offsets = [0, 0, 0], sizes = [16, 1, 32], strides = [1, 1, 1]} : vector<16x8x32xf32> to vector<16x1x32xf32>
    %53 = vector.broadcast %51 : vector<16x8x1xf32> to vector<16x8x32xf32>
    %54 = vector.broadcast %52 : vector<16x1x32xf32> to vector<16x8x32xf32>
    %55 = arith.mulf %53, %54 : vector<16x8x32xf32>
    %56 = vector.extract_strided_slice %50 {offsets = [0, 0, 1], sizes = [16, 8, 1], strides = [1, 1, 1]} : vector<16x8x8xf32> to vector<16x8x1xf32>
    %57 = vector.extract_strided_slice %36 {offsets = [0, 1, 0], sizes = [16, 1, 32], strides = [1, 1, 1]} : vector<16x8x32xf32> to vector<16x1x32xf32>
    %58 = vector.broadcast %56 : vector<16x8x1xf32> to vector<16x8x32xf32>
    %59 = vector.broadcast %57 : vector<16x1x32xf32> to vector<16x8x32xf32>
    %60 = arith.mulf %58, %59 : vector<16x8x32xf32>
    %61 = arith.addf %55, %60 : vector<16x8x32xf32>
    %62 = vector.extract_strided_slice %50 {offsets = [0, 0, 2], sizes = [16, 8, 1], strides = [1, 1, 1]} : vector<16x8x8xf32> to vector<16x8x1xf32>
    %63 = vector.extract_strided_slice %36 {offsets = [0, 2, 0], sizes = [16, 1, 32], strides = [1, 1, 1]} : vector<16x8x32xf32> to vector<16x1x32xf32>
    %64 = vector.broadcast %62 : vector<16x8x1xf32> to vector<16x8x32xf32>
    %65 = vector.broadcast %63 : vector<16x1x32xf32> to vector<16x8x32xf32>
    %66 = arith.mulf %64, %65 : vector<16x8x32xf32>
    %67 = arith.addf %61, %66 : vector<16x8x32xf32>
    %68 = vector.extract_strided_slice %50 {offsets = [0, 0, 3], sizes = [16, 8, 1], strides = [1, 1, 1]} : vector<16x8x8xf32> to vector<16x8x1xf32>
    %69 = vector.extract_strided_slice %36 {offsets = [0, 3, 0], sizes = [16, 1, 32], strides = [1, 1, 1]} : vector<16x8x32xf32> to vector<16x1x32xf32>
    %70 = vector.broadcast %68 : vector<16x8x1xf32> to vector<16x8x32xf32>
    %71 = vector.broadcast %69 : vector<16x1x32xf32> to vector<16x8x32xf32>
    %72 = arith.mulf %70, %71 : vector<16x8x32xf32>
    %73 = arith.addf %67, %72 : vector<16x8x32xf32>
    %74 = vector.extract_strided_slice %50 {offsets = [0, 0, 4], sizes = [16, 8, 1], strides = [1, 1, 1]} : vector<16x8x8xf32> to vector<16x8x1xf32>
    %75 = vector.extract_strided_slice %36 {offsets = [0, 4, 0], sizes = [16, 1, 32], strides = [1, 1, 1]} : vector<16x8x32xf32> to vector<16x1x32xf32>
    %76 = vector.broadcast %74 : vector<16x8x1xf32> to vector<16x8x32xf32>
    %77 = vector.broadcast %75 : vector<16x1x32xf32> to vector<16x8x32xf32>
    %78 = arith.mulf %76, %77 : vector<16x8x32xf32>
    %79 = arith.addf %73, %78 : vector<16x8x32xf32>
    %80 = vector.extract_strided_slice %50 {offsets = [0, 0, 5], sizes = [16, 8, 1], strides = [1, 1, 1]} : vector<16x8x8xf32> to vector<16x8x1xf32>
    %81 = vector.extract_strided_slice %36 {offsets = [0, 5, 0], sizes = [16, 1, 32], strides = [1, 1, 1]} : vector<16x8x32xf32> to vector<16x1x32xf32>
    %82 = vector.broadcast %80 : vector<16x8x1xf32> to vector<16x8x32xf32>
    %83 = vector.broadcast %81 : vector<16x1x32xf32> to vector<16x8x32xf32>
    %84 = arith.mulf %82, %83 : vector<16x8x32xf32>
    %85 = arith.addf %79, %84 : vector<16x8x32xf32>
    %86 = vector.extract_strided_slice %50 {offsets = [0, 0, 6], sizes = [16, 8, 1], strides = [1, 1, 1]} : vector<16x8x8xf32> to vector<16x8x1xf32>
    %87 = vector.extract_strided_slice %36 {offsets = [0, 6, 0], sizes = [16, 1, 32], strides = [1, 1, 1]} : vector<16x8x32xf32> to vector<16x1x32xf32>
    %88 = vector.broadcast %86 : vector<16x8x1xf32> to vector<16x8x32xf32>
    %89 = vector.broadcast %87 : vector<16x1x32xf32> to vector<16x8x32xf32>
    %90 = arith.mulf %88, %89 : vector<16x8x32xf32>
    %91 = arith.addf %85, %90 : vector<16x8x32xf32>
    %92 = vector.extract_strided_slice %50 {offsets = [0, 0, 7], sizes = [16, 8, 1], strides = [1, 1, 1]} : vector<16x8x8xf32> to vector<16x8x1xf32>
    %93 = vector.extract_strided_slice %36 {offsets = [0, 7, 0], sizes = [16, 1, 32], strides = [1, 1, 1]} : vector<16x8x32xf32> to vector<16x1x32xf32>
    %94 = vector.broadcast %92 : vector<16x8x1xf32> to vector<16x8x32xf32>
    %95 = vector.broadcast %93 : vector<16x1x32xf32> to vector<16x8x32xf32>
    %96 = arith.mulf %94, %95 : vector<16x8x32xf32>
    %97 = arith.addf %91, %96 : vector<16x8x32xf32>
    %98 = arith.addf %36, %97 : vector<16x8x32xf32>
    %cst_25 = arith.constant 0.000000e+00 : f32
    %99 = vector.broadcast %cst_25 : f32 to vector<16x8x32xf32>
    %100 = arith.maximumf %98, %99 : vector<16x8x32xf32>
    %cst_26 = arith.constant dense<0.000000e+00> : vector<16x32xf32>
    %101 = vector.multi_reduction <add>, %12, %cst_26 [1] : vector<16x8x32xf32> to vector<16x32xf32>
    %cst_27 = arith.constant 8.000000e+00 : f32
    %102 = vector.broadcast %cst_27 : f32 to vector<16x32xf32>
    %103 = arith.divf %101, %102 : vector<16x32xf32>
    %c3 = arith.constant 3 : index
    %c0_28 = arith.constant 0 : index
    %104 = vector.load %arg6[%c3, %c0_28] : memref<7x32xf32, #tpu.memory_space<vmem>>, vector<1x32xf32>
    %c5 = arith.constant 5 : index
    %c0_29 = arith.constant 0 : index
    %105 = vector.load %arg6[%c5, %c0_29] : memref<7x32xf32, #tpu.memory_space<vmem>>, vector<1x32xf32>
    %106 = vector.broadcast %104 : vector<1x32xf32> to vector<16x32xf32>
    %107 = arith.mulf %103, %106 : vector<16x32xf32>
    %cst_30 = arith.constant dense<0.000000e+00> : vector<16xf32>
    %108 = vector.multi_reduction <add>, %107, %cst_30 [1] : vector<16x32xf32> to vector<16xf32>
    %109 = vector.shape_cast %108 : vector<16xf32> to vector<16x1xf32>
    %110 = vector.shape_cast %105 : vector<1x32xf32> to vector<1x1x32xf32>
    %111 = vector.broadcast %110 : vector<1x1x32xf32> to vector<16x8x32xf32>
    %112 = arith.mulf %100, %111 : vector<16x8x32xf32>
    %cst_31 = arith.constant dense<0.000000e+00> : vector<16x8xf32>
    %113 = vector.multi_reduction <add>, %112, %cst_31 [2] : vector<16x8x32xf32> to vector<16x8xf32>
    %c0_32 = arith.constant 0 : index
    %c0_33 = arith.constant 0 : index
    %114 = vector.load %arg3[%c0_32, %c0_33] : memref<16x16xf32, #tpu.memory_space<vmem>>, vector<16x8xf32>
    %115 = arith.addf %113, %114 : vector<16x8xf32>
    %116 = vector.broadcast %109 : vector<16x1xf32> to vector<16x8xf32>
    %117 = arith.addf %115, %116 : vector<16x8xf32>
    %cst_34 = arith.constant dense<0xFF800000> : vector<16xf32>
    %118 = vector.multi_reduction <maximumf>, %117, %cst_34 [1] : vector<16x8xf32> to vector<16xf32>
    %119 = vector.shape_cast %118 : vector<16xf32> to vector<16x1xf32>
    %120 = vector.broadcast %119 : vector<16x1xf32> to vector<16x8xf32>
    %121 = arith.subf %117, %120 : vector<16x8xf32>
    %122 = math.exp %121 : vector<16x8xf32>
    %cst_35 = arith.constant dense<0.000000e+00> : vector<16xf32>
    %123 = vector.multi_reduction <add>, %122, %cst_35 [1] : vector<16x8xf32> to vector<16xf32>
    %124 = vector.shape_cast %123 : vector<16xf32> to vector<16x1xf32>
    %125 = vector.broadcast %124 : vector<16x1xf32> to vector<16x8xf32>
    %126 = arith.divf %122, %125 : vector<16x8xf32>
    %127 = vector.shape_cast %126 : vector<16x8xf32> to vector<16x8x1xf32>
    %128 = vector.broadcast %127 : vector<16x8x1xf32> to vector<16x8x32xf32>
    %129 = arith.mulf %128, %100 : vector<16x8x32xf32>
    %cst_36 = arith.constant dense<0.000000e+00> : vector<16x32xf32>
    %130 = vector.multi_reduction <add>, %129, %cst_36 [1] : vector<16x8x32xf32> to vector<16x32xf32>
    %c4 = arith.constant 4 : index
    %c0_37 = arith.constant 0 : index
    %131 = vector.load %arg6[%c4, %c0_37] : memref<7x32xf32, #tpu.memory_space<vmem>>, vector<1x32xf32>
    %c6 = arith.constant 6 : index
    %c0_38 = arith.constant 0 : index
    %132 = vector.load %arg6[%c6, %c0_38] : memref<7x32xf32, #tpu.memory_space<vmem>>, vector<1x32xf32>
    %133 = vector.broadcast %131 : vector<1x32xf32> to vector<16x32xf32>
    %134 = arith.mulf %103, %133 : vector<16x32xf32>
    %cst_39 = arith.constant dense<0.000000e+00> : vector<16xf32>
    %135 = vector.multi_reduction <add>, %134, %cst_39 [1] : vector<16x32xf32> to vector<16xf32>
    %136 = vector.shape_cast %135 : vector<16xf32> to vector<16x1xf32>
    %137 = vector.shape_cast %132 : vector<1x32xf32> to vector<1x1x32xf32>
    %138 = vector.broadcast %137 : vector<1x1x32xf32> to vector<16x8x32xf32>
    %139 = arith.mulf %100, %138 : vector<16x8x32xf32>
    %cst_40 = arith.constant dense<0.000000e+00> : vector<16x8xf32>
    %140 = vector.multi_reduction <add>, %139, %cst_40 [2] : vector<16x8x32xf32> to vector<16x8xf32>
    %c0_41 = arith.constant 0 : index
    %c8 = arith.constant 8 : index
    %141 = vector.load %arg3[%c0_41, %c8] : memref<16x16xf32, #tpu.memory_space<vmem>>, vector<16x8xf32>
    %142 = arith.addf %140, %141 : vector<16x8xf32>
    %143 = vector.broadcast %136 : vector<16x1xf32> to vector<16x8xf32>
    %144 = arith.addf %142, %143 : vector<16x8xf32>
    %cst_42 = arith.constant dense<0xFF800000> : vector<16xf32>
    %145 = vector.multi_reduction <maximumf>, %144, %cst_42 [1] : vector<16x8xf32> to vector<16xf32>
    %146 = vector.shape_cast %145 : vector<16xf32> to vector<16x1xf32>
    %147 = vector.broadcast %146 : vector<16x1xf32> to vector<16x8xf32>
    %148 = arith.subf %144, %147 : vector<16x8xf32>
    %149 = math.exp %148 : vector<16x8xf32>
    %cst_43 = arith.constant dense<0.000000e+00> : vector<16xf32>
    %150 = vector.multi_reduction <add>, %149, %cst_43 [1] : vector<16x8xf32> to vector<16xf32>
    %151 = vector.shape_cast %150 : vector<16xf32> to vector<16x1xf32>
    %152 = vector.broadcast %151 : vector<16x1xf32> to vector<16x8xf32>
    %153 = arith.divf %149, %152 : vector<16x8xf32>
    %154 = vector.shape_cast %153 : vector<16x8xf32> to vector<16x8x1xf32>
    %155 = vector.broadcast %154 : vector<16x8x1xf32> to vector<16x8x32xf32>
    %156 = arith.mulf %155, %100 : vector<16x8x32xf32>
    %cst_44 = arith.constant dense<0.000000e+00> : vector<16x32xf32>
    %157 = vector.multi_reduction <add>, %156, %cst_44 [1] : vector<16x8x32xf32> to vector<16x32xf32>
    %158 = tpu.concatenate %130, %157 in 1 : vector<16x32xf32>, vector<16x32xf32> -> vector<16x64xf32>
    %c0_45 = arith.constant 0 : index
    %c0_46 = arith.constant 0 : index
    %159 = vector.load %arg8[%c0_45, %c0_46] : memref<64x16xf32, #tpu.memory_space<vmem>>, vector<64x16xf32>
    %cst_47 = arith.constant dense<0.000000e+00> : vector<16x16xf32>
    %160 = tpu.matmul %158, %159, %cst_47 {dimension_numbers = #tpu.dot_dimension_numbers<[1], [0], [0], [1], [0, 0, 1, 1], [], []>} : vector<16x64xf32>, vector<64x16xf32>, vector<16x16xf32> -> vector<16x16xf32>
    %c0_48 = arith.constant 0 : index
    %c0_49 = arith.constant 0 : index
    %161 = vector.load %arg9[%c0_48, %c0_49] : memref<1x16xf32, #tpu.memory_space<vmem>>, vector<1x16xf32>
    %162 = vector.broadcast %161 : vector<1x16xf32> to vector<16x16xf32>
    %163 = arith.addf %160, %162 : vector<16x16xf32>
    %164 = tpu.concatenate %163, %29, %126, %153 in 1 : vector<16x16xf32>, vector<16x32xf32>, vector<16x8xf32>, vector<16x8xf32> -> vector<16x64xf32>
    %c0_50 = arith.constant 0 : index
    %c0_51 = arith.constant 0 : index
    %165 = vector.load %arg10[%c0_50, %c0_51] : memref<16x64xf32, #tpu.memory_space<vmem>>, vector<16x64xf32>
    tpu.vector_store %arg10[%c0_50, %c0_51], %164 {strides = array<i32>} : memref<16x64xf32, #tpu.memory_space<vmem>>, vector<16x64xf32>,
    return
  }
  func.func @transform_0(%arg0: i32) -> (i32, i32, i32) {
    %c0_i32 = arith.constant 0 : i32
    %c0_i32_0 = arith.constant 0 : i32
    %c0_i32_1 = arith.constant 0 : i32
    return %arg0, %c0_i32, %c0_i32_0 : i32, i32, i32
  }
  func.func @transform_1(%arg0: i32) -> (i32, i32, i32) {
    %c0_i32 = arith.constant 0 : i32
    %c0_i32_0 = arith.constant 0 : i32
    %c0_i32_1 = arith.constant 0 : i32
    return %arg0, %c0_i32, %c0_i32_0 : i32, i32, i32
  }
  func.func @transform_2(%arg0: i32) -> (i32, i32) {
    %c0_i32 = arith.constant 0 : i32
    %c0_i32_0 = arith.constant 0 : i32
    return %arg0, %c0_i32 : i32, i32
  }
  func.func @transform_3(%arg0: i32) -> (i32, i32, i32) {
    %c0_i32 = arith.constant 0 : i32
    %c0_i32_0 = arith.constant 0 : i32
    %c0_i32_1 = arith.constant 0 : i32
    return %arg0, %c0_i32, %c0_i32_0 : i32, i32, i32
  }
  func.func @transform_4(%arg0: i32) -> (i32, i32) {
    %c0_i32 = arith.constant 0 : i32
    %c0_i32_0 = arith.constant 0 : i32
    %c0_i32_1 = arith.constant 0 : i32
    return %c0_i32, %c0_i32_0 : i32, i32
  }
  func.func @transform_5(%arg0: i32) -> (i32, i32) {
    %c0_i32 = arith.constant 0 : i32
    %c0_i32_0 = arith.constant 0 : i32
    %c0_i32_1 = arith.constant 0 : i32
    return %c0_i32, %c0_i32_0 : i32, i32
  }
  func.func @transform_6(%arg0: i32) -> (i32, i32) {
    %c0_i32 = arith.constant 0 : i32
    %c0_i32_0 = arith.constant 0 : i32
    %c0_i32_1 = arith.constant 0 : i32
    return %c0_i32, %c0_i32_0 : i32, i32
  }
  func.func @transform_7(%arg0: i32) -> (i32, i32) {
    %c0_i32 = arith.constant 0 : i32
    %c0_i32_0 = arith.constant 0 : i32
    %c0_i32_1 = arith.constant 0 : i32
    return %c0_i32, %c0_i32_0 : i32, i32
  }
  func.func @transform_8(%arg0: i32) -> (i32, i32) {
    %c0_i32 = arith.constant 0 : i32
    %c0_i32_0 = arith.constant 0 : i32
    %c0_i32_1 = arith.constant 0 : i32
    return %c0_i32, %c0_i32_0 : i32, i32
  }
  func.func @transform_9(%arg0: i32) -> (i32, i32) {
    %c0_i32 = arith.constant 0 : i32
    %c0_i32_0 = arith.constant 0 : i32
    return %arg0, %c0_i32 : i32, i32
  }
}

</mosaic_0001>

<llo_original>
// kernel: tpu_custom_call.1
$region0: #{tpu_custom_call.1}
  #allocation0 [shape = 'u32[]', space=smem, size = 0x4, offset = 0x4, fixed_abs, tag = 'smem constant byte address 0x4 - core index']
  #allocation1 [shape = 'u32[144,128]{1,0:T(1,128)}', space=vmem, size = 0x12000, scoped, tag = 'internal scratch']
  %s0 = inlined_call_operand.vmem [shape: bf16[16,8,32], index: 0, kind: input, shape index: {}]
  %s1 = inlined_call_operand.vmem [shape: bf16[16,8,32], index: 1, kind: input, shape index: {}]
  %s2 = inlined_call_operand.hbm [shape: f32[16,16], index: 2, kind: input, shape index: {}]
  %s3 = inlined_call_operand.vmem [shape: bf16[16,8,128], index: 3, kind: input, shape index: {}]
  %s4 = inlined_call_operand.vmem [shape: bf16[64,32], index: 4, kind: input, shape index: {}]
  %s5 = inlined_call_operand.hbm [shape: f32[7,32], index: 5, kind: input, shape index: {}]
  %s6 = inlined_call_operand.vmem [shape: bf16[128,8], index: 6, kind: input, shape index: {}]
  %s7 = inlined_call_operand.vmem [shape: f32[64,16], index: 7, kind: input, shape index: {}]
  %s8 = inlined_call_operand.vmem [shape: f32[1,16], index: 8, kind: input, shape index: {}]
  %s9 = inlined_call_operand.hbm [shape: f32[16,64], index: 9, kind: output, shape index: {}]
  %s10 = sld [smem:[#allocation0]]
  $region54: #{tpu_custom_call.1} parent=0
    _
  %s12 = ssub.s32 1, %s10
  %s13 = scalar_select 0, %s12, %s10
  $region1: #{tpu_custom_call.1} parent=0
    #allocation2 [shape = 'u8[8192]{0}', space=vmem, size = 0x2000, scoped, tag = 'input window, operand 2, single buffered']
    #allocation3 [shape = 's32[1]{0}', space=sflag, size = 0x4, scoped, tag = 'scoped memory for tpu_custom_call.1']
    #allocation4 [shape = 's32[1]{0}', space=sflag, size = 0x4, scoped, tag = 'scoped memory for tpu_custom_call.1']
    #allocation5 [shape = 'u8[4096]{0}', space=vmem, size = 0x1000, scoped, tag = 'input window, operand 5, single buffered']
    #allocation6 [shape = 's32[1]{0}', space=sflag, size = 0x4, scoped, tag = 'scoped memory for tpu_custom_call.1']
    #allocation7 [shape = 'u8[8192]{0}', space=vmem, size = 0x2000, scoped, tag = 'output window, operand 0, single buffered']
    %14 = vsyncpa [#allocation3], 0
    %15 = vsyncpa [#allocation6], 0
    %16 = vsyncpa [#allocation4], 0
    // Predicated region
    $region2: #{tpu_custom_call.1} parent=1 // pred_check
      _
    $region3: #{tpu_custom_call.1} parent=1 // pred_check_branch
      %18 = sbr.rel (0) target = $region5
    $region4: #{tpu_custom_call.1} parent=1 // pred_region
      _
    $region5: #{tpu_custom_call.1} parent=1 // pred_fallthru
      _
    // Predicated region
    $region6: #{tpu_custom_call.1} parent=1 // pred_check
      _
    $region7: #{tpu_custom_call.1} parent=1 // pred_check_branch
      %20 = sbr.rel (0) target = $region9
    $region8: #{tpu_custom_call.1} parent=1 // pred_region
      _
    $region9: #{tpu_custom_call.1} parent=1 // pred_fallthru
      _
    // Predicated region
    $region10: #{tpu_custom_call.1} parent=1 // pred_check
      _
    $region11: #{tpu_custom_call.1} parent=1 // pred_check_branch
      %22 = sbr.rel (0) target = $region13
    $region12: #{tpu_custom_call.1} parent=1 // pred_region
      %s24 = ssub.s32 256, 256
      %25 = vsyncadd [#allocation3], %s24
      %s26 = sshll.u32 [#allocation2], 4
      %s27 = int_to_ptr.vmem [resolvable:$true] %s26
      %32 = dma.hbm_to_vmem [thread:$0]  %s2, 256, %s27, [#allocation3], 128, 128, 8
    $region13: #{tpu_custom_call.1} parent=1 // pred_fallthru
      _
    // Predicated region
    $region14: #{tpu_custom_call.1} parent=1 // pred_check
      _
    $region15: #{tpu_custom_call.1} parent=1 // pred_check_branch
      %34 = sbr.rel (0) target = $region17
    $region16: #{tpu_custom_call.1} parent=1 // pred_region
      _
    $region17: #{tpu_custom_call.1} parent=1 // pred_fallthru
      _
    // Predicated region
    $region18: #{tpu_custom_call.1} parent=1 // pred_check
      _
    $region19: #{tpu_custom_call.1} parent=1 // pred_check_branch
      %36 = sbr.rel (0) target = $region21
    $region20: #{tpu_custom_call.1} parent=1 // pred_region
      _
    $region21: #{tpu_custom_call.1} parent=1 // pred_fallthru
      _
    // Predicated region
    $region22: #{tpu_custom_call.1} parent=1 // pred_check
      _
    $region23: #{tpu_custom_call.1} parent=1 // pred_check_branch
      %38 = sbr.rel (0) target = $region25
    $region24: #{tpu_custom_call.1} parent=1 // pred_region
      %s40 = ssub.s32 128, 128
      %41 = vsyncadd [#allocation6], %s40
      %s43 = sshll.u32 [#allocation5], 4
      %s44 = int_to_ptr.vmem [resolvable:$true] %s43
      %46 = dma.hbm_to_vmem [thread:$0]  %s5, 128, %s44, [#allocation6]
    $region25: #{tpu_custom_call.1} parent=1 // pred_fallthru
      _
    // Predicated region
    $region26: #{tpu_custom_call.1} parent=1 // pred_check
      _
    $region27: #{tpu_custom_call.1} parent=1 // pred_check_branch
      %48 = sbr.rel (0) target = $region29
    $region28: #{tpu_custom_call.1} parent=1 // pred_region
      _
    $region29: #{tpu_custom_call.1} parent=1 // pred_fallthru
      _
    // Predicated region
    $region30: #{tpu_custom_call.1} parent=1 // pred_check
      _
    $region31: #{tpu_custom_call.1} parent=1 // pred_check_branch
      %50 = sbr.rel (0) target = $region33
    $region32: #{tpu_custom_call.1} parent=1 // pred_region
      _
    $region33: #{tpu_custom_call.1} parent=1 // pred_fallthru
      _
    // Predicated region
    $region34: #{tpu_custom_call.1} parent=1 // pred_check
      _
    $region35: #{tpu_custom_call.1} parent=1 // pred_check_branch
      %52 = sbr.rel (0) target = $region37
    $region36: #{tpu_custom_call.1} parent=1 // pred_region
      _
    $region37: #{tpu_custom_call.1} parent=1 // pred_fallthru
      _
    // Predicated region
    $region38: #{tpu_custom_call.1} parent=1 // pred_check
      _
    $region39: #{tpu_custom_call.1} parent=1 // pred_check_branch
      %54 = sbr.rel (0) target = $region41
    $region40: #{tpu_custom_call.1} parent=1 // pred_region
      %55 = dma.done [#allocation3], 256
    $region41: #{tpu_custom_call.1} parent=1 // pred_fallthru
      _
    // Predicated region
    $region42: #{tpu_custom_call.1} parent=1 // pred_check
      _
    $region43: #{tpu_custom_call.1} parent=1 // pred_check_branch
      %57 = sbr.rel (0) target = $region45
    $region44: #{tpu_custom_call.1} parent=1 // pred_region
      %58 = dma.done [#allocation6], 128
    $region45: #{tpu_custom_call.1} parent=1 // pred_fallthru
      _
    %v60 = vld [vmem:[%s4] sm:$0xf]
    %v61 = vld [vmem:[%s4 + $0x4] sm:$0xf]
    %v62 = vld [vmem:[%s4 + $0x8] sm:$0xf]
    %v63 = vld [vmem:[%s4 + $0xc] sm:$0xf]
    %v64 = vld [vmem:[%s4 + $0x10] sm:$0xf]
    %v65 = vld [vmem:[%s4 + $0x14] sm:$0xf]
    %v66 = vld [vmem:[%s4 + $0x18] sm:$0xf]
    %v67 = vld [vmem:[%s4 + $0x1c] sm:$0xf]
    %v68 = vld [vmem:[#allocation5] sm:$0x1]
    %v69 = vld [vmem:[#allocation5 + $0x1] sm:$0x1]
    %v70 = vld [vmem:[#allocation5 + $0x2] sm:$0x1]
    %v71 = vld [vmem:[%s0] sm:$0xf]
    %v72 = vld [vmem:[%s0 + $0x4] sm:$0xf]
    %v73 = vld [vmem:[%s0 + $0x8] sm:$0xf]
    %v74 = vld [vmem:[%s0 + $0xc] sm:$0xf]
    %v75 = vld [vmem:[%s0 + $0x10] sm:$0xf]
    %v76 = vld [vmem:[%s0 + $0x14] sm:$0xf]
    %v77 = vld [vmem:[%s0 + $0x18] sm:$0xf]
    %v78 = vld [vmem:[%s0 + $0x1c] sm:$0xf]
    %v79 = vld [vmem:[%s0 + $0x20] sm:$0xf]
    %v80 = vld [vmem:[%s0 + $0x24] sm:$0xf]
    %v81 = vld [vmem:[%s0 + $0x28] sm:$0xf]
    %v82 = vld [vmem:[%s0 + $0x2c] sm:$0xf]
    %v83 = vld [vmem:[%s0 + $0x30] sm:$0xf]
    %v84 = vld [vmem:[%s0 + $0x34] sm:$0xf]
    %v85 = vld [vmem:[%s0 + $0x38] sm:$0xf]
    %v86 = vld [vmem:[%s0 + $0x3c] sm:$0xf]
    %v103 = vunpack.c.l.b16 %v71
    %v104 = vunpack.c.l.b16 %v72
    %v105 = vunpack.c.l.b16 %v73
    %v106 = vunpack.c.l.b16 %v74
    %v107 = vunpack.c.l.b16 %v75
    %v108 = vunpack.c.l.b16 %v76
    %v109 = vunpack.c.l.b16 %v77
    %v110 = vunpack.c.l.b16 %v78
    %v111 = vunpack.c.l.b16 %v79
    %v112 = vunpack.c.l.b16 %v80
    %v113 = vunpack.c.l.b16 %v81
    %v114 = vunpack.c.l.b16 %v82
    %v115 = vunpack.c.l.b16 %v83
    %v116 = vunpack.c.l.b16 %v84
    %v117 = vunpack.c.l.b16 %v85
    %v118 = vunpack.c.l.b16 %v86
    %v119 = vpack.c.b16 %v104, %v103
    %v120 = vpack.c.b16 %v106, %v105
    %v121 = vpack.c.b16 %v108, %v107
    %v122 = vpack.c.b16 %v110, %v109
    %v123 = vpack.c.b16 %v112, %v111
    %v124 = vpack.c.b16 %v114, %v113
    %v125 = vpack.c.b16 %v116, %v115
    %v126 = vpack.c.b16 %v118, %v117
    %v131 = vunpack.c.l.b16 %v60
    %v132 = vunpack.c.l.b16 %v61
    %v133 = vunpack.c.l.b16 %v62
    %v134 = vunpack.c.l.b16 %v63
    %v135 = vpack.c.b16 %v132, %v131
    %v136 = vpack.c.b16 %v134, %v133
    %vm139 = vcmask 261120
    %v141 = vsel %vm139, %v119, 0
    %v144 = vsel %vm139, %v120, 0
    %v147 = vsel %vm139, %v121, 0
    %v150 = vsel %vm139, %v122, 0
    %v153 = vsel %vm139, %v123, 0
    %v156 = vsel %vm139, %v124, 0
    %v159 = vsel %vm139, %v125, 0
    %v162 = vsel %vm139, %v126, 0
    %164 = vmatprep.subr.bf16.mxu0 0
    %165 = vmatpush1.bf16.msra.mxu0 0
    %166 = vmatprep.subr.bf16.mxu0 0
    %167 = vmatpush1.bf16.msra.mxu0 0
    %168 = vmatprep.subr.bf16.mxu0 0
    %169 = vmatpush1.bf16.msra.mxu0 0
    %170 = vmatprep.subr.bf16.mxu0 0
    %171 = vmatpush1.bf16.msra.mxu0 0
    %172 = vmatprep.subr.bf16.mxu0 0
    %173 = vmatpush1.bf16.msra.mxu0 0
    %174 = vmatprep.subr.bf16.mxu0 0
    %175 = vmatpush1.bf16.msra.mxu0 0
    %176 = vmatprep.subr.bf16.mxu0 0
    %177 = vmatpush1.bf16.msra.mxu0 %v136
    %178 = vmatprep.subr.bf16.mxu0 0
    %179 = vmatpush1.bf16.msra.mxu0 %v135
    %180 = vmatprep.subr.bf16.mxu0 0
    %181 = vmatpush2.bf16.msra.mxu0 0
    %182 = vmatprep.subr.bf16.mxu0 0
    %183 = vmatpush2.bf16.msra.mxu0 0
    %184 = vmatprep.subr.bf16.mxu0 0
    %185 = vmatpush2.bf16.msra.mxu0 0
    %186 = vmatprep.subr.bf16.mxu0 0
    %187 = vmatpush2.bf16.msra.mxu0 0
    %188 = vmatprep.subr.bf16.mxu0 0
    %189 = vmatpush2.bf16.msra.mxu0 0
    %190 = vmatprep.subr.bf16.mxu0 0
    %191 = vmatpush2.bf16.msra.mxu0 0
    %192 = vmatprep.subr.bf16.mxu0 0
    %193 = vmatpush2.bf16.msra.mxu0 0
    %194 = vmatprep.subr.bf16.mxu0 0
    %195 = vmatpush2.bf16.msra.mxu0 0
    %196 = vmatprep.mubr.bf16.mxu0 0
    %197 = vmatmul.mubr.bf16.gmra.mxu0 %v141
    %v198 = vpop.f32.mrf.mxu0
    %v199 = vadd.f32 0.0, %v198
    %v200 = vpop.f32.mrf.mxu0
    %v201 = vpop.f32.mrf.mxu0
    %v202 = vadd.f32 0.0, %v201
    %v203 = vpop.f32.mrf.mxu0
    %204 = vmatprep.mubr.bf16.mxu0 0
    %205 = vmatmul.mubr.bf16.gmra.mxu0 %v144
    %v206 = vpop.f32.mrf.mxu0
    %v207 = vadd.f32 0.0, %v206
    %v208 = vpop.f32.mrf.mxu0
    %v209 = vpop.f32.mrf.mxu0
    %v210 = vadd.f32 0.0, %v209
    %v211 = vpop.f32.mrf.mxu0
    %212 = vmatprep.mubr.bf16.mxu0 0
    %213 = vmatmul.mubr.bf16.gmra.mxu0 %v147
    %v214 = vpop.f32.mrf.mxu0
    %v215 = vadd.f32 0.0, %v214
    %v216 = vpop.f32.mrf.mxu0
    %v217 = vpop.f32.mrf.mxu0
    %v218 = vadd.f32 0.0, %v217
    %v219 = vpop.f32.mrf.mxu0
    %220 = vmatprep.mubr.bf16.mxu0 0
    %221 = vmatmul.mubr.bf16.gmra.mxu0 %v150
    %v222 = vpop.f32.mrf.mxu0
    %v223 = vadd.f32 0.0, %v222
    %v224 = vpop.f32.mrf.mxu0
    %v225 = vpop.f32.mrf.mxu0
    %v226 = vadd.f32 0.0, %v225
    %v227 = vpop.f32.mrf.mxu0
    %228 = vmatprep.mubr.bf16.mxu0 0
    %229 = vmatmul.mubr.bf16.gmra.mxu0 %v153
    %v230 = vpop.f32.mrf.mxu0
    %v231 = vadd.f32 0.0, %v230
    %v232 = vpop.f32.mrf.mxu0
    %v233 = vpop.f32.mrf.mxu0
    %v234 = vadd.f32 0.0, %v233
    %v235 = vpop.f32.mrf.mxu0
    %236 = vmatprep.mubr.bf16.mxu0 0
    %237 = vmatmul.mubr.bf16.gmra.mxu0 %v156
    %v238 = vpop.f32.mrf.mxu0
    %v239 = vadd.f32 0.0, %v238
    %v240 = vpop.f32.mrf.mxu0
    %v241 = vpop.f32.mrf.mxu0
    %v242 = vadd.f32 0.0, %v241
    %v243 = vpop.f32.mrf.mxu0
    %244 = vmatprep.mubr.bf16.mxu0 0
    %245 = vmatmul.mubr.bf16.gmra.mxu0 %v159
    %v246 = vpop.f32.mrf.mxu0
    %v247 = vadd.f32 0.0, %v246
    %v248 = vpop.f32.mrf.mxu0
    %v249 = vpop.f32.mrf.mxu0
    %v250 = vadd.f32 0.0, %v249
    %v251 = vpop.f32.mrf.mxu0
    %252 = vmatprep.mubr.bf16.mxu0 0
    %253 = vmatmul.mubr.bf16.gmra.mxu0 %v162
    %v254 = vpop.f32.mrf.mxu0
    %v255 = vadd.f32 0.0, %v254
    %v256 = vpop.f32.mrf.mxu0
    %v257 = vpop.f32.mrf.mxu0
    %v258 = vadd.f32 0.0, %v257
    %v259 = vpop.f32.mrf.mxu0
    %260 = vdwg.mxu0
    %v261 = vlaneseq
    %v262 = vshrl.u32 %v261, 7
    %v263 = vsub.s32 0, %v262
    %v264 = vrot.slane %v68, %v263
    %v265 = vadd.f32 %v199, %v264
    %v266 = vadd.f32 %v202, %v264
    %v267 = vadd.f32 %v207, %v264
    %v268 = vadd.f32 %v210, %v264
    %v269 = vadd.f32 %v215, %v264
    %v270 = vadd.f32 %v218, %v264
    %v271 = vadd.f32 %v223, %v264
    %v272 = vadd.f32 %v226, %v264
    %v273 = vadd.f32 %v231, %v264
    %v274 = vadd.f32 %v234, %v264
    %v275 = vadd.f32 %v239, %v264
    %v276 = vadd.f32 %v242, %v264
    %v277 = vadd.f32 %v247, %v264
    %v278 = vadd.f32 %v250, %v264
    %v279 = vadd.f32 %v255, %v264
    %v280 = vadd.f32 %v258, %v264
    %v281 = vtanh.pop %v265
    %v282 = vtanh.pop %v266
    %v283 = vtanh.pop %v267
    %v284 = vtanh.pop %v268
    %v285 = vtanh.pop %v269
    %v286 = vtanh.pop %v270
    %v287 = vtanh.pop %v271
    %v288 = vtanh.pop %v272
    %v289 = vtanh.pop %v273
    %v290 = vtanh.pop %v274
    %v291 = vtanh.pop %v275
    %v292 = vtanh.pop %v276
    %v293 = vtanh.pop %v277
    %v294 = vtanh.pop %v278
    %v295 = vtanh.pop %v279
    %v296 = vtanh.pop %v280
    %v297 = vlaneseq
    %v298 = vshrl.u32 %v297, 7
    %v299 = vsub.s32 0, %v298
    %v300 = vrot.slane %v70, %v299
    %v301 = vmul.f32 %v281, %v300
    %v302 = vmul.f32 %v282, %v300
    %v303 = vmul.f32 %v283, %v300
    %v304 = vmul.f32 %v284, %v300
    %v305 = vmul.f32 %v285, %v300
    %v306 = vmul.f32 %v286, %v300
    %v307 = vmul.f32 %v287, %v300
    %v308 = vmul.f32 %v288, %v300
    %v309 = vmul.f32 %v289, %v300
    %v310 = vmul.f32 %v290, %v300
    %v311 = vmul.f32 %v291, %v300
    %v312 = vmul.f32 %v292, %v300
    %v313 = vmul.f32 %v293, %v300
    %v314 = vmul.f32 %v294, %v300
    %v315 = vmul.f32 %v295, %v300
    %v316 = vmul.f32 %v296, %v300
    %v317 = vsel %vm139, %v301, 0.0
    %318 = vadd.xlane.f32.xlu0 %v317
    %v319 = vpop.xlane.xlu0 %318
    %v320 = vsel %vm139, %v302, 0.0
    %321 = vadd.xlane.f32.xlu0 %v320
    %v322 = vpop.xlane.xlu0 %321
    %v323 = vsel %vm139, %v303, 0.0
    %324 = vadd.xlane.f32.xlu0 %v323
    %v325 = vpop.xlane.xlu0 %324
    %v326 = vsel %vm139, %v304, 0.0
    %327 = vadd.xlane.f32.xlu0 %v326
    %v328 = vpop.xlane.xlu0 %327
    %v329 = vsel %vm139, %v305, 0.0
    %330 = vadd.xlane.f32.xlu0 %v329
    %v331 = vpop.xlane.xlu0 %330
    %v332 = vsel %vm139, %v306, 0.0
    %333 = vadd.xlane.f32.xlu0 %v332
    %v334 = vpop.xlane.xlu0 %333
    %v335 = vsel %vm139, %v307, 0.0
    %336 = vadd.xlane.f32.xlu0 %v335
    %v337 = vpop.xlane.xlu0 %336
    %v338 = vsel %vm139, %v308, 0.0
    %339 = vadd.xlane.f32.xlu0 %v338
    %v340 = vpop.xlane.xlu0 %339
    %v341 = vsel %vm139, %v309, 0.0
    %342 = vadd.xlane.f32.xlu0 %v341
    %v343 = vpop.xlane.xlu0 %342
    %v344 = vsel %vm139, %v310, 0.0
    %345 = vadd.xlane.f32.xlu0 %v344
    %v346 = vpop.xlane.xlu0 %345
    %v347 = vsel %vm139, %v311, 0.0
    %348 = vadd.xlane.f32.xlu0 %v347
    %v349 = vpop.xlane.xlu0 %348
    %v350 = vsel %vm139, %v312, 0.0
    %351 = vadd.xlane.f32.xlu0 %v350
    %v352 = vpop.xlane.xlu0 %351
    %v353 = vsel %vm139, %v313, 0.0
    %354 = vadd.xlane.f32.xlu0 %v353
    %v355 = vpop.xlane.xlu0 %354
    %v356 = vsel %vm139, %v314, 0.0
    %357 = vadd.xlane.f32.xlu0 %v356
    %v358 = vpop.xlane.xlu0 %357
    %v359 = vsel %vm139, %v315, 0.0
    %360 = vadd.xlane.f32.xlu0 %v359
    %v361 = vpop.xlane.xlu0 %360
    %v362 = vsel %vm139, %v316, 0.0
    %363 = vadd.xlane.f32.xlu0 %v362
    %v364 = vpop.xlane.xlu0 %363
    %v365 = vrot.slane %v319, 4
    %v366 = vmax.f32 %v319, %v365
    %v367 = vrot.slane %v366, 2
    %v368 = vmax.f32 %v366, %v367
    %v369 = vrot.slane %v368, 1
    %v370 = vmax.f32 %v368, %v369
    %v371 = vrot.slane %v322, 4
    %v372 = vmax.f32 %v322, %v371
    %v373 = vrot.slane %v372, 2
    %v374 = vmax.f32 %v372, %v373
    %v375 = vrot.slane %v374, 1
    %v376 = vmax.f32 %v374, %v375
    %v377 = vrot.slane %v325, 4
    %v378 = vmax.f32 %v325, %v377
    %v379 = vrot.slane %v378, 2
    %v380 = vmax.f32 %v378, %v379
    %v381 = vrot.slane %v380, 1
    %v382 = vmax.f32 %v380, %v381
    %v383 = vrot.slane %v328, 4
    %v384 = vmax.f32 %v328, %v383
    %v385 = vrot.slane %v384, 2
    %v386 = vmax.f32 %v384, %v385
    %v387 = vrot.slane %v386, 1
    %v388 = vmax.f32 %v386, %v387
    %v389 = vrot.slane %v331, 4
    %v390 = vmax.f32 %v331, %v389
    %v391 = vrot.slane %v390, 2
    %v392 = vmax.f32 %v390, %v391
    %v393 = vrot.slane %v392, 1
    %v394 = vmax.f32 %v392, %v393
    %v395 = vrot.slane %v334, 4
    %v396 = vmax.f32 %v334, %v395
    %v397 = vrot.slane %v396, 2
    %v398 = vmax.f32 %v396, %v397
    %v399 = vrot.slane %v398, 1
    %v400 = vmax.f32 %v398, %v399
    %v401 = vrot.slane %v337, 4
    %v402 = vmax.f32 %v337, %v401
    %v403 = vrot.slane %v402, 2
    %v404 = vmax.f32 %v402, %v403
    %v405 = vrot.slane %v404, 1
    %v406 = vmax.f32 %v404, %v405
    %v407 = vrot.slane %v340, 4
    %v408 = vmax.f32 %v340, %v407
    %v409 = vrot.slane %v408, 2
    %v410 = vmax.f32 %v408, %v409
    %v411 = vrot.slane %v410, 1
    %v412 = vmax.f32 %v410, %v411
    %v413 = vrot.slane %v343, 4
    %v414 = vmax.f32 %v343, %v413
    %v415 = vrot.slane %v414, 2
    %v416 = vmax.f32 %v414, %v415
    %v417 = vrot.slane %v416, 1
    %v418 = vmax.f32 %v416, %v417
    %v419 = vrot.slane %v346, 4
    %v420 = vmax.f32 %v346, %v419
    %v421 = vrot.slane %v420, 2
    %v422 = vmax.f32 %v420, %v421
    %v423 = vrot.slane %v422, 1
    %v424 = vmax.f32 %v422, %v423
    %v425 = vrot.slane %v349, 4
    %v426 = vmax.f32 %v349, %v425
    %v427 = vrot.slane %v426, 2
    %v428 = vmax.f32 %v426, %v427
    %v429 = vrot.slane %v428, 1
    %v430 = vmax.f32 %v428, %v429
    %v431 = vrot.slane %v352, 4
    %v432 = vmax.f32 %v352, %v431
    %v433 = vrot.slane %v432, 2
    %v434 = vmax.f32 %v432, %v433
    %v435 = vrot.slane %v434, 1
    %v436 = vmax.f32 %v434, %v435
    %v437 = vrot.slane %v355, 4
    %v438 = vmax.f32 %v355, %v437
    %v439 = vrot.slane %v438, 2
    %v440 = vmax.f32 %v438, %v439
    %v441 = vrot.slane %v440, 1
    %v442 = vmax.f32 %v440, %v441
    %v443 = vrot.slane %v358, 4
    %v444 = vmax.f32 %v358, %v443
    %v445 = vrot.slane %v444, 2
    %v446 = vmax.f32 %v444, %v445
    %v447 = vrot.slane %v446, 1
    %v448 = vmax.f32 %v446, %v447
    %v449 = vrot.slane %v361, 4
    %v450 = vmax.f32 %v361, %v449
    %v451 = vrot.slane %v450, 2
    %v452 = vmax.f32 %v450, %v451
    %v453 = vrot.slane %v452, 1
    %v454 = vmax.f32 %v452, %v453
    %v455 = vrot.slane %v364, 4
    %v456 = vmax.f32 %v364, %v455
    %v457 = vrot.slane %v456, 2
    %v458 = vmax.f32 %v456, %v457
    %v459 = vrot.slane %v458, 1
    %v460 = vmax.f32 %v458, %v459
    %v461 = vsub.f32 %v319, %v370
    %v462 = vsub.f32 %v322, %v376
    %v463 = vsub.f32 %v325, %v382
    %v464 = vsub.f32 %v328, %v388
    %v465 = vsub.f32 %v331, %v394
    %v466 = vsub.f32 %v334, %v400
    %v467 = vsub.f32 %v337, %v406
    %v468 = vsub.f32 %v340, %v412
    %v469 = vsub.f32 %v343, %v418
    %v470 = vsub.f32 %v346, %v424
    %v471 = vsub.f32 %v349, %v430
    %v472 = vsub.f32 %v352, %v436
    %v473 = vsub.f32 %v355, %v442
    %v474 = vsub.f32 %v358, %v448
    %v475 = vsub.f32 %v361, %v454
    %v476 = vsub.f32 %v364, %v460
    %v477 = vmul.f32 %v461, 1.442695
    %v478 = vpow.pop %v477
    %v479 = vmul.f32 %v462, 1.442695
    %v480 = vpow.pop %v479
    %v481 = vmul.f32 %v463, 1.442695
    %v482 = vpow.pop %v481
    %v483 = vmul.f32 %v464, 1.442695
    %v484 = vpow.pop %v483
    %v485 = vmul.f32 %v465, 1.442695
    %v486 = vpow.pop %v485
    %v487 = vmul.f32 %v466, 1.442695
    %v488 = vpow.pop %v487
    %v489 = vmul.f32 %v467, 1.442695
    %v490 = vpow.pop %v489
    %v491 = vmul.f32 %v468, 1.442695
    %v492 = vpow.pop %v491
    %v493 = vmul.f32 %v469, 1.442695
    %v494 = vpow.pop %v493
    %v495 = vmul.f32 %v470, 1.442695
    %v496 = vpow.pop %v495
    %v497 = vmul.f32 %v471, 1.442695
    %v498 = vpow.pop %v497
    %v499 = vmul.f32 %v472, 1.442695
    %v500 = vpow.pop %v499
    %v501 = vmul.f32 %v473, 1.442695
    %v502 = vpow.pop %v501
    %v503 = vmul.f32 %v474, 1.442695
    %v504 = vpow.pop %v503
    %v505 = vmul.f32 %v475, 1.442695
    %v506 = vpow.pop %v505
    %v507 = vmul.f32 %v476, 1.442695
    %v508 = vpow.pop %v507
    %v509 = vrot.slane %v478, 4
    %v510 = vadd.f32 %v478, %v509
    %v511 = vrot.slane %v510, 2
    %v512 = vadd.f32 %v510, %v511
    %v513 = vrot.slane %v512, 1
    %v514 = vadd.f32 %v512, %v513
    %v515 = vrot.slane %v480, 4
    %v516 = vadd.f32 %v480, %v515
    %v517 = vrot.slane %v516, 2
    %v518 = vadd.f32 %v516, %v517
    %v519 = vrot.slane %v518, 1
    %v520 = vadd.f32 %v518, %v519
    %v521 = vrot.slane %v482, 4
    %v522 = vadd.f32 %v482, %v521
    %v523 = vrot.slane %v522, 2
    %v524 = vadd.f32 %v522, %v523
    %v525 = vrot.slane %v524, 1
    %v526 = vadd.f32 %v524, %v525
    %v527 = vrot.slane %v484, 4
    %v528 = vadd.f32 %v484, %v527
    %v529 = vrot.slane %v528, 2
    %v530 = vadd.f32 %v528, %v529
    %v531 = vrot.slane %v530, 1
    %v532 = vadd.f32 %v530, %v531
    %v533 = vrot.slane %v486, 4
    %v534 = vadd.f32 %v486, %v533
    %v535 = vrot.slane %v534, 2
    %v536 = vadd.f32 %v534, %v535
    %v537 = vrot.slane %v536, 1
    %v538 = vadd.f32 %v536, %v537
    %v539 = vrot.slane %v488, 4
    %v540 = vadd.f32 %v488, %v539
    %v541 = vrot.slane %v540, 2
    %v542 = vadd.f32 %v540, %v541
    %v543 = vrot.slane %v542, 1
    %v544 = vadd.f32 %v542, %v543
    %v545 = vrot.slane %v490, 4
    %v546 = vadd.f32 %v490, %v545
    %v547 = vrot.slane %v546, 2
    %v548 = vadd.f32 %v546, %v547
    %v549 = vrot.slane %v548, 1
    %v550 = vadd.f32 %v548, %v549
    %v551 = vrot.slane %v492, 4
    %v552 = vadd.f32 %v492, %v551
    %v553 = vrot.slane %v552, 2
    %v554 = vadd.f32 %v552, %v553
    %v555 = vrot.slane %v554, 1
    %v556 = vadd.f32 %v554, %v555
    %v557 = vrot.slane %v494, 4
    %v558 = vadd.f32 %v494, %v557
    %v559 = vrot.slane %v558, 2
    %v560 = vadd.f32 %v558, %v559
    %v561 = vrot.slane %v560, 1
    %v562 = vadd.f32 %v560, %v561
    %v563 = vrot.slane %v496, 4
    %v564 = vadd.f32 %v496, %v563
    %v565 = vrot.slane %v564, 2
    %v566 = vadd.f32 %v564, %v565
    %v567 = vrot.slane %v566, 1
    %v568 = vadd.f32 %v566, %v567
    %v569 = vrot.slane %v498, 4
    %v570 = vadd.f32 %v498, %v569
    %v571 = vrot.slane %v570, 2
    %v572 = vadd.f32 %v570, %v571
    %v573 = vrot.slane %v572, 1
    %v574 = vadd.f32 %v572, %v573
    %v575 = vrot.slane %v500, 4
    %v576 = vadd.f32 %v500, %v575
    %v577 = vrot.slane %v576, 2
    %v578 = vadd.f32 %v576, %v577
    %v579 = vrot.slane %v578, 1
    %v580 = vadd.f32 %v578, %v579
    %v581 = vrot.slane %v502, 4
    %v582 = vadd.f32 %v502, %v581
    %v583 = vrot.slane %v582, 2
    %v584 = vadd.f32 %v582, %v583
    %v585 = vrot.slane %v584, 1
    %v586 = vadd.f32 %v584, %v585
    %v587 = vrot.slane %v504, 4
    %v588 = vadd.f32 %v504, %v587
    %v589 = vrot.slane %v588, 2
    %v590 = vadd.f32 %v588, %v589
    %v591 = vrot.slane %v590, 1
    %v592 = vadd.f32 %v590, %v591
    %v593 = vrot.slane %v506, 4
    %v594 = vadd.f32 %v506, %v593
    %v595 = vrot.slane %v594, 2
    %v596 = vadd.f32 %v594, %v595
    %v597 = vrot.slane %v596, 1
    %v598 = vadd.f32 %v596, %v597
    %v599 = vrot.slane %v508, 4
    %v600 = vadd.f32 %v508, %v599
    %v601 = vrot.slane %v600, 2
    %v602 = vadd.f32 %v600, %v601
    %v603 = vrot.slane %v602, 1
    %v604 = vadd.f32 %v602, %v603
    %v605 = vrcp.pop %v514
    %v606 = vmul.f32 %v478, %v605
    %v607 = vrcp.pop %v520
    %v608 = vmul.f32 %v480, %v607
    %v609 = vrcp.pop %v526
    %v610 = vmul.f32 %v482, %v609
    %v611 = vrcp.pop %v532
    %v612 = vmul.f32 %v484, %v611
    %v613 = vrcp.pop %v538
    %v614 = vmul.f32 %v486, %v613
    %v615 = vrcp.pop %v544
    %v616 = vmul.f32 %v488, %v615
    %v617 = vrcp.pop %v550
    %v618 = vmul.f32 %v490, %v617
    %v619 = vrcp.pop %v556
    %v620 = vmul.f32 %v492, %v619
    %v621 = vrcp.pop %v562
    %v622 = vmul.f32 %v494, %v621
    %v623 = vrcp.pop %v568
    %v624 = vmul.f32 %v496, %v623
    %v625 = vrcp.pop %v574
    %v626 = vmul.f32 %v498, %v625
    %v627 = vrcp.pop %v580
    %v628 = vmul.f32 %v500, %v627
    %v629 = vrcp.pop %v586
    %v630 = vmul.f32 %v502, %v629
    %v631 = vrcp.pop %v592
    %v632 = vmul.f32 %v504, %v631
    %v633 = vrcp.pop %v598
    %v634 = vmul.f32 %v506, %v633
    %v635 = vrcp.pop %v604
    %v636 = vmul.f32 %v508, %v635
    %v637 = vmul.f32 %v606, %v281
    %v638 = vmul.f32 %v608, %v282
    %v639 = vmul.f32 %v610, %v283
    %v640 = vmul.f32 %v612, %v284
    %v641 = vmul.f32 %v614, %v285
    %v642 = vmul.f32 %v616, %v286
    %v643 = vmul.f32 %v618, %v287
    %v644 = vmul.f32 %v620, %v288
    %v645 = vmul.f32 %v622, %v289
    %v646 = vmul.f32 %v624, %v290
    %v647 = vmul.f32 %v626, %v291
    %v648 = vmul.f32 %v628, %v292
    %v649 = vmul.f32 %v630, %v293
    %v650 = vmul.f32 %v632, %v294
    %v651 = vmul.f32 %v634, %v295
    %v652 = vmul.f32 %v636, %v296
    %v653 = vsel %vm139, %v637, 0.0
    %v654 = vrot.slane %v653, 4
    %v655 = vadd.f32 %v653, %v654
    %v656 = vrot.slane %v655, 2
    %v657 = vadd.f32 %v655, %v656
    %v658 = vrot.slane %v657, 1
    %v659 = vadd.f32 %v657, %v658
    %v660 = vsel %vm139, %v638, 0.0
    %v661 = vrot.slane %v660, 4
    %v662 = vadd.f32 %v660, %v661
    %v663 = vrot.slane %v662, 2
    %v664 = vadd.f32 %v662, %v663
    %v665 = vrot.slane %v664, 1
    %v666 = vadd.f32 %v664, %v665
    %v667 = vsel %vm139, %v639, 0.0
    %v668 = vrot.slane %v667, 4
    %v669 = vadd.f32 %v667, %v668
    %v670 = vrot.slane %v669, 2
    %v671 = vadd.f32 %v669, %v670
    %v672 = vrot.slane %v671, 1
    %v673 = vadd.f32 %v671, %v672
    %v674 = vsel %vm139, %v640, 0.0
    %v675 = vrot.slane %v674, 4
    %v676 = vadd.f32 %v674, %v675
    %v677 = vrot.slane %v676, 2
    %v678 = vadd.f32 %v676, %v677
    %v679 = vrot.slane %v678, 1
    %v680 = vadd.f32 %v678, %v679
    %v681 = vsel %vm139, %v641, 0.0
    %v682 = vrot.slane %v681, 4
    %v683 = vadd.f32 %v681, %v682
    %v684 = vrot.slane %v683, 2
    %v685 = vadd.f32 %v683, %v684
    %v686 = vrot.slane %v685, 1
    %v687 = vadd.f32 %v685, %v686
    %v688 = vsel %vm139, %v642, 0.0
    %v689 = vrot.slane %v688, 4
    %v690 = vadd.f32 %v688, %v689
    %v691 = vrot.slane %v690, 2
    %v692 = vadd.f32 %v690, %v691
    %v693 = vrot.slane %v692, 1
    %v694 = vadd.f32 %v692, %v693
    %v695 = vsel %vm139, %v643, 0.0
    %v696 = vrot.slane %v695, 4
    %v697 = vadd.f32 %v695, %v696
    %v698 = vrot.slane %v697, 2
    %v699 = vadd.f32 %v697, %v698
    %v700 = vrot.slane %v699, 1
    %v701 = vadd.f32 %v699, %v700
    %v702 = vsel %vm139, %v644, 0.0
    %v703 = vrot.slane %v702, 4
    %v704 = vadd.f32 %v702, %v703
    %v705 = vrot.slane %v704, 2
    %v706 = vadd.f32 %v704, %v705
    %v707 = vrot.slane %v706, 1
    %v708 = vadd.f32 %v706, %v707
    %v709 = vsel %vm139, %v645, 0.0
    %v710 = vrot.slane %v709, 4
    %v711 = vadd.f32 %v709, %v710
    %v712 = vrot.slane %v711, 2
    %v713 = vadd.f32 %v711, %v712
    %v714 = vrot.slane %v713, 1
    %v715 = vadd.f32 %v713, %v714
    %v716 = vsel %vm139, %v646, 0.0
    %v717 = vrot.slane %v716, 4
    %v718 = vadd.f32 %v716, %v717
    %v719 = vrot.slane %v718, 2
    %v720 = vadd.f32 %v718, %v719
    %v721 = vrot.slane %v720, 1
    %v722 = vadd.f32 %v720, %v721
    %v723 = vsel %vm139, %v647, 0.0
    %v724 = vrot.slane %v723, 4
    %v725 = vadd.f32 %v723, %v724
    %v726 = vrot.slane %v725, 2
    %v727 = vadd.f32 %v725, %v726
    %v728 = vrot.slane %v727, 1
    %v729 = vadd.f32 %v727, %v728
    %v730 = vsel %vm139, %v648, 0.0
    %v731 = vrot.slane %v730, 4
    %v732 = vadd.f32 %v730, %v731
    %v733 = vrot.slane %v732, 2
    %v734 = vadd.f32 %v732, %v733
    %v735 = vrot.slane %v734, 1
    %v736 = vadd.f32 %v734, %v735
    %v737 = vsel %vm139, %v649, 0.0
    %v738 = vrot.slane %v737, 4
    %v739 = vadd.f32 %v737, %v738
    %v740 = vrot.slane %v739, 2
    %v741 = vadd.f32 %v739, %v740
    %v742 = vrot.slane %v741, 1
    %v743 = vadd.f32 %v741, %v742
    %v744 = vsel %vm139, %v650, 0.0
    %v745 = vrot.slane %v744, 4
    %v746 = vadd.f32 %v744, %v745
    %v747 = vrot.slane %v746, 2
    %v748 = vadd.f32 %v746, %v747
    %v749 = vrot.slane %v748, 1
    %v750 = vadd.f32 %v748, %v749
    %v751 = vsel %vm139, %v651, 0.0
    %v752 = vrot.slane %v751, 4
    %v753 = vadd.f32 %v751, %v752
    %v754 = vrot.slane %v753, 2
    %v755 = vadd.f32 %v753, %v754
    %v756 = vrot.slane %v755, 1
    %v757 = vadd.f32 %v755, %v756
    %v758 = vsel %vm139, %v652, 0.0
    %v759 = vrot.slane %v758, 4
    %v760 = vadd.f32 %v758, %v759
    %v761 = vrot.slane %v760, 2
    %v762 = vadd.f32 %v760, %v761
    %v763 = vrot.slane %v762, 1
    %v764 = vadd.f32 %v762, %v763
    %v765 = vld [vmem:[%s1] sm:$0xf]
    %v766 = vld [vmem:[%s1 + $0x4] sm:$0xf]
    %v767 = vld [vmem:[%s1 + $0x8] sm:$0xf]
    %v768 = vld [vmem:[%s1 + $0xc] sm:$0xf]
    %v769 = vld [vmem:[%s1 + $0x10] sm:$0xf]
    %v770 = vld [vmem:[%s1 + $0x14] sm:$0xf]
    %v771 = vld [vmem:[%s1 + $0x18] sm:$0xf]
    %v772 = vld [vmem:[%s1 + $0x1c] sm:$0xf]
    %v773 = vld [vmem:[%s1 + $0x20] sm:$0xf]
    %v774 = vld [vmem:[%s1 + $0x24] sm:$0xf]
    %v775 = vld [vmem:[%s1 + $0x28] sm:$0xf]
    %v776 = vld [vmem:[%s1 + $0x2c] sm:$0xf]
    %v777 = vld [vmem:[%s1 + $0x30] sm:$0xf]
    %v778 = vld [vmem:[%s1 + $0x34] sm:$0xf]
    %v779 = vld [vmem:[%s1 + $0x38] sm:$0xf]
    %v780 = vld [vmem:[%s1 + $0x3c] sm:$0xf]
    %v797 = vunpack.c.l.b16 %v765
    %v798 = vunpack.c.l.b16 %v766
    %v799 = vunpack.c.l.b16 %v767
    %v800 = vunpack.c.l.b16 %v768
    %v801 = vunpack.c.l.b16 %v769
    %v802 = vunpack.c.l.b16 %v770
    %v803 = vunpack.c.l.b16 %v771
    %v804 = vunpack.c.l.b16 %v772
    %v805 = vunpack.c.l.b16 %v773
    %v806 = vunpack.c.l.b16 %v774
    %v807 = vunpack.c.l.b16 %v775
    %v808 = vunpack.c.l.b16 %v776
    %v809 = vunpack.c.l.b16 %v777
    %v810 = vunpack.c.l.b16 %v778
    %v811 = vunpack.c.l.b16 %v779
    %v812 = vunpack.c.l.b16 %v780
    %v813 = vpack.c.b16 %v798, %v797
    %v814 = vpack.c.b16 %v800, %v799
    %v815 = vpack.c.b16 %v802, %v801
    %v816 = vpack.c.b16 %v804, %v803
    %v817 = vpack.c.b16 %v806, %v805
    %v818 = vpack.c.b16 %v808, %v807
    %v819 = vpack.c.b16 %v810, %v809
    %v820 = vpack.c.b16 %v812, %v811
    %v825 = vunpack.c.l.b16 %v64
    %v826 = vunpack.c.l.b16 %v65
    %v827 = vunpack.c.l.b16 %v66
    %v828 = vunpack.c.l.b16 %v67
    %v829 = vpack.c.b16 %v826, %v825
    %v830 = vpack.c.b16 %v828, %v827
    %v834 = vsel %vm139, %v813, 0
    %v837 = vsel %vm139, %v814, 0
    %v840 = vsel %vm139, %v815, 0
    %v843 = vsel %vm139, %v816, 0
    %v846 = vsel %vm139, %v817, 0
    %v849 = vsel %vm139, %v818, 0
    %v852 = vsel %vm139, %v819, 0
    %v855 = vsel %vm139, %v820, 0
    %857 = vmatprep.subr.bf16.mxu0 0
    %858 = vmatpush1.bf16.msra.mxu0 0
    %859 = vmatprep.subr.bf16.mxu0 0
    %860 = vmatpush1.bf16.msra.mxu0 0
    %861 = vmatprep.subr.bf16.mxu0 0
    %862 = vmatpush1.bf16.msra.mxu0 0
    %863 = vmatprep.subr.bf16.mxu0 0
    %864 = vmatpush1.bf16.msra.mxu0 0
    %865 = vmatprep.subr.bf16.mxu0 0
    %866 = vmatpush1.bf16.msra.mxu0 0
    %867 = vmatprep.subr.bf16.mxu0 0
    %868 = vmatpush1.bf16.msra.mxu0 0
    %869 = vmatprep.subr.bf16.mxu0 0
    %870 = vmatpush1.bf16.msra.mxu0 %v830
    %871 = vmatprep.subr.bf16.mxu0 0
    %872 = vmatpush1.bf16.msra.mxu0 %v829
    %873 = vmatprep.subr.bf16.mxu0 0
    %874 = vmatpush2.bf16.msra.mxu0 0
    %875 = vmatprep.subr.bf16.mxu0 0
    %876 = vmatpush2.bf16.msra.mxu0 0
    %877 = vmatprep.subr.bf16.mxu0 0
    %878 = vmatpush2.bf16.msra.mxu0 0
    %879 = vmatprep.subr.bf16.mxu0 0
    %880 = vmatpush2.bf16.msra.mxu0 0
    %881 = vmatprep.subr.bf16.mxu0 0
    %882 = vmatpush2.bf16.msra.mxu0 0
    %883 = vmatprep.subr.bf16.mxu0 0
    %884 = vmatpush2.bf16.msra.mxu0 0
    %885 = vmatprep.subr.bf16.mxu0 0
    %886 = vmatpush2.bf16.msra.mxu0 0
    %887 = vmatprep.subr.bf16.mxu0 0
    %888 = vmatpush2.bf16.msra.mxu0 0
    %889 = vmatprep.mubr.bf16.mxu0 0
    %890 = vmatmul.mubr.bf16.gmra.mxu0 %v834
    %v891 = vpop.f32.mrf.mxu0
    %v892 = vadd.f32 0.0, %v891
    %v893 = vpop.f32.mrf.mxu0
    %v894 = vpop.f32.mrf.mxu0
    %v895 = vadd.f32 0.0, %v894
    %v896 = vpop.f32.mrf.mxu0
    %897 = vmatprep.mubr.bf16.mxu0 0
    %898 = vmatmul.mubr.bf16.gmra.mxu0 %v837
    %v899 = vpop.f32.mrf.mxu0
    %v900 = vadd.f32 0.0, %v899
    %v901 = vpop.f32.mrf.mxu0
    %v902 = vpop.f32.mrf.mxu0
    %v903 = vadd.f32 0.0, %v902
    %v904 = vpop.f32.mrf.mxu0
    %905 = vmatprep.mubr.bf16.mxu0 0
    %906 = vmatmul.mubr.bf16.gmra.mxu0 %v840
    %v907 = vpop.f32.mrf.mxu0
    %v908 = vadd.f32 0.0, %v907
    %v909 = vpop.f32.mrf.mxu0
    %v910 = vpop.f32.mrf.mxu0
    %v911 = vadd.f32 0.0, %v910
    %v912 = vpop.f32.mrf.mxu0
    %913 = vmatprep.mubr.bf16.mxu0 0
    %914 = vmatmul.mubr.bf16.gmra.mxu0 %v843
    %v915 = vpop.f32.mrf.mxu0
    %v916 = vadd.f32 0.0, %v915
    %v917 = vpop.f32.mrf.mxu0
    %v918 = vpop.f32.mrf.mxu0
    %v919 = vadd.f32 0.0, %v918
    %v920 = vpop.f32.mrf.mxu0
    %921 = vmatprep.mubr.bf16.mxu0 0
    %922 = vmatmul.mubr.bf16.gmra.mxu0 %v846
    %v923 = vpop.f32.mrf.mxu0
    %v924 = vadd.f32 0.0, %v923
    %v925 = vpop.f32.mrf.mxu0
    %v926 = vpop.f32.mrf.mxu0
    %v927 = vadd.f32 0.0, %v926
    %v928 = vpop.f32.mrf.mxu0
    %929 = vmatprep.mubr.bf16.mxu0 0
    %930 = vmatmul.mubr.bf16.gmra.mxu0 %v849
    %v931 = vpop.f32.mrf.mxu0
    %v932 = vadd.f32 0.0, %v931
    %v933 = vpop.f32.mrf.mxu0
    %v934 = vpop.f32.mrf.mxu0
    %v935 = vadd.f32 0.0, %v934
    %v936 = vpop.f32.mrf.mxu0
    %937 = vmatprep.mubr.bf16.mxu0 0
    %938 = vmatmul.mubr.bf16.gmra.mxu0 %v852
    %v939 = vpop.f32.mrf.mxu0
    %v940 = vadd.f32 0.0, %v939
    %v941 = vpop.f32.mrf.mxu0
    %v942 = vpop.f32.mrf.mxu0
    %v943 = vadd.f32 0.0, %v942
    %v944 = vpop.f32.mrf.mxu0
    %945 = vmatprep.mubr.bf16.mxu0 0
    %946 = vmatmul.mubr.bf16.gmra.mxu0 %v855
    %v947 = vpop.f32.mrf.mxu0
    %v948 = vadd.f32 0.0, %v947
    %v949 = vpop.f32.mrf.mxu0
    %v950 = vpop.f32.mrf.mxu0
    %v951 = vadd.f32 0.0, %v950
    %v952 = vpop.f32.mrf.mxu0
    %953 = vdwg.mxu0
    %v954 = vlaneseq
    %v955 = vshrl.u32 %v954, 7
    %v956 = vsub.s32 0, %v955
    %v957 = vrot.slane %v69, %v956
    %v958 = vadd.f32 %v892, %v957
    %v959 = vadd.f32 %v895, %v957
    %v960 = vadd.f32 %v900, %v957
    %v961 = vadd.f32 %v903, %v957
    %v962 = vadd.f32 %v908, %v957
    %v963 = vadd.f32 %v911, %v957
    %v964 = vadd.f32 %v916, %v957
    %v965 = vadd.f32 %v919, %v957
    %v966 = vadd.f32 %v924, %v957
    %v967 = vadd.f32 %v927, %v957
    %v968 = vadd.f32 %v932, %v957
    %v969 = vadd.f32 %v935, %v957
    %v970 = vadd.f32 %v940, %v957
    %v971 = vadd.f32 %v943, %v957
    %v972 = vadd.f32 %v948, %v957
    %v973 = vadd.f32 %v951, %v957
    %v974 = vld [vmem:[%s3] sm:$0xf]
    %v975 = vld [vmem:[%s3 + $0x4] sm:$0xf]
    %v976 = vld [vmem:[%s3 + $0x8] sm:$0xf]
    %v977 = vld [vmem:[%s3 + $0xc] sm:$0xf]
    %v978 = vld [vmem:[%s3 + $0x10] sm:$0xf]
    %v979 = vld [vmem:[%s3 + $0x14] sm:$0xf]
    %v980 = vld [vmem:[%s3 + $0x18] sm:$0xf]
    %v981 = vld [vmem:[%s3 + $0x1c] sm:$0xf]
    %v982 = vld [vmem:[%s3 + $0x20] sm:$0xf]
    %v983 = vld [vmem:[%s3 + $0x24] sm:$0xf]
    %v984 = vld [vmem:[%s3 + $0x28] sm:$0xf]
    %v985 = vld [vmem:[%s3 + $0x2c] sm:$0xf]
    %v986 = vld [vmem:[%s3 + $0x30] sm:$0xf]
    %v987 = vld [vmem:[%s3 + $0x34] sm:$0xf]
    %v988 = vld [vmem:[%s3 + $0x38] sm:$0xf]
    %v989 = vld [vmem:[%s3 + $0x3c] sm:$0xf]
    %v990 = vld [vmem:[%s6] sm:$0xf]
    %v991 = vld [vmem:[%s6 + $0x4] sm:$0xf]
    %v992 = vld [vmem:[%s6 + $0x8] sm:$0xf]
    %v993 = vld [vmem:[%s6 + $0xc] sm:$0xf]
    %v994 = vld [vmem:[%s6 + $0x10] sm:$0xf]
    %v995 = vld [vmem:[%s6 + $0x14] sm:$0xf]
    %v996 = vld [vmem:[%s6 + $0x18] sm:$0xf]
    %v997 = vld [vmem:[%s6 + $0x1c] sm:$0xf]
    %v998 = vld [vmem:[%s6 + $0x20] sm:$0xf]
    %v999 = vld [vmem:[%s6 + $0x24] sm:$0xf]
    %v1000 = vld [vmem:[%s6 + $0x28] sm:$0xf]
    %v1001 = vld [vmem:[%s6 + $0x2c] sm:$0xf]
    %v1002 = vld [vmem:[%s6 + $0x30] sm:$0xf]
    %v1003 = vld [vmem:[%s6 + $0x34] sm:$0xf]
    %v1004 = vld [vmem:[%s6 + $0x38] sm:$0xf]
    %v1005 = vld [vmem:[%s6 + $0x3c] sm:$0xf]
    %v1022 = vunpack.c.l.b16 %v974
    %v1023 = vunpack.c.l.b16 %v975
    %v1024 = vunpack.c.l.b16 %v976
    %v1025 = vunpack.c.l.b16 %v977
    %v1026 = vunpack.c.l.b16 %v978
    %v1027 = vunpack.c.l.b16 %v979
    %v1028 = vunpack.c.l.b16 %v980
    %v1029 = vunpack.c.l.b16 %v981
    %v1030 = vunpack.c.l.b16 %v982
    %v1031 = vunpack.c.l.b16 %v983
    %v1032 = vunpack.c.l.b16 %v984
    %v1033 = vunpack.c.l.b16 %v985
    %v1034 = vunpack.c.l.b16 %v986
    %v1035 = vunpack.c.l.b16 %v987
    %v1036 = vunpack.c.l.b16 %v988
    %v1037 = vunpack.c.l.b16 %v989
    %v1038 = vpack.c.b16 %v1023, %v1022
    %v1039 = vpack.c.b16 %v1025, %v1024
    %v1040 = vpack.c.b16 %v1027, %v1026
    %v1041 = vpack.c.b16 %v1029, %v1028
    %v1042 = vpack.c.b16 %v1031, %v1030
    %v1043 = vpack.c.b16 %v1033, %v1032
    %v1044 = vpack.c.b16 %v1035, %v1034
    %v1045 = vpack.c.b16 %v1037, %v1036
    %v1070 = vunpack.c.l.b16 %v990
    %v1071 = vunpack.c.l.b16 %v991
    %v1072 = vunpack.c.l.b16 %v992
    %v1073 = vunpack.c.l.b16 %v993
    %v1074 = vunpack.c.l.b16 %v994
    %v1075 = vunpack.c.l.b16 %v995
    %v1076 = vunpack.c.l.b16 %v996
    %v1077 = vunpack.c.l.b16 %v997
    %v1078 = vunpack.c.l.b16 %v998
    %v1079 = vunpack.c.l.b16 %v999
    %v1080 = vunpack.c.l.b16 %v1000
    %v1081 = vunpack.c.l.b16 %v1001
    %v1082 = vunpack.c.l.b16 %v1002
    %v1083 = vunpack.c.l.b16 %v1003
    %v1084 = vunpack.c.l.b16 %v1004
    %v1085 = vunpack.c.l.b16 %v1005
    %v1086 = vpack.c.b16 %v1071, %v1070
    %v1087 = vpack.c.b16 %v1073, %v1072
    %v1088 = vpack.c.b16 %v1075, %v1074
    %v1089 = vpack.c.b16 %v1077, %v1076
    %v1090 = vpack.c.b16 %v1079, %v1078
    %v1091 = vpack.c.b16 %v1081, %v1080
    %v1092 = vpack.c.b16 %v1083, %v1082
    %v1093 = vpack.c.b16 %v1085, %v1084
    %1102 = vmatprep.subr.bf16.mxu0 0
    %1103 = vmatpush1.bf16.msra.mxu0 %v1093
    %1104 = vmatprep.subr.bf16.mxu0 0
    %1105 = vmatpush1.bf16.msra.mxu0 %v1092
    %1106 = vmatprep.subr.bf16.mxu0 0
    %1107 = vmatpush1.bf16.msra.mxu0 %v1091
    %1108 = vmatprep.subr.bf16.mxu0 0
    %1109 = vmatpush1.bf16.msra.mxu0 %v1090
    %1110 = vmatprep.subr.bf16.mxu0 0
    %1111 = vmatpush1.bf16.msra.mxu0 %v1089
    %1112 = vmatprep.subr.bf16.mxu0 0
    %1113 = vmatpush1.bf16.msra.mxu0 %v1088
    %1114 = vmatprep.subr.bf16.mxu0 0
    %1115 = vmatpush1.bf16.msra.mxu0 %v1087
    %1116 = vmatprep.subr.bf16.mxu0 0
    %1117 = vmatpush1.bf16.msra.mxu0 %v1086
    %1118 = vmatprep.subr.bf16.mxu0 0
    %1119 = vmatpush2.bf16.msra.mxu0 0
    %1120 = vmatprep.subr.bf16.mxu0 0
    %1121 = vmatpush2.bf16.msra.mxu0 0
    %1122 = vmatprep.subr.bf16.mxu0 0
    %1123 = vmatpush2.bf16.msra.mxu0 0
    %1124 = vmatprep.subr.bf16.mxu0 0
    %1125 = vmatpush2.bf16.msra.mxu0 0
    %1126 = vmatprep.subr.bf16.mxu0 0
    %1127 = vmatpush2.bf16.msra.mxu0 0
    %1128 = vmatprep.subr.bf16.mxu0 0
    %1129 = vmatpush2.bf16.msra.mxu0 0
    %1130 = vmatprep.subr.bf16.mxu0 0
    %1131 = vmatpush2.bf16.msra.mxu0 0
    %1132 = vmatprep.subr.bf16.mxu0 0
    %1133 = vmatpush2.bf16.msra.mxu0 0
    %1134 = vmatprep.mubr.bf16.mxu0 0
    %1135 = vmatmul.mubr.bf16.gmra.mxu0 %v1038
    %v1136 = vpop.f32.mrf.mxu0
    %v1137 = vadd.f32 0.0, %v1136
    %v1138 = vpop.f32.mrf.mxu0
    %v1139 = vpop.f32.mrf.mxu0
    %v1140 = vadd.f32 0.0, %v1139
    %v1141 = vpop.f32.mrf.mxu0
    %1142 = vmatprep.mubr.bf16.mxu0 0
    %1143 = vmatmul.mubr.bf16.gmra.mxu0 %v1039
    %v1144 = vpop.f32.mrf.mxu0
    %v1145 = vadd.f32 0.0, %v1144
    %v1146 = vpop.f32.mrf.mxu0
    %v1147 = vpop.f32.mrf.mxu0
    %v1148 = vadd.f32 0.0, %v1147
    %v1149 = vpop.f32.mrf.mxu0
    %1150 = vmatprep.mubr.bf16.mxu0 0
    %1151 = vmatmul.mubr.bf16.gmra.mxu0 %v1040
    %v1152 = vpop.f32.mrf.mxu0
    %v1153 = vadd.f32 0.0, %v1152
    %v1154 = vpop.f32.mrf.mxu0
    %v1155 = vpop.f32.mrf.mxu0
    %v1156 = vadd.f32 0.0, %v1155
    %v1157 = vpop.f32.mrf.mxu0
    %1158 = vmatprep.mubr.bf16.mxu0 0
    %1159 = vmatmul.mubr.bf16.gmra.mxu0 %v1041
    %v1160 = vpop.f32.mrf.mxu0
    %v1161 = vadd.f32 0.0, %v1160
    %v1162 = vpop.f32.mrf.mxu0
    %v1163 = vpop.f32.mrf.mxu0
    %v1164 = vadd.f32 0.0, %v1163
    %v1165 = vpop.f32.mrf.mxu0
    %1166 = vmatprep.mubr.bf16.mxu0 0
    %1167 = vmatmul.mubr.bf16.gmra.mxu0 %v1042
    %v1168 = vpop.f32.mrf.mxu0
    %v1169 = vadd.f32 0.0, %v1168
    %v1170 = vpop.f32.mrf.mxu0
    %v1171 = vpop.f32.mrf.mxu0
    %v1172 = vadd.f32 0.0, %v1171
    %v1173 = vpop.f32.mrf.mxu0
    %1174 = vmatprep.mubr.bf16.mxu0 0
    %1175 = vmatmul.mubr.bf16.gmra.mxu0 %v1043
    %v1176 = vpop.f32.mrf.mxu0
    %v1177 = vadd.f32 0.0, %v1176
    %v1178 = vpop.f32.mrf.mxu0
    %v1179 = vpop.f32.mrf.mxu0
    %v1180 = vadd.f32 0.0, %v1179
    %v1181 = vpop.f32.mrf.mxu0
    %1182 = vmatprep.mubr.bf16.mxu0 0
    %1183 = vmatmul.mubr.bf16.gmra.mxu0 %v1044
    %v1184 = vpop.f32.mrf.mxu0
    %v1185 = vadd.f32 0.0, %v1184
    %v1186 = vpop.f32.mrf.mxu0
    %v1187 = vpop.f32.mrf.mxu0
    %v1188 = vadd.f32 0.0, %v1187
    %v1189 = vpop.f32.mrf.mxu0
    %1190 = vmatprep.mubr.bf16.mxu0 0
    %1191 = vmatmul.mubr.bf16.gmra.mxu0 %v1045
    %v1192 = vpop.f32.mrf.mxu0
    %v1193 = vadd.f32 0.0, %v1192
    %v1194 = vpop.f32.mrf.mxu0
    %v1195 = vpop.f32.mrf.mxu0
    %v1196 = vadd.f32 0.0, %v1195
    %v1197 = vpop.f32.mrf.mxu0
    %1198 = vdwg.mxu0
    %vm1199 = vcmask 64512
    %v1200 = vsel %vm1199, %v1137, -inf
    %1201 = vmax.xlane.f32.xlu0 %v1200
    %v1202 = vpop.xlane.xlu0 %1201
    %v1203 = vsel %vm1199, %v1140, -inf
    %1204 = vmax.xlane.f32.xlu0 %v1203
    %v1205 = vpop.xlane.xlu0 %1204
    %v1206 = vsel %vm1199, %v1145, -inf
    %1207 = vmax.xlane.f32.xlu0 %v1206
    %v1208 = vpop.xlane.xlu0 %1207
    %v1209 = vsel %vm1199, %v1148, -inf
    %1210 = vmax.xlane.f32.xlu0 %v1209
    %v1211 = vpop.xlane.xlu0 %1210
    %v1212 = vsel %vm1199, %v1153, -inf
    %1213 = vmax.xlane.f32.xlu0 %v1212
    %v1214 = vpop.xlane.xlu0 %1213
    %v1215 = vsel %vm1199, %v1156, -inf
    %1216 = vmax.xlane.f32.xlu0 %v1215
    %v1217 = vpop.xlane.xlu0 %1216
    %v1218 = vsel %vm1199, %v1161, -inf
    %1219 = vmax.xlane.f32.xlu0 %v1218
    %v1220 = vpop.xlane.xlu0 %1219
    %v1221 = vsel %vm1199, %v1164, -inf
    %1222 = vmax.xlane.f32.xlu0 %v1221
    %v1223 = vpop.xlane.xlu0 %1222
    %v1224 = vsel %vm1199, %v1169, -inf
    %1225 = vmax.xlane.f32.xlu0 %v1224
    %v1226 = vpop.xlane.xlu0 %1225
    %v1227 = vsel %vm1199, %v1172, -inf
    %1228 = vmax.xlane.f32.xlu0 %v1227
    %v1229 = vpop.xlane.xlu0 %1228
    %v1230 = vsel %vm1199, %v1177, -inf
    %1231 = vmax.xlane.f32.xlu0 %v1230
    %v1232 = vpop.xlane.xlu0 %1231
    %v1233 = vsel %vm1199, %v1180, -inf
    %1234 = vmax.xlane.f32.xlu0 %v1233
    %v1235 = vpop.xlane.xlu0 %1234
    %v1236 = vsel %vm1199, %v1185, -inf
    %1237 = vmax.xlane.f32.xlu0 %v1236
    %v1238 = vpop.xlane.xlu0 %1237
    %v1239 = vsel %vm1199, %v1188, -inf
    %1240 = vmax.xlane.f32.xlu0 %v1239
    %v1241 = vpop.xlane.xlu0 %1240
    %v1242 = vsel %vm1199, %v1193, -inf
    %1243 = vmax.xlane.f32.xlu0 %v1242
    %v1244 = vpop.xlane.xlu0 %1243
    %v1245 = vsel %vm1199, %v1196, -inf
    %1246 = vmax.xlane.f32.xlu0 %v1245
    %v1247 = vpop.xlane.xlu0 %1246
    %v1248 = vsub.f32 %v1137, %v1202
    %v1249 = vsub.f32 %v1140, %v1205
    %v1250 = vsub.f32 %v1145, %v1208
    %v1251 = vsub.f32 %v1148, %v1211
    %v1252 = vsub.f32 %v1153, %v1214
    %v1253 = vsub.f32 %v1156, %v1217
    %v1254 = vsub.f32 %v1161, %v1220
    %v1255 = vsub.f32 %v1164, %v1223
    %v1256 = vsub.f32 %v1169, %v1226
    %v1257 = vsub.f32 %v1172, %v1229
    %v1258 = vsub.f32 %v1177, %v1232
    %v1259 = vsub.f32 %v1180, %v1235
    %v1260 = vsub.f32 %v1185, %v1238
    %v1261 = vsub.f32 %v1188, %v1241
    %v1262 = vsub.f32 %v1193, %v1244
    %v1263 = vsub.f32 %v1196, %v1247
    %v1264 = vmul.f32 %v1248, 1.442695
    %v1265 = vpow.pop %v1264
    %v1266 = vmul.f32 %v1249, 1.442695
    %v1267 = vpow.pop %v1266
    %v1268 = vmul.f32 %v1250, 1.442695
    %v1269 = vpow.pop %v1268
    %v1270 = vmul.f32 %v1251, 1.442695
    %v1271 = vpow.pop %v1270
    %v1272 = vmul.f32 %v1252, 1.442695
    %v1273 = vpow.pop %v1272
    %v1274 = vmul.f32 %v1253, 1.442695
    %v1275 = vpow.pop %v1274
    %v1276 = vmul.f32 %v1254, 1.442695
    %v1277 = vpow.pop %v1276
    %v1278 = vmul.f32 %v1255, 1.442695
    %v1279 = vpow.pop %v1278
    %v1280 = vmul.f32 %v1256, 1.442695
    %v1281 = vpow.pop %v1280
    %v1282 = vmul.f32 %v1257, 1.442695
    %v1283 = vpow.pop %v1282
    %v1284 = vmul.f32 %v1258, 1.442695
    %v1285 = vpow.pop %v1284
    %v1286 = vmul.f32 %v1259, 1.442695
    %v1287 = vpow.pop %v1286
    %v1288 = vmul.f32 %v1260, 1.442695
    %v1289 = vpow.pop %v1288
    %v1290 = vmul.f32 %v1261, 1.442695
    %v1291 = vpow.pop %v1290
    %v1292 = vmul.f32 %v1262, 1.442695
    %v1293 = vpow.pop %v1292
    %v1294 = vmul.f32 %v1263, 1.442695
    %v1295 = vpow.pop %v1294
    %v1296 = vsel %vm1199, %v1265, 0.0
    %1297 = vadd.xlane.f32.xlu0 %v1296
    %v1298 = vpop.xlane.xlu0 %1297
    %v1299 = vsel %vm1199, %v1267, 0.0
    %1300 = vadd.xlane.f32.xlu0 %v1299
    %v1301 = vpop.xlane.xlu0 %1300
    %v1302 = vsel %vm1199, %v1269, 0.0
    %1303 = vadd.xlane.f32.xlu0 %v1302
    %v1304 = vpop.xlane.xlu0 %1303
    %v1305 = vsel %vm1199, %v1271, 0.0
    %1306 = vadd.xlane.f32.xlu0 %v1305
    %v1307 = vpop.xlane.xlu0 %1306
    %v1308 = vsel %vm1199, %v1273, 0.0
    %1309 = vadd.xlane.f32.xlu0 %v1308
    %v1310 = vpop.xlane.xlu0 %1309
    %v1311 = vsel %vm1199, %v1275, 0.0
    %1312 = vadd.xlane.f32.xlu0 %v1311
    %v1313 = vpop.xlane.xlu0 %1312
    %v1314 = vsel %vm1199, %v1277, 0.0
    %1315 = vadd.xlane.f32.xlu0 %v1314
    %v1316 = vpop.xlane.xlu0 %1315
    %v1317 = vsel %vm1199, %v1279, 0.0
    %1318 = vadd.xlane.f32.xlu0 %v1317
    %v1319 = vpop.xlane.xlu0 %1318
    %v1320 = vsel %vm1199, %v1281, 0.0
    %1321 = vadd.xlane.f32.xlu0 %v1320
    %v1322 = vpop.xlane.xlu0 %1321
    %v1323 = vsel %vm1199, %v1283, 0.0
    %1324 = vadd.xlane.f32.xlu0 %v1323
    %v1325 = vpop.xlane.xlu0 %1324
    %v1326 = vsel %vm1199, %v1285, 0.0
    %1327 = vadd.xlane.f32.xlu0 %v1326
    %v1328 = vpop.xlane.xlu0 %1327
    %v1329 = vsel %vm1199, %v1287, 0.0
    %1330 = vadd.xlane.f32.xlu0 %v1329
    %v1331 = vpop.xlane.xlu0 %1330
    %v1332 = vsel %vm1199, %v1289, 0.0
    %1333 = vadd.xlane.f32.xlu0 %v1332
    %v1334 = vpop.xlane.xlu0 %1333
    %v1335 = vsel %vm1199, %v1291, 0.0
    %1336 = vadd.xlane.f32.xlu0 %v1335
    %v1337 = vpop.xlane.xlu0 %1336
    %v1338 = vsel %vm1199, %v1293, 0.0
    %1339 = vadd.xlane.f32.xlu0 %v1338
    %v1340 = vpop.xlane.xlu0 %1339
    %v1341 = vsel %vm1199, %v1295, 0.0
    %1342 = vadd.xlane.f32.xlu0 %v1341
    %v1343 = vpop.xlane.xlu0 %1342
    %v1344 = vrcp.pop %v1298
    %v1345 = vmul.f32 %v1265, %v1344
    %v1346 = vrcp.pop %v1301
    %v1347 = vmul.f32 %v1267, %v1346
    %v1348 = vrcp.pop %v1304
    %v1349 = vmul.f32 %v1269, %v1348
    %v1350 = vrcp.pop %v1307
    %v1351 = vmul.f32 %v1271, %v1350
    %v1352 = vrcp.pop %v1310
    %v1353 = vmul.f32 %v1273, %v1352
    %v1354 = vrcp.pop %v1313
    %v1355 = vmul.f32 %v1275, %v1354
    %v1356 = vrcp.pop %v1316
    %v1357 = vmul.f32 %v1277, %v1356
    %v1358 = vrcp.pop %v1319
    %v1359 = vmul.f32 %v1279, %v1358
    %v1360 = vrcp.pop %v1322
    %v1361 = vmul.f32 %v1281, %v1360
    %v1362 = vrcp.pop %v1325
    %v1363 = vmul.f32 %v1283, %v1362
    %v1364 = vrcp.pop %v1328
    %v1365 = vmul.f32 %v1285, %v1364
    %v1366 = vrcp.pop %v1331
    %v1367 = vmul.f32 %v1287, %v1366
    %v1368 = vrcp.pop %v1334
    %v1369 = vmul.f32 %v1289, %v1368
    %v1370 = vrcp.pop %v1337
    %v1371 = vmul.f32 %v1291, %v1370
    %v1372 = vrcp.pop %v1340
    %v1373 = vmul.f32 %v1293, %v1372
    %v1374 = vrcp.pop %v1343
    %v1375 = vmul.f32 %v1295, %v1374
    %1377 = vset.pattern.permute.xlu0 0
    %1378 = vperm.xlu0 %1377, %v1345
    %v1379 = vpop.permute.xlu0 %1378
    %1382 = vset.pattern.permute.xlu0 0
    %1383 = vperm.xlu0 %1382, %v1347
    %v1384 = vpop.permute.xlu0 %1383
    %1387 = vset.pattern.permute.xlu0 0
    %1388 = vperm.xlu0 %1387, %v1349
    %v1389 = vpop.permute.xlu0 %1388
    %1392 = vset.pattern.permute.xlu0 0
    %1393 = vperm.xlu0 %1392, %v1351
    %v1394 = vpop.permute.xlu0 %1393
    %1397 = vset.pattern.permute.xlu0 0
    %1398 = vperm.xlu0 %1397, %v1353
    %v1399 = vpop.permute.xlu0 %1398
    %1402 = vset.pattern.permute.xlu0 0
    %1403 = vperm.xlu0 %1402, %v1355
    %v1404 = vpop.permute.xlu0 %1403
    %1407 = vset.pattern.permute.xlu0 0
    %1408 = vperm.xlu0 %1407, %v1357
    %v1409 = vpop.permute.xlu0 %1408
    %1412 = vset.pattern.permute.xlu0 0
    %1413 = vperm.xlu0 %1412, %v1359
    %v1414 = vpop.permute.xlu0 %1413
    %1417 = vset.pattern.permute.xlu0 0
    %1418 = vperm.xlu0 %1417, %v1361
    %v1419 = vpop.permute.xlu0 %1418
    %1422 = vset.pattern.permute.xlu0 0
    %1423 = vperm.xlu0 %1422, %v1363
    %v1424 = vpop.permute.xlu0 %1423
    %1427 = vset.pattern.permute.xlu0 0
    %1428 = vperm.xlu0 %1427, %v1365
    %v1429 = vpop.permute.xlu0 %1428
    %1432 = vset.pattern.permute.xlu0 0
    %1433 = vperm.xlu0 %1432, %v1367
    %v1434 = vpop.permute.xlu0 %1433
    %1437 = vset.pattern.permute.xlu0 0
    %1438 = vperm.xlu0 %1437, %v1369
    %v1439 = vpop.permute.xlu0 %1438
    %1442 = vset.pattern.permute.xlu0 0
    %1443 = vperm.xlu0 %1442, %v1371
    %v1444 = vpop.permute.xlu0 %1443
    %1447 = vset.pattern.permute.xlu0 0
    %1448 = vperm.xlu0 %1447, %v1373
    %v1449 = vpop.permute.xlu0 %1448
    %1452 = vset.pattern.permute.xlu0 0
    %1453 = vperm.xlu0 %1452, %v1375
    %v1454 = vpop.permute.xlu0 %1453
    %v1456 = vlaneseq
    %v1457 = vshrl.u32 %v1456, 7
    %v1458 = vsub.s32 0, %v1457
    %v1459 = vrot.slane %v958, %v1458
    %v1460 = vlaneseq
    %v1461 = vshrl.u32 %v1460, 7
    %v1462 = vsub.s32 0, %v1461
    %v1463 = vrot.slane %v959, %v1462
    %v1464 = vlaneseq
    %v1465 = vshrl.u32 %v1464, 7
    %v1466 = vsub.s32 0, %v1465
    %v1467 = vrot.slane %v960, %v1466
    %v1468 = vlaneseq
    %v1469 = vshrl.u32 %v1468, 7
    %v1470 = vsub.s32 0, %v1469
    %v1471 = vrot.slane %v961, %v1470
    %v1472 = vlaneseq
    %v1473 = vshrl.u32 %v1472, 7
    %v1474 = vsub.s32 0, %v1473
    %v1475 = vrot.slane %v962, %v1474
    %v1476 = vlaneseq
    %v1477 = vshrl.u32 %v1476, 7
    %v1478 = vsub.s32 0, %v1477
    %v1479 = vrot.slane %v963, %v1478
    %v1480 = vlaneseq
    %v1481 = vshrl.u32 %v1480, 7
    %v1482 = vsub.s32 0, %v1481
    %v1483 = vrot.slane %v964, %v1482
    %v1484 = vlaneseq
    %v1485 = vshrl.u32 %v1484, 7
    %v1486 = vsub.s32 0, %v1485
    %v1487 = vrot.slane %v965, %v1486
    %v1488 = vlaneseq
    %v1489 = vshrl.u32 %v1488, 7
    %v1490 = vsub.s32 0, %v1489
    %v1491 = vrot.slane %v966, %v1490
    %v1492 = vlaneseq
    %v1493 = vshrl.u32 %v1492, 7
    %v1494 = vsub.s32 0, %v1493
    %v1495 = vrot.slane %v967, %v1494
    %v1496 = vlaneseq
    %v1497 = vshrl.u32 %v1496, 7
    %v1498 = vsub.s32 0, %v1497
    %v1499 = vrot.slane %v968, %v1498
    %v1500 = vlaneseq
    %v1501 = vshrl.u32 %v1500, 7
    %v1502 = vsub.s32 0, %v1501
    %v1503 = vrot.slane %v969, %v1502
    %v1504 = vlaneseq
    %v1505 = vshrl.u32 %v1504, 7
    %v1506 = vsub.s32 0, %v1505
    %v1507 = vrot.slane %v970, %v1506
    %v1508 = vlaneseq
    %v1509 = vshrl.u32 %v1508, 7
    %v1510 = vsub.s32 0, %v1509
    %v1511 = vrot.slane %v971, %v1510
    %v1512 = vlaneseq
    %v1513 = vshrl.u32 %v1512, 7
    %v1514 = vsub.s32 0, %v1513
    %v1515 = vrot.slane %v972, %v1514
    %v1516 = vlaneseq
    %v1517 = vshrl.u32 %v1516, 7
    %v1518 = vsub.s32 0, %v1517
    %v1519 = vrot.slane %v973, %v1518
    %v1520 = vmul.f32 %v1379, %v1459
    %v1521 = vmul.f32 %v1384, %v1463
    %v1522 = vmul.f32 %v1389, %v1467
    %v1523 = vmul.f32 %v1394, %v1471
    %v1524 = vmul.f32 %v1399, %v1475
    %v1525 = vmul.f32 %v1404, %v1479
    %v1526 = vmul.f32 %v1409, %v1483
    %v1527 = vmul.f32 %v1414, %v1487
    %v1528 = vmul.f32 %v1419, %v1491
    %v1529 = vmul.f32 %v1424, %v1495
    %v1530 = vmul.f32 %v1429, %v1499
    %v1531 = vmul.f32 %v1434, %v1503
    %v1532 = vmul.f32 %v1439, %v1507
    %v1533 = vmul.f32 %v1444, %v1511
    %v1534 = vmul.f32 %v1449, %v1515
    %v1535 = vmul.f32 %v1454, %v1519
    %1536 = vset.pattern.permute.xlu0 1
    %1537 = vperm.xlu0 %1536, %v1345
    %v1538 = vpop.permute.xlu0 %1537
    %1540 = vset.pattern.permute.xlu0 1
    %1541 = vperm.xlu0 %1540, %v1347
    %v1542 = vpop.permute.xlu0 %1541
    %1544 = vset.pattern.permute.xlu0 1
    %1545 = vperm.xlu0 %1544, %v1349
    %v1546 = vpop.permute.xlu0 %1545
    %1548 = vset.pattern.permute.xlu0 1
    %1549 = vperm.xlu0 %1548, %v1351
    %v1550 = vpop.permute.xlu0 %1549
    %1552 = vset.pattern.permute.xlu0 1
    %1553 = vperm.xlu0 %1552, %v1353
    %v1554 = vpop.permute.xlu0 %1553
    %1556 = vset.pattern.permute.xlu0 1
    %1557 = vperm.xlu0 %1556, %v1355
    %v1558 = vpop.permute.xlu0 %1557
    %1560 = vset.pattern.permute.xlu0 1
    %1561 = vperm.xlu0 %1560, %v1357
    %v1562 = vpop.permute.xlu0 %1561
    %1564 = vset.pattern.permute.xlu0 1
    %1565 = vperm.xlu0 %1564, %v1359
    %v1566 = vpop.permute.xlu0 %1565
    %1568 = vset.pattern.permute.xlu0 1
    %1569 = vperm.xlu0 %1568, %v1361
    %v1570 = vpop.permute.xlu0 %1569
    %1572 = vset.pattern.permute.xlu0 1
    %1573 = vperm.xlu0 %1572, %v1363
    %v1574 = vpop.permute.xlu0 %1573
    %1576 = vset.pattern.permute.xlu0 1
    %1577 = vperm.xlu0 %1576, %v1365
    %v1578 = vpop.permute.xlu0 %1577
    %1580 = vset.pattern.permute.xlu0 1
    %1581 = vperm.xlu0 %1580, %v1367
    %v1582 = vpop.permute.xlu0 %1581
    %1584 = vset.pattern.permute.xlu0 1
    %1585 = vperm.xlu0 %1584, %v1369
    %v1586 = vpop.permute.xlu0 %1585
    %1588 = vset.pattern.permute.xlu0 1
    %1589 = vperm.xlu0 %1588, %v1371
    %v1590 = vpop.permute.xlu0 %1589
    %1592 = vset.pattern.permute.xlu0 1
    %1593 = vperm.xlu0 %1592, %v1373
    %v1594 = vpop.permute.xlu0 %1593
    %1596 = vset.pattern.permute.xlu0 1
    %1597 = vperm.xlu0 %1596, %v1375
    %v1598 = vpop.permute.xlu0 %1597
    %v1600 = vlaneseq
    %v1601 = vshrl.u32 %v1600, 7
    %v1602 = vsub.s32 1, %v1601
    %v1603 = vrot.slane %v958, %v1602
    %v1604 = vlaneseq
    %v1605 = vshrl.u32 %v1604, 7
    %v1606 = vsub.s32 1, %v1605
    %v1607 = vrot.slane %v959, %v1606
    %v1608 = vlaneseq
    %v1609 = vshrl.u32 %v1608, 7
    %v1610 = vsub.s32 1, %v1609
    %v1611 = vrot.slane %v960, %v1610
    %v1612 = vlaneseq
    %v1613 = vshrl.u32 %v1612, 7
    %v1614 = vsub.s32 1, %v1613
    %v1615 = vrot.slane %v961, %v1614
    %v1616 = vlaneseq
    %v1617 = vshrl.u32 %v1616, 7
    %v1618 = vsub.s32 1, %v1617
    %v1619 = vrot.slane %v962, %v1618
    %v1620 = vlaneseq
    %v1621 = vshrl.u32 %v1620, 7
    %v1622 = vsub.s32 1, %v1621
    %v1623 = vrot.slane %v963, %v1622
    %v1624 = vlaneseq
    %v1625 = vshrl.u32 %v1624, 7
    %v1626 = vsub.s32 1, %v1625
    %v1627 = vrot.slane %v964, %v1626
    %v1628 = vlaneseq
    %v1629 = vshrl.u32 %v1628, 7
    %v1630 = vsub.s32 1, %v1629
    %v1631 = vrot.slane %v965, %v1630
    %v1632 = vlaneseq
    %v1633 = vshrl.u32 %v1632, 7
    %v1634 = vsub.s32 1, %v1633
    %v1635 = vrot.slane %v966, %v1634
    %v1636 = vlaneseq
    %v1637 = vshrl.u32 %v1636, 7
    %v1638 = vsub.s32 1, %v1637
    %v1639 = vrot.slane %v967, %v1638
    %v1640 = vlaneseq
    %v1641 = vshrl.u32 %v1640, 7
    %v1642 = vsub.s32 1, %v1641
    %v1643 = vrot.slane %v968, %v1642
    %v1644 = vlaneseq
    %v1645 = vshrl.u32 %v1644, 7
    %v1646 = vsub.s32 1, %v1645
    %v1647 = vrot.slane %v969, %v1646
    %v1648 = vlaneseq
    %v1649 = vshrl.u32 %v1648, 7
    %v1650 = vsub.s32 1, %v1649
    %v1651 = vrot.slane %v970, %v1650
    %v1652 = vlaneseq
    %v1653 = vshrl.u32 %v1652, 7
    %v1654 = vsub.s32 1, %v1653
    %v1655 = vrot.slane %v971, %v1654
    %v1656 = vlaneseq
    %v1657 = vshrl.u32 %v1656, 7
    %v1658 = vsub.s32 1, %v1657
    %v1659 = vrot.slane %v972, %v1658
    %v1660 = vlaneseq
    %v1661 = vshrl.u32 %v1660, 7
    %v1662 = vsub.s32 1, %v1661
    %v1663 = vrot.slane %v973, %v1662
    %v1664 = vmul.f32 %v1538, %v1603
    %v1665 = vmul.f32 %v1542, %v1607
    %v1666 = vmul.f32 %v1546, %v1611
    %v1667 = vmul.f32 %v1550, %v1615
    %v1668 = vmul.f32 %v1554, %v1619
    %v1669 = vmul.f32 %v1558, %v1623
    %v1670 = vmul.f32 %v1562, %v1627
    %v1671 = vmul.f32 %v1566, %v1631
    %v1672 = vmul.f32 %v1570, %v1635
    %v1673 = vmul.f32 %v1574, %v1639
    %v1674 = vmul.f32 %v1578, %v1643
    %v1675 = vmul.f32 %v1582, %v1647
    %v1676 = vmul.f32 %v1586, %v1651
    %v1677 = vmul.f32 %v1590, %v1655
    %v1678 = vmul.f32 %v1594, %v1659
    %v1679 = vmul.f32 %v1598, %v1663
    %v1680 = vadd.f32 %v1520, %v1664
    %v1681 = vadd.f32 %v1521, %v1665
    %v1682 = vadd.f32 %v1522, %v1666
    %v1683 = vadd.f32 %v1523, %v1667
    %v1684 = vadd.f32 %v1524, %v1668
    %v1685 = vadd.f32 %v1525, %v1669
    %v1686 = vadd.f32 %v1526, %v1670
    %v1687 = vadd.f32 %v1527, %v1671
    %v1688 = vadd.f32 %v1528, %v1672
    %v1689 = vadd.f32 %v1529, %v1673
    %v1690 = vadd.f32 %v1530, %v1674
    %v1691 = vadd.f32 %v1531, %v1675
    %v1692 = vadd.f32 %v1532, %v1676
    %v1693 = vadd.f32 %v1533, %v1677
    %v1694 = vadd.f32 %v1534, %v1678
    %v1695 = vadd.f32 %v1535, %v1679
    %1696 = vset.pattern.permute.xlu0 2
    %1697 = vperm.xlu0 %1696, %v1345
    %v1698 = vpop.permute.xlu0 %1697
    %1700 = vset.pattern.permute.xlu0 2
    %1701 = vperm.xlu0 %1700, %v1347
    %v1702 = vpop.permute.xlu0 %1701
    %1704 = vset.pattern.permute.xlu0 2
    %1705 = vperm.xlu0 %1704, %v1349
    %v1706 = vpop.permute.xlu0 %1705
    %1708 = vset.pattern.permute.xlu0 2
    %1709 = vperm.xlu0 %1708, %v1351
    %v1710 = vpop.permute.xlu0 %1709
    %1712 = vset.pattern.permute.xlu0 2
    %1713 = vperm.xlu0 %1712, %v1353
    %v1714 = vpop.permute.xlu0 %1713
    %1716 = vset.pattern.permute.xlu0 2
    %1717 = vperm.xlu0 %1716, %v1355
    %v1718 = vpop.permute.xlu0 %1717
    %1720 = vset.pattern.permute.xlu0 2
    %1721 = vperm.xlu0 %1720, %v1357
    %v1722 = vpop.permute.xlu0 %1721
    %1724 = vset.pattern.permute.xlu0 2
    %1725 = vperm.xlu0 %1724, %v1359
    %v1726 = vpop.permute.xlu0 %1725
    %1728 = vset.pattern.permute.xlu0 2
    %1729 = vperm.xlu0 %1728, %v1361
    %v1730 = vpop.permute.xlu0 %1729
    %1732 = vset.pattern.permute.xlu0 2
    %1733 = vperm.xlu0 %1732, %v1363
    %v1734 = vpop.permute.xlu0 %1733
    %1736 = vset.pattern.permute.xlu0 2
    %1737 = vperm.xlu0 %1736, %v1365
    %v1738 = vpop.permute.xlu0 %1737
    %1740 = vset.pattern.permute.xlu0 2
    %1741 = vperm.xlu0 %1740, %v1367
    %v1742 = vpop.permute.xlu0 %1741
    %1744 = vset.pattern.permute.xlu0 2
    %1745 = vperm.xlu0 %1744, %v1369
    %v1746 = vpop.permute.xlu0 %1745
    %1748 = vset.pattern.permute.xlu0 2
    %1749 = vperm.xlu0 %1748, %v1371
    %v1750 = vpop.permute.xlu0 %1749
    %1752 = vset.pattern.permute.xlu0 2
    %1753 = vperm.xlu0 %1752, %v1373
    %v1754 = vpop.permute.xlu0 %1753
    %1756 = vset.pattern.permute.xlu0 2
    %1757 = vperm.xlu0 %1756, %v1375
    %v1758 = vpop.permute.xlu0 %1757
    %v1760 = vlaneseq
    %v1761 = vshrl.u32 %v1760, 7
    %v1762 = vsub.s32 2, %v1761
    %v1763 = vrot.slane %v958, %v1762
    %v1764 = vlaneseq
    %v1765 = vshrl.u32 %v1764, 7
    %v1766 = vsub.s32 2, %v1765
    %v1767 = vrot.slane %v959, %v1766
    %v1768 = vlaneseq
    %v1769 = vshrl.u32 %v1768, 7
    %v1770 = vsub.s32 2, %v1769
    %v1771 = vrot.slane %v960, %v1770
    %v1772 = vlaneseq
    %v1773 = vshrl.u32 %v1772, 7
    %v1774 = vsub.s32 2, %v1773
    %v1775 = vrot.slane %v961, %v1774
    %v1776 = vlaneseq
    %v1777 = vshrl.u32 %v1776, 7
    %v1778 = vsub.s32 2, %v1777
    %v1779 = vrot.slane %v962, %v1778
    %v1780 = vlaneseq
    %v1781 = vshrl.u32 %v1780, 7
    %v1782 = vsub.s32 2, %v1781
    %v1783 = vrot.slane %v963, %v1782
    %v1784 = vlaneseq
    %v1785 = vshrl.u32 %v1784, 7
    %v1786 = vsub.s32 2, %v1785
    %v1787 = vrot.slane %v964, %v1786
    %v1788 = vlaneseq
    %v1789 = vshrl.u32 %v1788, 7
    %v1790 = vsub.s32 2, %v1789
    %v1791 = vrot.slane %v965, %v1790
    %v1792 = vlaneseq
    %v1793 = vshrl.u32 %v1792, 7
    %v1794 = vsub.s32 2, %v1793
    %v1795 = vrot.slane %v966, %v1794
    %v1796 = vlaneseq
    %v1797 = vshrl.u32 %v1796, 7
    %v1798 = vsub.s32 2, %v1797
    %v1799 = vrot.slane %v967, %v1798
    %v1800 = vlaneseq
    %v1801 = vshrl.u32 %v1800, 7
    %v1802 = vsub.s32 2, %v1801
    %v1803 = vrot.slane %v968, %v1802
    %v1804 = vlaneseq
    %v1805 = vshrl.u32 %v1804, 7
    %v1806 = vsub.s32 2, %v1805
    %v1807 = vrot.slane %v969, %v1806
    %v1808 = vlaneseq
    %v1809 = vshrl.u32 %v1808, 7
    %v1810 = vsub.s32 2, %v1809
    %v1811 = vrot.slane %v970, %v1810
    %v1812 = vlaneseq
    %v1813 = vshrl.u32 %v1812, 7
    %v1814 = vsub.s32 2, %v1813
    %v1815 = vrot.slane %v971, %v1814
    %v1816 = vlaneseq
    %v1817 = vshrl.u32 %v1816, 7
    %v1818 = vsub.s32 2, %v1817
    %v1819 = vrot.slane %v972, %v1818
    %v1820 = vlaneseq
    %v1821 = vshrl.u32 %v1820, 7
    %v1822 = vsub.s32 2, %v1821
    %v1823 = vrot.slane %v973, %v1822
    %v1824 = vmul.f32 %v1698, %v1763
    %v1825 = vmul.f32 %v1702, %v1767
    %v1826 = vmul.f32 %v1706, %v1771
    %v1827 = vmul.f32 %v1710, %v1775
    %v1828 = vmul.f32 %v1714, %v1779
    %v1829 = vmul.f32 %v1718, %v1783
    %v1830 = vmul.f32 %v1722, %v1787
    %v1831 = vmul.f32 %v1726, %v1791
    %v1832 = vmul.f32 %v1730, %v1795
    %v1833 = vmul.f32 %v1734, %v1799
    %v1834 = vmul.f32 %v1738, %v1803
    %v1835 = vmul.f32 %v1742, %v1807
    %v1836 = vmul.f32 %v1746, %v1811
    %v1837 = vmul.f32 %v1750, %v1815
    %v1838 = vmul.f32 %v1754, %v1819
    %v1839 = vmul.f32 %v1758, %v1823
    %v1840 = vadd.f32 %v1680, %v1824
    %v1841 = vadd.f32 %v1681, %v1825
    %v1842 = vadd.f32 %v1682, %v1826
    %v1843 = vadd.f32 %v1683, %v1827
    %v1844 = vadd.f32 %v1684, %v1828
    %v1845 = vadd.f32 %v1685, %v1829
    %v1846 = vadd.f32 %v1686, %v1830
    %v1847 = vadd.f32 %v1687, %v1831
    %v1848 = vadd.f32 %v1688, %v1832
    %v1849 = vadd.f32 %v1689, %v1833
    %v1850 = vadd.f32 %v1690, %v1834
    %v1851 = vadd.f32 %v1691, %v1835
    %v1852 = vadd.f32 %v1692, %v1836
    %v1853 = vadd.f32 %v1693, %v1837
    %v1854 = vadd.f32 %v1694, %v1838
    %v1855 = vadd.f32 %v1695, %v1839
    %1856 = vset.pattern.permute.xlu0 3
    %1857 = vperm.xlu0 %1856, %v1345
    %v1858 = vpop.permute.xlu0 %1857
    %1860 = vset.pattern.permute.xlu0 3
    %1861 = vperm.xlu0 %1860, %v1347
    %v1862 = vpop.permute.xlu0 %1861
    %1864 = vset.pattern.permute.xlu0 3
    %1865 = vperm.xlu0 %1864, %v1349
    %v1866 = vpop.permute.xlu0 %1865
    %1868 = vset.pattern.permute.xlu0 3
    %1869 = vperm.xlu0 %1868, %v1351
    %v1870 = vpop.permute.xlu0 %1869
    %1872 = vset.pattern.permute.xlu0 3
    %1873 = vperm.xlu0 %1872, %v1353
    %v1874 = vpop.permute.xlu0 %1873
    %1876 = vset.pattern.permute.xlu0 3
    %1877 = vperm.xlu0 %1876, %v1355
    %v1878 = vpop.permute.xlu0 %1877
    %1880 = vset.pattern.permute.xlu0 3
    %1881 = vperm.xlu0 %1880, %v1357
    %v1882 = vpop.permute.xlu0 %1881
    %1884 = vset.pattern.permute.xlu0 3
    %1885 = vperm.xlu0 %1884, %v1359
    %v1886 = vpop.permute.xlu0 %1885
    %1888 = vset.pattern.permute.xlu0 3
    %1889 = vperm.xlu0 %1888, %v1361
    %v1890 = vpop.permute.xlu0 %1889
    %1892 = vset.pattern.permute.xlu0 3
    %1893 = vperm.xlu0 %1892, %v1363
    %v1894 = vpop.permute.xlu0 %1893
    %1896 = vset.pattern.permute.xlu0 3
    %1897 = vperm.xlu0 %1896, %v1365
    %v1898 = vpop.permute.xlu0 %1897
    %1900 = vset.pattern.permute.xlu0 3
    %1901 = vperm.xlu0 %1900, %v1367
    %v1902 = vpop.permute.xlu0 %1901
    %1904 = vset.pattern.permute.xlu0 3
    %1905 = vperm.xlu0 %1904, %v1369
    %v1906 = vpop.permute.xlu0 %1905
    %1908 = vset.pattern.permute.xlu0 3
    %1909 = vperm.xlu0 %1908, %v1371
    %v1910 = vpop.permute.xlu0 %1909
    %1912 = vset.pattern.permute.xlu0 3
    %1913 = vperm.xlu0 %1912, %v1373
    %v1914 = vpop.permute.xlu0 %1913
    %1916 = vset.pattern.permute.xlu0 3
    %1917 = vperm.xlu0 %1916, %v1375
    %v1918 = vpop.permute.xlu0 %1917
    %v1920 = vlaneseq
    %v1921 = vshrl.u32 %v1920, 7
    %v1922 = vsub.s32 3, %v1921
    %v1923 = vrot.slane %v958, %v1922
    %v1924 = vlaneseq
    %v1925 = vshrl.u32 %v1924, 7
    %v1926 = vsub.s32 3, %v1925
    %v1927 = vrot.slane %v959, %v1926
    %v1928 = vlaneseq
    %v1929 = vshrl.u32 %v1928, 7
    %v1930 = vsub.s32 3, %v1929
    %v1931 = vrot.slane %v960, %v1930
    %v1932 = vlaneseq
    %v1933 = vshrl.u32 %v1932, 7
    %v1934 = vsub.s32 3, %v1933
    %v1935 = vrot.slane %v961, %v1934
    %v1936 = vlaneseq
    %v1937 = vshrl.u32 %v1936, 7
    %v1938 = vsub.s32 3, %v1937
    %v1939 = vrot.slane %v962, %v1938
    %v1940 = vlaneseq
    %v1941 = vshrl.u32 %v1940, 7
    %v1942 = vsub.s32 3, %v1941
    %v1943 = vrot.slane %v963, %v1942
    %v1944 = vlaneseq
    %v1945 = vshrl.u32 %v1944, 7
    %v1946 = vsub.s32 3, %v1945
    %v1947 = vrot.slane %v964, %v1946
    %v1948 = vlaneseq
    %v1949 = vshrl.u32 %v1948, 7
    %v1950 = vsub.s32 3, %v1949
    %v1951 = vrot.slane %v965, %v1950
    %v1952 = vlaneseq
    %v1953 = vshrl.u32 %v1952, 7
    %v1954 = vsub.s32 3, %v1953
    %v1955 = vrot.slane %v966, %v1954
    %v1956 = vlaneseq
    %v1957 = vshrl.u32 %v1956, 7
    %v1958 = vsub.s32 3, %v1957
    %v1959 = vrot.slane %v967, %v1958
    %v1960 = vlaneseq
    %v1961 = vshrl.u32 %v1960, 7
    %v1962 = vsub.s32 3, %v1961
    %v1963 = vrot.slane %v968, %v1962
    %v1964 = vlaneseq
    %v1965 = vshrl.u32 %v1964, 7
    %v1966 = vsub.s32 3, %v1965
    %v1967 = vrot.slane %v969, %v1966
    %v1968 = vlaneseq
    %v1969 = vshrl.u32 %v1968, 7
    %v1970 = vsub.s32 3, %v1969
    %v1971 = vrot.slane %v970, %v1970
    %v1972 = vlaneseq
    %v1973 = vshrl.u32 %v1972, 7
    %v1974 = vsub.s32 3, %v1973
    %v1975 = vrot.slane %v971, %v1974
    %v1976 = vlaneseq
    %v1977 = vshrl.u32 %v1976, 7
    %v1978 = vsub.s32 3, %v1977
    %v1979 = vrot.slane %v972, %v1978
    %v1980 = vlaneseq
    %v1981 = vshrl.u32 %v1980, 7
    %v1982 = vsub.s32 3, %v1981
    %v1983 = vrot.slane %v973, %v1982
    %v1984 = vmul.f32 %v1858, %v1923
    %v1985 = vmul.f32 %v1862, %v1927
    %v1986 = vmul.f32 %v1866, %v1931
    %v1987 = vmul.f32 %v1870, %v1935
    %v1988 = vmul.f32 %v1874, %v1939
    %v1989 = vmul.f32 %v1878, %v1943
    %v1990 = vmul.f32 %v1882, %v1947
    %v1991 = vmul.f32 %v1886, %v1951
    %v1992 = vmul.f32 %v1890, %v1955
    %v1993 = vmul.f32 %v1894, %v1959
    %v1994 = vmul.f32 %v1898, %v1963
    %v1995 = vmul.f32 %v1902, %v1967
    %v1996 = vmul.f32 %v1906, %v1971
    %v1997 = vmul.f32 %v1910, %v1975
    %v1998 = vmul.f32 %v1914, %v1979
    %v1999 = vmul.f32 %v1918, %v1983
    %v2000 = vadd.f32 %v1840, %v1984
    %v2001 = vadd.f32 %v1841, %v1985
    %v2002 = vadd.f32 %v1842, %v1986
    %v2003 = vadd.f32 %v1843, %v1987
    %v2004 = vadd.f32 %v1844, %v1988
    %v2005 = vadd.f32 %v1845, %v1989
    %v2006 = vadd.f32 %v1846, %v1990
    %v2007 = vadd.f32 %v1847, %v1991
    %v2008 = vadd.f32 %v1848, %v1992
    %v2009 = vadd.f32 %v1849, %v1993
    %v2010 = vadd.f32 %v1850, %v1994
    %v2011 = vadd.f32 %v1851, %v1995
    %v2012 = vadd.f32 %v1852, %v1996
    %v2013 = vadd.f32 %v1853, %v1997
    %v2014 = vadd.f32 %v1854, %v1998
    %v2015 = vadd.f32 %v1855, %v1999
    %2016 = vset.pattern.permute.xlu0 4
    %2017 = vperm.xlu0 %2016, %v1345
    %v2018 = vpop.permute.xlu0 %2017
    %2020 = vset.pattern.permute.xlu0 4
    %2021 = vperm.xlu0 %2020, %v1347
    %v2022 = vpop.permute.xlu0 %2021
    %2024 = vset.pattern.permute.xlu0 4
    %2025 = vperm.xlu0 %2024, %v1349
    %v2026 = vpop.permute.xlu0 %2025
    %2028 = vset.pattern.permute.xlu0 4
    %2029 = vperm.xlu0 %2028, %v1351
    %v2030 = vpop.permute.xlu0 %2029
    %2032 = vset.pattern.permute.xlu0 4
    %2033 = vperm.xlu0 %2032, %v1353
    %v2034 = vpop.permute.xlu0 %2033
    %2036 = vset.pattern.permute.xlu0 4
    %2037 = vperm.xlu0 %2036, %v1355
    %v2038 = vpop.permute.xlu0 %2037
    %2040 = vset.pattern.permute.xlu0 4
    %2041 = vperm.xlu0 %2040, %v1357
    %v2042 = vpop.permute.xlu0 %2041
    %2044 = vset.pattern.permute.xlu0 4
    %2045 = vperm.xlu0 %2044, %v1359
    %v2046 = vpop.permute.xlu0 %2045
    %2048 = vset.pattern.permute.xlu0 4
    %2049 = vperm.xlu0 %2048, %v1361
    %v2050 = vpop.permute.xlu0 %2049
    %2052 = vset.pattern.permute.xlu0 4
    %2053 = vperm.xlu0 %2052, %v1363
    %v2054 = vpop.permute.xlu0 %2053
    %2056 = vset.pattern.permute.xlu0 4
    %2057 = vperm.xlu0 %2056, %v1365
    %v2058 = vpop.permute.xlu0 %2057
    %2060 = vset.pattern.permute.xlu0 4
    %2061 = vperm.xlu0 %2060, %v1367
    %v2062 = vpop.permute.xlu0 %2061
    %2064 = vset.pattern.permute.xlu0 4
    %2065 = vperm.xlu0 %2064, %v1369
    %v2066 = vpop.permute.xlu0 %2065
    %2068 = vset.pattern.permute.xlu0 4
    %2069 = vperm.xlu0 %2068, %v1371
    %v2070 = vpop.permute.xlu0 %2069
    %2072 = vset.pattern.permute.xlu0 4
    %2073 = vperm.xlu0 %2072, %v1373
    %v2074 = vpop.permute.xlu0 %2073
    %2076 = vset.pattern.permute.xlu0 4
    %2077 = vperm.xlu0 %2076, %v1375
    %v2078 = vpop.permute.xlu0 %2077
    %v2080 = vlaneseq
    %v2081 = vshrl.u32 %v2080, 7
    %v2082 = vsub.s32 4, %v2081
    %v2083 = vrot.slane %v958, %v2082
    %v2084 = vlaneseq
    %v2085 = vshrl.u32 %v2084, 7
    %v2086 = vsub.s32 4, %v2085
    %v2087 = vrot.slane %v959, %v2086
    %v2088 = vlaneseq
    %v2089 = vshrl.u32 %v2088, 7
    %v2090 = vsub.s32 4, %v2089
    %v2091 = vrot.slane %v960, %v2090
    %v2092 = vlaneseq
    %v2093 = vshrl.u32 %v2092, 7
    %v2094 = vsub.s32 4, %v2093
    %v2095 = vrot.slane %v961, %v2094
    %v2096 = vlaneseq
    %v2097 = vshrl.u32 %v2096, 7
    %v2098 = vsub.s32 4, %v2097
    %v2099 = vrot.slane %v962, %v2098
    %v2100 = vlaneseq
    %v2101 = vshrl.u32 %v2100, 7
    %v2102 = vsub.s32 4, %v2101
    %v2103 = vrot.slane %v963, %v2102
    %v2104 = vlaneseq
    %v2105 = vshrl.u32 %v2104, 7
    %v2106 = vsub.s32 4, %v2105
    %v2107 = vrot.slane %v964, %v2106
    %v2108 = vlaneseq
    %v2109 = vshrl.u32 %v2108, 7
    %v2110 = vsub.s32 4, %v2109
    %v2111 = vrot.slane %v965, %v2110
    %v2112 = vlaneseq
    %v2113 = vshrl.u32 %v2112, 7
    %v2114 = vsub.s32 4, %v2113
    %v2115 = vrot.slane %v966, %v2114
    %v2116 = vlaneseq
    %v2117 = vshrl.u32 %v2116, 7
    %v2118 = vsub.s32 4, %v2117
    %v2119 = vrot.slane %v967, %v2118
    %v2120 = vlaneseq
    %v2121 = vshrl.u32 %v2120, 7
    %v2122 = vsub.s32 4, %v2121
    %v2123 = vrot.slane %v968, %v2122
    %v2124 = vlaneseq
    %v2125 = vshrl.u32 %v2124, 7
    %v2126 = vsub.s32 4, %v2125
    %v2127 = vrot.slane %v969, %v2126
    %v2128 = vlaneseq
    %v2129 = vshrl.u32 %v2128, 7
    %v2130 = vsub.s32 4, %v2129
    %v2131 = vrot.slane %v970, %v2130
    %v2132 = vlaneseq
    %v2133 = vshrl.u32 %v2132, 7
    %v2134 = vsub.s32 4, %v2133
    %v2135 = vrot.slane %v971, %v2134
    %v2136 = vlaneseq
    %v2137 = vshrl.u32 %v2136, 7
    %v2138 = vsub.s32 4, %v2137
    %v2139 = vrot.slane %v972, %v2138
    %v2140 = vlaneseq
    %v2141 = vshrl.u32 %v2140, 7
    %v2142 = vsub.s32 4, %v2141
    %v2143 = vrot.slane %v973, %v2142
    %v2144 = vmul.f32 %v2018, %v2083
    %v2145 = vmul.f32 %v2022, %v2087
    %v2146 = vmul.f32 %v2026, %v2091
    %v2147 = vmul.f32 %v2030, %v2095
    %v2148 = vmul.f32 %v2034, %v2099
    %v2149 = vmul.f32 %v2038, %v2103
    %v2150 = vmul.f32 %v2042, %v2107
    %v2151 = vmul.f32 %v2046, %v2111
    %v2152 = vmul.f32 %v2050, %v2115
    %v2153 = vmul.f32 %v2054, %v2119
    %v2154 = vmul.f32 %v2058, %v2123
    %v2155 = vmul.f32 %v2062, %v2127
    %v2156 = vmul.f32 %v2066, %v2131
    %v2157 = vmul.f32 %v2070, %v2135
    %v2158 = vmul.f32 %v2074, %v2139
    %v2159 = vmul.f32 %v2078, %v2143
    %v2160 = vadd.f32 %v2000, %v2144
    %v2161 = vadd.f32 %v2001, %v2145
    %v2162 = vadd.f32 %v2002, %v2146
    %v2163 = vadd.f32 %v2003, %v2147
    %v2164 = vadd.f32 %v2004, %v2148
    %v2165 = vadd.f32 %v2005, %v2149
    %v2166 = vadd.f32 %v2006, %v2150
    %v2167 = vadd.f32 %v2007, %v2151
    %v2168 = vadd.f32 %v2008, %v2152
    %v2169 = vadd.f32 %v2009, %v2153
    %v2170 = vadd.f32 %v2010, %v2154
    %v2171 = vadd.f32 %v2011, %v2155
    %v2172 = vadd.f32 %v2012, %v2156
    %v2173 = vadd.f32 %v2013, %v2157
    %v2174 = vadd.f32 %v2014, %v2158
    %v2175 = vadd.f32 %v2015, %v2159
    %2176 = vset.pattern.permute.xlu0 5
    %2177 = vperm.xlu0 %2176, %v1345
    %v2178 = vpop.permute.xlu0 %2177
    %2180 = vset.pattern.permute.xlu0 5
    %2181 = vperm.xlu0 %2180, %v1347
    %v2182 = vpop.permute.xlu0 %2181
    %2184 = vset.pattern.permute.xlu0 5
    %2185 = vperm.xlu0 %2184, %v1349
    %v2186 = vpop.permute.xlu0 %2185
    %2188 = vset.pattern.permute.xlu0 5
    %2189 = vperm.xlu0 %2188, %v1351
    %v2190 = vpop.permute.xlu0 %2189
    %2192 = vset.pattern.permute.xlu0 5
    %2193 = vperm.xlu0 %2192, %v1353
    %v2194 = vpop.permute.xlu0 %2193
    %2196 = vset.pattern.permute.xlu0 5
    %2197 = vperm.xlu0 %2196, %v1355
    %v2198 = vpop.permute.xlu0 %2197
    %2200 = vset.pattern.permute.xlu0 5
    %2201 = vperm.xlu0 %2200, %v1357
    %v2202 = vpop.permute.xlu0 %2201
    %2204 = vset.pattern.permute.xlu0 5
    %2205 = vperm.xlu0 %2204, %v1359
    %v2206 = vpop.permute.xlu0 %2205
    %2208 = vset.pattern.permute.xlu0 5
    %2209 = vperm.xlu0 %2208, %v1361
    %v2210 = vpop.permute.xlu0 %2209
    %2212 = vset.pattern.permute.xlu0 5
    %2213 = vperm.xlu0 %2212, %v1363
    %v2214 = vpop.permute.xlu0 %2213
    %2216 = vset.pattern.permute.xlu0 5
    %2217 = vperm.xlu0 %2216, %v1365
    %v2218 = vpop.permute.xlu0 %2217
    %2220 = vset.pattern.permute.xlu0 5
    %2221 = vperm.xlu0 %2220, %v1367
    %v2222 = vpop.permute.xlu0 %2221
    %2224 = vset.pattern.permute.xlu0 5
    %2225 = vperm.xlu0 %2224, %v1369
    %v2226 = vpop.permute.xlu0 %2225
    %2228 = vset.pattern.permute.xlu0 5
    %2229 = vperm.xlu0 %2228, %v1371
    %v2230 = vpop.permute.xlu0 %2229
    %2232 = vset.pattern.permute.xlu0 5
    %2233 = vperm.xlu0 %2232, %v1373
    %v2234 = vpop.permute.xlu0 %2233
    %2236 = vset.pattern.permute.xlu0 5
    %2237 = vperm.xlu0 %2236, %v1375
    %v2238 = vpop.permute.xlu0 %2237
    %v2240 = vlaneseq
    %v2241 = vshrl.u32 %v2240, 7
    %v2242 = vsub.s32 5, %v2241
    %v2243 = vrot.slane %v958, %v2242
    %v2244 = vlaneseq
    %v2245 = vshrl.u32 %v2244, 7
    %v2246 = vsub.s32 5, %v2245
    %v2247 = vrot.slane %v959, %v2246
    %v2248 = vlaneseq
    %v2249 = vshrl.u32 %v2248, 7
    %v2250 = vsub.s32 5, %v2249
    %v2251 = vrot.slane %v960, %v2250
    %v2252 = vlaneseq
    %v2253 = vshrl.u32 %v2252, 7
    %v2254 = vsub.s32 5, %v2253
    %v2255 = vrot.slane %v961, %v2254
    %v2256 = vlaneseq
    %v2257 = vshrl.u32 %v2256, 7
    %v2258 = vsub.s32 5, %v2257
    %v2259 = vrot.slane %v962, %v2258
    %v2260 = vlaneseq
    %v2261 = vshrl.u32 %v2260, 7
    %v2262 = vsub.s32 5, %v2261
    %v2263 = vrot.slane %v963, %v2262
    %v2264 = vlaneseq
    %v2265 = vshrl.u32 %v2264, 7
    %v2266 = vsub.s32 5, %v2265
    %v2267 = vrot.slane %v964, %v2266
    %v2268 = vlaneseq
    %v2269 = vshrl.u32 %v2268, 7
    %v2270 = vsub.s32 5, %v2269
    %v2271 = vrot.slane %v965, %v2270
    %v2272 = vlaneseq
    %v2273 = vshrl.u32 %v2272, 7
    %v2274 = vsub.s32 5, %v2273
    %v2275 = vrot.slane %v966, %v2274
    %v2276 = vlaneseq
    %v2277 = vshrl.u32 %v2276, 7
    %v2278 = vsub.s32 5, %v2277
    %v2279 = vrot.slane %v967, %v2278
    %v2280 = vlaneseq
    %v2281 = vshrl.u32 %v2280, 7
    %v2282 = vsub.s32 5, %v2281
    %v2283 = vrot.slane %v968, %v2282
    %v2284 = vlaneseq
    %v2285 = vshrl.u32 %v2284, 7
    %v2286 = vsub.s32 5, %v2285
    %v2287 = vrot.slane %v969, %v2286
    %v2288 = vlaneseq
    %v2289 = vshrl.u32 %v2288, 7
    %v2290 = vsub.s32 5, %v2289
    %v2291 = vrot.slane %v970, %v2290
    %v2292 = vlaneseq
    %v2293 = vshrl.u32 %v2292, 7
    %v2294 = vsub.s32 5, %v2293
    %v2295 = vrot.slane %v971, %v2294
    %v2296 = vlaneseq
    %v2297 = vshrl.u32 %v2296, 7
    %v2298 = vsub.s32 5, %v2297
    %v2299 = vrot.slane %v972, %v2298
    %v2300 = vlaneseq
    %v2301 = vshrl.u32 %v2300, 7
    %v2302 = vsub.s32 5, %v2301
    %v2303 = vrot.slane %v973, %v2302
    %v2304 = vmul.f32 %v2178, %v2243
    %v2305 = vmul.f32 %v2182, %v2247
    %v2306 = vmul.f32 %v2186, %v2251
    %v2307 = vmul.f32 %v2190, %v2255
    %v2308 = vmul.f32 %v2194, %v2259
    %v2309 = vmul.f32 %v2198, %v2263
    %v2310 = vmul.f32 %v2202, %v2267
    %v2311 = vmul.f32 %v2206, %v2271
    %v2312 = vmul.f32 %v2210, %v2275
    %v2313 = vmul.f32 %v2214, %v2279
    %v2314 = vmul.f32 %v2218, %v2283
    %v2315 = vmul.f32 %v2222, %v2287
    %v2316 = vmul.f32 %v2226, %v2291
    %v2317 = vmul.f32 %v2230, %v2295
    %v2318 = vmul.f32 %v2234, %v2299
    %v2319 = vmul.f32 %v2238, %v2303
    %v2320 = vadd.f32 %v2160, %v2304
    %v2321 = vadd.f32 %v2161, %v2305
    %v2322 = vadd.f32 %v2162, %v2306
    %v2323 = vadd.f32 %v2163, %v2307
    %v2324 = vadd.f32 %v2164, %v2308
    %v2325 = vadd.f32 %v2165, %v2309
    %v2326 = vadd.f32 %v2166, %v2310
    %v2327 = vadd.f32 %v2167, %v2311
    %v2328 = vadd.f32 %v2168, %v2312
    %v2329 = vadd.f32 %v2169, %v2313
    %v2330 = vadd.f32 %v2170, %v2314
    %v2331 = vadd.f32 %v2171, %v2315
    %v2332 = vadd.f32 %v2172, %v2316
    %v2333 = vadd.f32 %v2173, %v2317
    %v2334 = vadd.f32 %v2174, %v2318
    %v2335 = vadd.f32 %v2175, %v2319
    %2336 = vset.pattern.permute.xlu0 6
    %2337 = vperm.xlu0 %2336, %v1345
    %v2338 = vpop.permute.xlu0 %2337
    %2340 = vset.pattern.permute.xlu0 6
    %2341 = vperm.xlu0 %2340, %v1347
    %v2342 = vpop.permute.xlu0 %2341
    %2344 = vset.pattern.permute.xlu0 6
    %2345 = vperm.xlu0 %2344, %v1349
    %v2346 = vpop.permute.xlu0 %2345
    %2348 = vset.pattern.permute.xlu0 6
    %2349 = vperm.xlu0 %2348, %v1351
    %v2350 = vpop.permute.xlu0 %2349
    %2352 = vset.pattern.permute.xlu0 6
    %2353 = vperm.xlu0 %2352, %v1353
    %v2354 = vpop.permute.xlu0 %2353
    %2356 = vset.pattern.permute.xlu0 6
    %2357 = vperm.xlu0 %2356, %v1355
    %v2358 = vpop.permute.xlu0 %2357
    %2360 = vset.pattern.permute.xlu0 6
    %2361 = vperm.xlu0 %2360, %v1357
    %v2362 = vpop.permute.xlu0 %2361
    %2364 = vset.pattern.permute.xlu0 6
    %2365 = vperm.xlu0 %2364, %v1359
    %v2366 = vpop.permute.xlu0 %2365
    %2368 = vset.pattern.permute.xlu0 6
    %2369 = vperm.xlu0 %2368, %v1361
    %v2370 = vpop.permute.xlu0 %2369
    %2372 = vset.pattern.permute.xlu0 6
    %2373 = vperm.xlu0 %2372, %v1363
    %v2374 = vpop.permute.xlu0 %2373
    %2376 = vset.pattern.permute.xlu0 6
    %2377 = vperm.xlu0 %2376, %v1365
    %v2378 = vpop.permute.xlu0 %2377
    %2380 = vset.pattern.permute.xlu0 6
    %2381 = vperm.xlu0 %2380, %v1367
    %v2382 = vpop.permute.xlu0 %2381
    %2384 = vset.pattern.permute.xlu0 6
    %2385 = vperm.xlu0 %2384, %v1369
    %v2386 = vpop.permute.xlu0 %2385
    %2388 = vset.pattern.permute.xlu0 6
    %2389 = vperm.xlu0 %2388, %v1371
    %v2390 = vpop.permute.xlu0 %2389
    %2392 = vset.pattern.permute.xlu0 6
    %2393 = vperm.xlu0 %2392, %v1373
    %v2394 = vpop.permute.xlu0 %2393
    %2396 = vset.pattern.permute.xlu0 6
    %2397 = vperm.xlu0 %2396, %v1375
    %v2398 = vpop.permute.xlu0 %2397
    %v2400 = vlaneseq
    %v2401 = vshrl.u32 %v2400, 7
    %v2402 = vsub.s32 6, %v2401
    %v2403 = vrot.slane %v958, %v2402
    %v2404 = vlaneseq
    %v2405 = vshrl.u32 %v2404, 7
    %v2406 = vsub.s32 6, %v2405
    %v2407 = vrot.slane %v959, %v2406
    %v2408 = vlaneseq
    %v2409 = vshrl.u32 %v2408, 7
    %v2410 = vsub.s32 6, %v2409
    %v2411 = vrot.slane %v960, %v2410
    %v2412 = vlaneseq
    %v2413 = vshrl.u32 %v2412, 7
    %v2414 = vsub.s32 6, %v2413
    %v2415 = vrot.slane %v961, %v2414
    %v2416 = vlaneseq
    %v2417 = vshrl.u32 %v2416, 7
    %v2418 = vsub.s32 6, %v2417
    %v2419 = vrot.slane %v962, %v2418
    %v2420 = vlaneseq
    %v2421 = vshrl.u32 %v2420, 7
    %v2422 = vsub.s32 6, %v2421
    %v2423 = vrot.slane %v963, %v2422
    %v2424 = vlaneseq
    %v2425 = vshrl.u32 %v2424, 7
    %v2426 = vsub.s32 6, %v2425
    %v2427 = vrot.slane %v964, %v2426
    %v2428 = vlaneseq
    %v2429 = vshrl.u32 %v2428, 7
    %v2430 = vsub.s32 6, %v2429
    %v2431 = vrot.slane %v965, %v2430
    %v2432 = vlaneseq
    %v2433 = vshrl.u32 %v2432, 7
    %v2434 = vsub.s32 6, %v2433
    %v2435 = vrot.slane %v966, %v2434
    %v2436 = vlaneseq
    %v2437 = vshrl.u32 %v2436, 7
    %v2438 = vsub.s32 6, %v2437
    %v2439 = vrot.slane %v967, %v2438
    %v2440 = vlaneseq
    %v2441 = vshrl.u32 %v2440, 7
    %v2442 = vsub.s32 6, %v2441
    %v2443 = vrot.slane %v968, %v2442
    %v2444 = vlaneseq
    %v2445 = vshrl.u32 %v2444, 7
    %v2446 = vsub.s32 6, %v2445
    %v2447 = vrot.slane %v969, %v2446
    %v2448 = vlaneseq
    %v2449 = vshrl.u32 %v2448, 7
    %v2450 = vsub.s32 6, %v2449
    %v2451 = vrot.slane %v970, %v2450
    %v2452 = vlaneseq
    %v2453 = vshrl.u32 %v2452, 7
    %v2454 = vsub.s32 6, %v2453
    %v2455 = vrot.slane %v971, %v2454
    %v2456 = vlaneseq
    %v2457 = vshrl.u32 %v2456, 7
    %v2458 = vsub.s32 6, %v2457
    %v2459 = vrot.slane %v972, %v2458
    %v2460 = vlaneseq
    %v2461 = vshrl.u32 %v2460, 7
    %v2462 = vsub.s32 6, %v2461
    %v2463 = vrot.slane %v973, %v2462
    %v2464 = vmul.f32 %v2338, %v2403
    %v2465 = vmul.f32 %v2342, %v2407
    %v2466 = vmul.f32 %v2346, %v2411
    %v2467 = vmul.f32 %v2350, %v2415
    %v2468 = vmul.f32 %v2354, %v2419
    %v2469 = vmul.f32 %v2358, %v2423
    %v2470 = vmul.f32 %v2362, %v2427
    %v2471 = vmul.f32 %v2366, %v2431
    %v2472 = vmul.f32 %v2370, %v2435
    %v2473 = vmul.f32 %v2374, %v2439
    %v2474 = vmul.f32 %v2378, %v2443
    %v2475 = vmul.f32 %v2382, %v2447
    %v2476 = vmul.f32 %v2386, %v2451
    %v2477 = vmul.f32 %v2390, %v2455
    %v2478 = vmul.f32 %v2394, %v2459
    %v2479 = vmul.f32 %v2398, %v2463
    %v2480 = vadd.f32 %v2320, %v2464
    %v2481 = vadd.f32 %v2321, %v2465
    %v2482 = vadd.f32 %v2322, %v2466
    %v2483 = vadd.f32 %v2323, %v2467
    %v2484 = vadd.f32 %v2324, %v2468
    %v2485 = vadd.f32 %v2325, %v2469
    %v2486 = vadd.f32 %v2326, %v2470
    %v2487 = vadd.f32 %v2327, %v2471
    %v2488 = vadd.f32 %v2328, %v2472
    %v2489 = vadd.f32 %v2329, %v2473
    %v2490 = vadd.f32 %v2330, %v2474
    %v2491 = vadd.f32 %v2331, %v2475
    %v2492 = vadd.f32 %v2332, %v2476
    %v2493 = vadd.f32 %v2333, %v2477
    %v2494 = vadd.f32 %v2334, %v2478
    %v2495 = vadd.f32 %v2335, %v2479
    %2496 = vset.pattern.permute.xlu0 7
    %2497 = vperm.xlu0 %2496, %v1345
    %v2498 = vpop.permute.xlu0 %2497
    %2500 = vset.pattern.permute.xlu0 7
    %2501 = vperm.xlu0 %2500, %v1347
    %v2502 = vpop.permute.xlu0 %2501
    %2504 = vset.pattern.permute.xlu0 7
    %2505 = vperm.xlu0 %2504, %v1349
    %v2506 = vpop.permute.xlu0 %2505
    %2508 = vset.pattern.permute.xlu0 7
    %2509 = vperm.xlu0 %2508, %v1351
    %v2510 = vpop.permute.xlu0 %2509
    %2512 = vset.pattern.permute.xlu0 7
    %2513 = vperm.xlu0 %2512, %v1353
    %v2514 = vpop.permute.xlu0 %2513
    %2516 = vset.pattern.permute.xlu0 7
    %2517 = vperm.xlu0 %2516, %v1355
    %v2518 = vpop.permute.xlu0 %2517
    %2520 = vset.pattern.permute.xlu0 7
    %2521 = vperm.xlu0 %2520, %v1357
    %v2522 = vpop.permute.xlu0 %2521
    %2524 = vset.pattern.permute.xlu0 7
    %2525 = vperm.xlu0 %2524, %v1359
    %v2526 = vpop.permute.xlu0 %2525
    %2528 = vset.pattern.permute.xlu0 7
    %2529 = vperm.xlu0 %2528, %v1361
    %v2530 = vpop.permute.xlu0 %2529
    %2532 = vset.pattern.permute.xlu0 7
    %2533 = vperm.xlu0 %2532, %v1363
    %v2534 = vpop.permute.xlu0 %2533
    %2536 = vset.pattern.permute.xlu0 7
    %2537 = vperm.xlu0 %2536, %v1365
    %v2538 = vpop.permute.xlu0 %2537
    %2540 = vset.pattern.permute.xlu0 7
    %2541 = vperm.xlu0 %2540, %v1367
    %v2542 = vpop.permute.xlu0 %2541
    %2544 = vset.pattern.permute.xlu0 7
    %2545 = vperm.xlu0 %2544, %v1369
    %v2546 = vpop.permute.xlu0 %2545
    %2548 = vset.pattern.permute.xlu0 7
    %2549 = vperm.xlu0 %2548, %v1371
    %v2550 = vpop.permute.xlu0 %2549
    %2552 = vset.pattern.permute.xlu0 7
    %2553 = vperm.xlu0 %2552, %v1373
    %v2554 = vpop.permute.xlu0 %2553
    %2556 = vset.pattern.permute.xlu0 7
    %2557 = vperm.xlu0 %2556, %v1375
    %v2558 = vpop.permute.xlu0 %2557
    %v2560 = vlaneseq
    %v2561 = vshrl.u32 %v2560, 7
    %v2562 = vsub.s32 7, %v2561
    %v2563 = vrot.slane %v958, %v2562
    %v2564 = vlaneseq
    %v2565 = vshrl.u32 %v2564, 7
    %v2566 = vsub.s32 7, %v2565
    %v2567 = vrot.slane %v959, %v2566
    %v2568 = vlaneseq
    %v2569 = vshrl.u32 %v2568, 7
    %v2570 = vsub.s32 7, %v2569
    %v2571 = vrot.slane %v960, %v2570
    %v2572 = vlaneseq
    %v2573 = vshrl.u32 %v2572, 7
    %v2574 = vsub.s32 7, %v2573
    %v2575 = vrot.slane %v961, %v2574
    %v2576 = vlaneseq
    %v2577 = vshrl.u32 %v2576, 7
    %v2578 = vsub.s32 7, %v2577
    %v2579 = vrot.slane %v962, %v2578
    %v2580 = vlaneseq
    %v2581 = vshrl.u32 %v2580, 7
    %v2582 = vsub.s32 7, %v2581
    %v2583 = vrot.slane %v963, %v2582
    %v2584 = vlaneseq
    %v2585 = vshrl.u32 %v2584, 7
    %v2586 = vsub.s32 7, %v2585
    %v2587 = vrot.slane %v964, %v2586
    %v2588 = vlaneseq
    %v2589 = vshrl.u32 %v2588, 7
    %v2590 = vsub.s32 7, %v2589
    %v2591 = vrot.slane %v965, %v2590
    %v2592 = vlaneseq
    %v2593 = vshrl.u32 %v2592, 7
    %v2594 = vsub.s32 7, %v2593
    %v2595 = vrot.slane %v966, %v2594
    %v2596 = vlaneseq
    %v2597 = vshrl.u32 %v2596, 7
    %v2598 = vsub.s32 7, %v2597
    %v2599 = vrot.slane %v967, %v2598
    %v2600 = vlaneseq
    %v2601 = vshrl.u32 %v2600, 7
    %v2602 = vsub.s32 7, %v2601
    %v2603 = vrot.slane %v968, %v2602
    %v2604 = vlaneseq
    %v2605 = vshrl.u32 %v2604, 7
    %v2606 = vsub.s32 7, %v2605
    %v2607 = vrot.slane %v969, %v2606
    %v2608 = vlaneseq
    %v2609 = vshrl.u32 %v2608, 7
    %v2610 = vsub.s32 7, %v2609
    %v2611 = vrot.slane %v970, %v2610
    %v2612 = vlaneseq
    %v2613 = vshrl.u32 %v2612, 7
    %v2614 = vsub.s32 7, %v2613
    %v2615 = vrot.slane %v971, %v2614
    %v2616 = vlaneseq
    %v2617 = vshrl.u32 %v2616, 7
    %v2618 = vsub.s32 7, %v2617
    %v2619 = vrot.slane %v972, %v2618
    %v2620 = vlaneseq
    %v2621 = vshrl.u32 %v2620, 7
    %v2622 = vsub.s32 7, %v2621
    %v2623 = vrot.slane %v973, %v2622
    %v2624 = vmul.f32 %v2498, %v2563
    %v2625 = vmul.f32 %v2502, %v2567
    %v2626 = vmul.f32 %v2506, %v2571
    %v2627 = vmul.f32 %v2510, %v2575
    %v2628 = vmul.f32 %v2514, %v2579
    %v2629 = vmul.f32 %v2518, %v2583
    %v2630 = vmul.f32 %v2522, %v2587
    %v2631 = vmul.f32 %v2526, %v2591
    %v2632 = vmul.f32 %v2530, %v2595
    %v2633 = vmul.f32 %v2534, %v2599
    %v2634 = vmul.f32 %v2538, %v2603
    %v2635 = vmul.f32 %v2542, %v2607
    %v2636 = vmul.f32 %v2546, %v2611
    %v2637 = vmul.f32 %v2550, %v2615
    %v2638 = vmul.f32 %v2554, %v2619
    %v2639 = vmul.f32 %v2558, %v2623
    %v2640 = vadd.f32 %v2480, %v2624
    %v2641 = vadd.f32 %v2481, %v2625
    %v2642 = vadd.f32 %v2482, %v2626
    %v2643 = vadd.f32 %v2483, %v2627
    %v2644 = vadd.f32 %v2484, %v2628
    %v2645 = vadd.f32 %v2485, %v2629
    %v2646 = vadd.f32 %v2486, %v2630
    %v2647 = vadd.f32 %v2487, %v2631
    %v2648 = vadd.f32 %v2488, %v2632
    %v2649 = vadd.f32 %v2489, %v2633
    %v2650 = vadd.f32 %v2490, %v2634
    %v2651 = vadd.f32 %v2491, %v2635
    %v2652 = vadd.f32 %v2492, %v2636
    %v2653 = vadd.f32 %v2493, %v2637
    %v2654 = vadd.f32 %v2494, %v2638
    %v2655 = vadd.f32 %v2495, %v2639
    %v2656 = vadd.f32 %v958, %v2640
    %v2657 = vadd.f32 %v959, %v2641
    %v2658 = vadd.f32 %v960, %v2642
    %v2659 = vadd.f32 %v961, %v2643
    %v2660 = vadd.f32 %v962, %v2644
    %v2661 = vadd.f32 %v963, %v2645
    %v2662 = vadd.f32 %v964, %v2646
    %v2663 = vadd.f32 %v965, %v2647
    %v2664 = vadd.f32 %v966, %v2648
    %v2665 = vadd.f32 %v967, %v2649
    %v2666 = vadd.f32 %v968, %v2650
    %v2667 = vadd.f32 %v969, %v2651
    %v2668 = vadd.f32 %v970, %v2652
    %v2669 = vadd.f32 %v971, %v2653
    %v2670 = vadd.f32 %v972, %v2654
    %v2671 = vadd.f32 %v973, %v2655
    %v2672 = vmax.f32 %v2656, 0.0
    %v2673 = vmax.f32 %v2657, 0.0
    %v2674 = vmax.f32 %v2658, 0.0
    %v2675 = vmax.f32 %v2659, 0.0
    %v2676 = vmax.f32 %v2660, 0.0
    %v2677 = vmax.f32 %v2661, 0.0
    %v2678 = vmax.f32 %v2662, 0.0
    %v2679 = vmax.f32 %v2663, 0.0
    %v2680 = vmax.f32 %v2664, 0.0
    %v2681 = vmax.f32 %v2665, 0.0
    %v2682 = vmax.f32 %v2666, 0.0
    %v2683 = vmax.f32 %v2667, 0.0
    %v2684 = vmax.f32 %v2668, 0.0
    %v2685 = vmax.f32 %v2669, 0.0
    %v2686 = vmax.f32 %v2670, 0.0
    %v2687 = vmax.f32 %v2671, 0.0
    %v2688 = vsel %vm139, %v281, 0.0
    %v2689 = vrot.slane %v2688, 4
    %v2690 = vadd.f32 %v2688, %v2689
    %v2691 = vrot.slane %v2690, 2
    %v2692 = vadd.f32 %v2690, %v2691
    %v2693 = vrot.slane %v2692, 1
    %v2694 = vadd.f32 %v2692, %v2693
    %v2695 = vsel %vm139, %v282, 0.0
    %v2696 = vrot.slane %v2695, 4
    %v2697 = vadd.f32 %v2695, %v2696
    %v2698 = vrot.slane %v2697, 2
    %v2699 = vadd.f32 %v2697, %v2698
    %v2700 = vrot.slane %v2699, 1
    %v2701 = vadd.f32 %v2699, %v2700
    %v2702 = vsel %vm139, %v283, 0.0
    %v2703 = vrot.slane %v2702, 4
    %v2704 = vadd.f32 %v2702, %v2703
    %v2705 = vrot.slane %v2704, 2
    %v2706 = vadd.f32 %v2704, %v2705
    %v2707 = vrot.slane %v2706, 1
    %v2708 = vadd.f32 %v2706, %v2707
    %v2709 = vsel %vm139, %v284, 0.0
    %v2710 = vrot.slane %v2709, 4
    %v2711 = vadd.f32 %v2709, %v2710
    %v2712 = vrot.slane %v2711, 2
    %v2713 = vadd.f32 %v2711, %v2712
    %v2714 = vrot.slane %v2713, 1
    %v2715 = vadd.f32 %v2713, %v2714
    %v2716 = vsel %vm139, %v285, 0.0
    %v2717 = vrot.slane %v2716, 4
    %v2718 = vadd.f32 %v2716, %v2717
    %v2719 = vrot.slane %v2718, 2
    %v2720 = vadd.f32 %v2718, %v2719
    %v2721 = vrot.slane %v2720, 1
    %v2722 = vadd.f32 %v2720, %v2721
    %v2723 = vsel %vm139, %v286, 0.0
    %v2724 = vrot.slane %v2723, 4
    %v2725 = vadd.f32 %v2723, %v2724
    %v2726 = vrot.slane %v2725, 2
    %v2727 = vadd.f32 %v2725, %v2726
    %v2728 = vrot.slane %v2727, 1
    %v2729 = vadd.f32 %v2727, %v2728
    %v2730 = vsel %vm139, %v287, 0.0
    %v2731 = vrot.slane %v2730, 4
    %v2732 = vadd.f32 %v2730, %v2731
    %v2733 = vrot.slane %v2732, 2
    %v2734 = vadd.f32 %v2732, %v2733
    %v2735 = vrot.slane %v2734, 1
    %v2736 = vadd.f32 %v2734, %v2735
    %v2737 = vsel %vm139, %v288, 0.0
    %v2738 = vrot.slane %v2737, 4
    %v2739 = vadd.f32 %v2737, %v2738
    %v2740 = vrot.slane %v2739, 2
    %v2741 = vadd.f32 %v2739, %v2740
    %v2742 = vrot.slane %v2741, 1
    %v2743 = vadd.f32 %v2741, %v2742
    %v2744 = vsel %vm139, %v289, 0.0
    %v2745 = vrot.slane %v2744, 4
    %v2746 = vadd.f32 %v2744, %v2745
    %v2747 = vrot.slane %v2746, 2
    %v2748 = vadd.f32 %v2746, %v2747
    %v2749 = vrot.slane %v2748, 1
    %v2750 = vadd.f32 %v2748, %v2749
    %v2751 = vsel %vm139, %v290, 0.0
    %v2752 = vrot.slane %v2751, 4
    %v2753 = vadd.f32 %v2751, %v2752
    %v2754 = vrot.slane %v2753, 2
    %v2755 = vadd.f32 %v2753, %v2754
    %v2756 = vrot.slane %v2755, 1
    %v2757 = vadd.f32 %v2755, %v2756
    %v2758 = vsel %vm139, %v291, 0.0
    %v2759 = vrot.slane %v2758, 4
    %v2760 = vadd.f32 %v2758, %v2759
    %v2761 = vrot.slane %v2760, 2
    %v2762 = vadd.f32 %v2760, %v2761
    %v2763 = vrot.slane %v2762, 1
    %v2764 = vadd.f32 %v2762, %v2763
    %v2765 = vsel %vm139, %v292, 0.0
    %v2766 = vrot.slane %v2765, 4
    %v2767 = vadd.f32 %v2765, %v2766
    %v2768 = vrot.slane %v2767, 2
    %v2769 = vadd.f32 %v2767, %v2768
    %v2770 = vrot.slane %v2769, 1
    %v2771 = vadd.f32 %v2769, %v2770
    %v2772 = vsel %vm139, %v293, 0.0
    %v2773 = vrot.slane %v2772, 4
    %v2774 = vadd.f32 %v2772, %v2773
    %v2775 = vrot.slane %v2774, 2
    %v2776 = vadd.f32 %v2774, %v2775
    %v2777 = vrot.slane %v2776, 1
    %v2778 = vadd.f32 %v2776, %v2777
    %v2779 = vsel %vm139, %v294, 0.0
    %v2780 = vrot.slane %v2779, 4
    %v2781 = vadd.f32 %v2779, %v2780
    %v2782 = vrot.slane %v2781, 2
    %v2783 = vadd.f32 %v2781, %v2782
    %v2784 = vrot.slane %v2783, 1
    %v2785 = vadd.f32 %v2783, %v2784
    %v2786 = vsel %vm139, %v295, 0.0
    %v2787 = vrot.slane %v2786, 4
    %v2788 = vadd.f32 %v2786, %v2787
    %v2789 = vrot.slane %v2788, 2
    %v2790 = vadd.f32 %v2788, %v2789
    %v2791 = vrot.slane %v2790, 1
    %v2792 = vadd.f32 %v2790, %v2791
    %v2793 = vsel %vm139, %v296, 0.0
    %v2794 = vrot.slane %v2793, 4
    %v2795 = vadd.f32 %v2793, %v2794
    %v2796 = vrot.slane %v2795, 2
    %v2797 = vadd.f32 %v2795, %v2796
    %v2798 = vrot.slane %v2797, 1
    %v2799 = vadd.f32 %v2797, %v2798
    %v2800 = vrcp.pop 8.0
    %v2801 = vmul.f32 %v2694, %v2800
    %v2802 = vmul.f32 %v2701, %v2800
    %v2803 = vmul.f32 %v2708, %v2800
    %v2804 = vmul.f32 %v2715, %v2800
    %v2805 = vmul.f32 %v2722, %v2800
    %v2806 = vmul.f32 %v2729, %v2800
    %v2807 = vmul.f32 %v2736, %v2800
    %v2808 = vmul.f32 %v2743, %v2800
    %v2809 = vmul.f32 %v2750, %v2800
    %v2810 = vmul.f32 %v2757, %v2800
    %v2811 = vmul.f32 %v2764, %v2800
    %v2812 = vmul.f32 %v2771, %v2800
    %v2813 = vmul.f32 %v2778, %v2800
    %v2814 = vmul.f32 %v2785, %v2800
    %v2815 = vmul.f32 %v2792, %v2800
    %v2816 = vmul.f32 %v2799, %v2800
    %v2817 = vld [vmem:[#allocation5 + $0x3] sm:$0x1]
    %v2818 = vld [vmem:[#allocation5 + $0x5] sm:$0x1]
    %v2819 = vlaneseq
    %v2820 = vshrl.u32 %v2819, 7
    %v2821 = vsub.s32 0, %v2820
    %v2822 = vrot.slane %v2817, %v2821
    %v2823 = vmul.f32 %v2801, %v2822
    %v2824 = vmul.f32 %v2802, %v2822
    %v2825 = vmul.f32 %v2803, %v2822
    %v2826 = vmul.f32 %v2804, %v2822
    %v2827 = vmul.f32 %v2805, %v2822
    %v2828 = vmul.f32 %v2806, %v2822
    %v2829 = vmul.f32 %v2807, %v2822
    %v2830 = vmul.f32 %v2808, %v2822
    %v2831 = vmul.f32 %v2809, %v2822
    %v2832 = vmul.f32 %v2810, %v2822
    %v2833 = vmul.f32 %v2811, %v2822
    %v2834 = vmul.f32 %v2812, %v2822
    %v2835 = vmul.f32 %v2813, %v2822
    %v2836 = vmul.f32 %v2814, %v2822
    %v2837 = vmul.f32 %v2815, %v2822
    %v2838 = vmul.f32 %v2816, %v2822
    %v2855 = vrot.slane %v2824, 7
    %vm2856 = vcmask 1041409
    %v2857 = vsel %vm2856, %v2855, %v2823
    %v2858 = vrot.slane %v2825, 6
    %vm2859 = vcmask 1042434
    %v2860 = vsel %vm2859, %v2858, %v2857
    %v2861 = vrot.slane %v2826, 5
    %vm2862 = vcmask 1043459
    %v2863 = vsel %vm2862, %v2861, %v2860
    %v2864 = vrot.slane %v2827, 4
    %vm2865 = vcmask 1044484
    %v2866 = vsel %vm2865, %v2864, %v2863
    %v2867 = vrot.slane %v2828, 3
    %vm2868 = vcmask 1045509
    %v2869 = vsel %vm2868, %v2867, %v2866
    %v2870 = vrot.slane %v2829, 2
    %vm2871 = vcmask 1046534
    %v2872 = vsel %vm2871, %v2870, %v2869
    %v2873 = vrot.slane %v2830, 1
    %vm2874 = vcmask 1047559
    %v2875 = vsel %vm2874, %v2873, %v2872
    %v2876 = vrot.slane %v2832, 7
    %v2877 = vsel %vm2856, %v2876, %v2831
    %v2878 = vrot.slane %v2833, 6
    %v2879 = vsel %vm2859, %v2878, %v2877
    %v2880 = vrot.slane %v2834, 5
    %v2881 = vsel %vm2862, %v2880, %v2879
    %v2882 = vrot.slane %v2835, 4
    %v2883 = vsel %vm2865, %v2882, %v2881
    %v2884 = vrot.slane %v2836, 3
    %v2885 = vsel %vm2868, %v2884, %v2883
    %v2886 = vrot.slane %v2837, 2
    %v2887 = vsel %vm2871, %v2886, %v2885
    %v2888 = vrot.slane %v2838, 1
    %v2889 = vsel %vm2874, %v2888, %v2887
    %v2892 = vsel %vm139, %v2875, 0.0
    %2893 = vadd.xlane.f32.xlu0 %v2892
    %v2894 = vpop.xlane.xlu0 %2893
    %v2895 = vsel %vm139, %v2889, 0.0
    %2896 = vadd.xlane.f32.xlu0 %v2895
    %v2897 = vpop.xlane.xlu0 %2896
    %v2898 = vlaneseq
    %v2899 = vshrl.u32 %v2898, 7
    %v2900 = vsub.s32 0, %v2899
    %v2901 = vrot.slane %v2818, %v2900
    %v2902 = vmul.f32 %v2672, %v2901
    %v2903 = vmul.f32 %v2673, %v2901
    %v2904 = vmul.f32 %v2674, %v2901
    %v2905 = vmul.f32 %v2675, %v2901
    %v2906 = vmul.f32 %v2676, %v2901
    %v2907 = vmul.f32 %v2677, %v2901
    %v2908 = vmul.f32 %v2678, %v2901
    %v2909 = vmul.f32 %v2679, %v2901
    %v2910 = vmul.f32 %v2680, %v2901
    %v2911 = vmul.f32 %v2681, %v2901
    %v2912 = vmul.f32 %v2682, %v2901
    %v2913 = vmul.f32 %v2683, %v2901
    %v2914 = vmul.f32 %v2684, %v2901
    %v2915 = vmul.f32 %v2685, %v2901
    %v2916 = vmul.f32 %v2686, %v2901
    %v2917 = vmul.f32 %v2687, %v2901
    %v2918 = vsel %vm139, %v2902, 0.0
    %2919 = vadd.xlane.f32.xlu0 %v2918
    %v2920 = vpop.xlane.xlu0 %2919
    %v2921 = vsel %vm139, %v2903, 0.0
    %2922 = vadd.xlane.f32.xlu0 %v2921
    %v2923 = vpop.xlane.xlu0 %2922
    %v2924 = vsel %vm139, %v2904, 0.0
    %2925 = vadd.xlane.f32.xlu0 %v2924
    %v2926 = vpop.xlane.xlu0 %2925
    %v2927 = vsel %vm139, %v2905, 0.0
    %2928 = vadd.xlane.f32.xlu0 %v2927
    %v2929 = vpop.xlane.xlu0 %2928
    %v2930 = vsel %vm139, %v2906, 0.0
    %2931 = vadd.xlane.f32.xlu0 %v2930
    %v2932 = vpop.xlane.xlu0 %2931
    %v2933 = vsel %vm139, %v2907, 0.0
    %2934 = vadd.xlane.f32.xlu0 %v2933
    %v2935 = vpop.xlane.xlu0 %2934
    %v2936 = vsel %vm139, %v2908, 0.0
    %2937 = vadd.xlane.f32.xlu0 %v2936
    %v2938 = vpop.xlane.xlu0 %2937
    %v2939 = vsel %vm139, %v2909, 0.0
    %2940 = vadd.xlane.f32.xlu0 %v2939
    %v2941 = vpop.xlane.xlu0 %2940
    %v2942 = vsel %vm139, %v2910, 0.0
    %2943 = vadd.xlane.f32.xlu0 %v2942
    %v2944 = vpop.xlane.xlu0 %2943
    %v2945 = vsel %vm139, %v2911, 0.0
    %2946 = vadd.xlane.f32.xlu0 %v2945
    %v2947 = vpop.xlane.xlu0 %2946
    %v2948 = vsel %vm139, %v2912, 0.0
    %2949 = vadd.xlane.f32.xlu0 %v2948
    %v2950 = vpop.xlane.xlu0 %2949
    %v2951 = vsel %vm139, %v2913, 0.0
    %2952 = vadd.xlane.f32.xlu0 %v2951
    %v2953 = vpop.xlane.xlu0 %2952
    %v2954 = vsel %vm139, %v2914, 0.0
    %2955 = vadd.xlane.f32.xlu0 %v2954
    %v2956 = vpop.xlane.xlu0 %2955
    %v2957 = vsel %vm139, %v2915, 0.0
    %2958 = vadd.xlane.f32.xlu0 %v2957
    %v2959 = vpop.xlane.xlu0 %2958
    %v2960 = vsel %vm139, %v2916, 0.0
    %2961 = vadd.xlane.f32.xlu0 %v2960
    %v2962 = vpop.xlane.xlu0 %2961
    %v2963 = vsel %vm139, %v2917, 0.0
    %2964 = vadd.xlane.f32.xlu0 %v2963
    %v2965 = vpop.xlane.xlu0 %2964
    %v2966 = vld [vmem:[#allocation2] sm:$0xff]
    %v2967 = vld [vmem:[#allocation2 + $0x8] sm:$0xff]
    %v2970 = vlaneseq
    %v2971 = vshrl.u32 %v2970, 7
    %v2972 = vsub.s32 0, %v2971
    %v2973 = vrot.slane %v2966, %v2972
    %2975 = vbcast.lane.b32.xlu0 %v2973, 256
    %v2976 = vpop.permute.xlu0 %2975
    %v2977 = vlaneseq
    %v2978 = vshrl.u32 %v2977, 7
    %v2979 = vsub.s32 1, %v2978
    %v2980 = vrot.slane %v2966, %v2979
    %2982 = vbcast.lane.b32.xlu0 %v2980, 256
    %v2983 = vpop.permute.xlu0 %2982
    %v2984 = vlaneseq
    %v2985 = vshrl.u32 %v2984, 7
    %v2986 = vsub.s32 2, %v2985
    %v2987 = vrot.slane %v2966, %v2986
    %2989 = vbcast.lane.b32.xlu0 %v2987, 256
    %v2990 = vpop.permute.xlu0 %2989
    %v2991 = vlaneseq
    %v2992 = vshrl.u32 %v2991, 7
    %v2993 = vsub.s32 3, %v2992
    %v2994 = vrot.slane %v2966, %v2993
    %2996 = vbcast.lane.b32.xlu0 %v2994, 256
    %v2997 = vpop.permute.xlu0 %2996
    %v2998 = vlaneseq
    %v2999 = vshrl.u32 %v2998, 7
    %v3000 = vsub.s32 4, %v2999
    %v3001 = vrot.slane %v2966, %v3000
    %3003 = vbcast.lane.b32.xlu0 %v3001, 256
    %v3004 = vpop.permute.xlu0 %3003
    %v3005 = vlaneseq
    %v3006 = vshrl.u32 %v3005, 7
    %v3007 = vsub.s32 5, %v3006
    %v3008 = vrot.slane %v2966, %v3007
    %3010 = vbcast.lane.b32.xlu0 %v3008, 256
    %v3011 = vpop.permute.xlu0 %3010
    %v3012 = vlaneseq
    %v3013 = vshrl.u32 %v3012, 7
    %v3014 = vsub.s32 6, %v3013
    %v3015 = vrot.slane %v2966, %v3014
    %3017 = vbcast.lane.b32.xlu0 %v3015, 256
    %v3018 = vpop.permute.xlu0 %3017
    %v3019 = vlaneseq
    %v3020 = vshrl.u32 %v3019, 7
    %v3021 = vsub.s32 7, %v3020
    %v3022 = vrot.slane %v2966, %v3021
    %3024 = vbcast.lane.b32.xlu0 %v3022, 256
    %v3025 = vpop.permute.xlu0 %3024
    %v3026 = vlaneseq
    %v3027 = vshrl.u32 %v3026, 7
    %v3028 = vsub.s32 0, %v3027
    %v3029 = vrot.slane %v2967, %v3028
    %3031 = vbcast.lane.b32.xlu0 %v3029, 256
    %v3032 = vpop.permute.xlu0 %3031
    %v3033 = vlaneseq
    %v3034 = vshrl.u32 %v3033, 7
    %v3035 = vsub.s32 1, %v3034
    %v3036 = vrot.slane %v2967, %v3035
    %3038 = vbcast.lane.b32.xlu0 %v3036, 256
    %v3039 = vpop.permute.xlu0 %3038
    %v3040 = vlaneseq
    %v3041 = vshrl.u32 %v3040, 7
    %v3042 = vsub.s32 2, %v3041
    %v3043 = vrot.slane %v2967, %v3042
    %3045 = vbcast.lane.b32.xlu0 %v3043, 256
    %v3046 = vpop.permute.xlu0 %3045
    %v3047 = vlaneseq
    %v3048 = vshrl.u32 %v3047, 7
    %v3049 = vsub.s32 3, %v3048
    %v3050 = vrot.slane %v2967, %v3049
    %3052 = vbcast.lane.b32.xlu0 %v3050, 256
    %v3053 = vpop.permute.xlu0 %3052
    %v3054 = vlaneseq
    %v3055 = vshrl.u32 %v3054, 7
    %v3056 = vsub.s32 4, %v3055
    %v3057 = vrot.slane %v2967, %v3056
    %3059 = vbcast.lane.b32.xlu0 %v3057, 256
    %v3060 = vpop.permute.xlu0 %3059
    %v3061 = vlaneseq
    %v3062 = vshrl.u32 %v3061, 7
    %v3063 = vsub.s32 5, %v3062
    %v3064 = vrot.slane %v2967, %v3063
    %3066 = vbcast.lane.b32.xlu0 %v3064, 256
    %v3067 = vpop.permute.xlu0 %3066
    %v3068 = vlaneseq
    %v3069 = vshrl.u32 %v3068, 7
    %v3070 = vsub.s32 6, %v3069
    %v3071 = vrot.slane %v2967, %v3070
    %3073 = vbcast.lane.b32.xlu0 %v3071, 256
    %v3074 = vpop.permute.xlu0 %3073
    %v3075 = vlaneseq
    %v3076 = vshrl.u32 %v3075, 7
    %v3077 = vsub.s32 7, %v3076
    %v3078 = vrot.slane %v2967, %v3077
    %3080 = vbcast.lane.b32.xlu0 %v3078, 256
    %v3081 = vpop.permute.xlu0 %3080
    %v3098 = vadd.f32 %v2920, %v2976
    %v3099 = vadd.f32 %v2923, %v2983
    %v3100 = vadd.f32 %v2926, %v2990
    %v3101 = vadd.f32 %v2929, %v2997
    %v3102 = vadd.f32 %v2932, %v3004
    %v3103 = vadd.f32 %v2935, %v3011
    %v3104 = vadd.f32 %v2938, %v3018
    %v3105 = vadd.f32 %v2941, %v3025
    %v3106 = vadd.f32 %v2944, %v3032
    %v3107 = vadd.f32 %v2947, %v3039
    %v3108 = vadd.f32 %v2950, %v3046
    %v3109 = vadd.f32 %v2953, %v3053
    %v3110 = vadd.f32 %v2956, %v3060
    %v3111 = vadd.f32 %v2959, %v3067
    %v3112 = vadd.f32 %v2962, %v3074
    %v3113 = vadd.f32 %v2965, %v3081
    %v3116 = vlaneseq
    %v3117 = vshrl.u32 %v3116, 7
    %v3118 = vsub.s32 0, %v3117
    %v3119 = vrot.slane %v2894, %v3118
    %v3120 = vlaneseq
    %v3121 = vshrl.u32 %v3120, 7
    %v3122 = vsub.s32 1, %v3121
    %v3123 = vrot.slane %v2894, %v3122
    %v3124 = vlaneseq
    %v3125 = vshrl.u32 %v3124, 7
    %v3126 = vsub.s32 2, %v3125
    %v3127 = vrot.slane %v2894, %v3126
    %v3128 = vlaneseq
    %v3129 = vshrl.u32 %v3128, 7
    %v3130 = vsub.s32 3, %v3129
    %v3131 = vrot.slane %v2894, %v3130
    %v3132 = vlaneseq
    %v3133 = vshrl.u32 %v3132, 7
    %v3134 = vsub.s32 4, %v3133
    %v3135 = vrot.slane %v2894, %v3134
    %v3136 = vlaneseq
    %v3137 = vshrl.u32 %v3136, 7
    %v3138 = vsub.s32 5, %v3137
    %v3139 = vrot.slane %v2894, %v3138
    %v3140 = vlaneseq
    %v3141 = vshrl.u32 %v3140, 7
    %v3142 = vsub.s32 6, %v3141
    %v3143 = vrot.slane %v2894, %v3142
    %v3144 = vlaneseq
    %v3145 = vshrl.u32 %v3144, 7
    %v3146 = vsub.s32 7, %v3145
    %v3147 = vrot.slane %v2894, %v3146
    %v3148 = vlaneseq
    %v3149 = vshrl.u32 %v3148, 7
    %v3150 = vsub.s32 0, %v3149
    %v3151 = vrot.slane %v2897, %v3150
    %v3152 = vlaneseq
    %v3153 = vshrl.u32 %v3152, 7
    %v3154 = vsub.s32 1, %v3153
    %v3155 = vrot.slane %v2897, %v3154
    %v3156 = vlaneseq
    %v3157 = vshrl.u32 %v3156, 7
    %v3158 = vsub.s32 2, %v3157
    %v3159 = vrot.slane %v2897, %v3158
    %v3160 = vlaneseq
    %v3161 = vshrl.u32 %v3160, 7
    %v3162 = vsub.s32 3, %v3161
    %v3163 = vrot.slane %v2897, %v3162
    %v3164 = vlaneseq
    %v3165 = vshrl.u32 %v3164, 7
    %v3166 = vsub.s32 4, %v3165
    %v3167 = vrot.slane %v2897, %v3166
    %v3168 = vlaneseq
    %v3169 = vshrl.u32 %v3168, 7
    %v3170 = vsub.s32 5, %v3169
    %v3171 = vrot.slane %v2897, %v3170
    %v3172 = vlaneseq
    %v3173 = vshrl.u32 %v3172, 7
    %v3174 = vsub.s32 6, %v3173
    %v3175 = vrot.slane %v2897, %v3174
    %v3176 = vlaneseq
    %v3177 = vshrl.u32 %v3176, 7
    %v3178 = vsub.s32 7, %v3177
    %v3179 = vrot.slane %v2897, %v3178
    %v3196 = vadd.f32 %v3098, %v3119
    %v3197 = vadd.f32 %v3099, %v3123
    %v3198 = vadd.f32 %v3100, %v3127
    %v3199 = vadd.f32 %v3101, %v3131
    %v3200 = vadd.f32 %v3102, %v3135
    %v3201 = vadd.f32 %v3103, %v3139
    %v3202 = vadd.f32 %v3104, %v3143
    %v3203 = vadd.f32 %v3105, %v3147
    %v3204 = vadd.f32 %v3106, %v3151
    %v3205 = vadd.f32 %v3107, %v3155
    %v3206 = vadd.f32 %v3108, %v3159
    %v3207 = vadd.f32 %v3109, %v3163
    %v3208 = vadd.f32 %v3110, %v3167
    %v3209 = vadd.f32 %v3111, %v3171
    %v3210 = vadd.f32 %v3112, %v3175
    %v3211 = vadd.f32 %v3113, %v3179
    %3228 = vset.pattern.permute.xlu0 0
    %3229 = vperm.xlu0 %3228, %v3196
    %v3230 = vpop.permute.xlu0 %3229
    %3231 = vset.pattern.permute.xlu0 0
    %3232 = vperm.xlu0 %3231, %v3197
    %v3233 = vpop.permute.xlu0 %3232
    %3234 = vset.pattern.permute.xlu0 0
    %3235 = vperm.xlu0 %3234, %v3198
    %v3236 = vpop.permute.xlu0 %3235
    %3237 = vset.pattern.permute.xlu0 0
    %3238 = vperm.xlu0 %3237, %v3199
    %v3239 = vpop.permute.xlu0 %3238
    %3240 = vset.pattern.permute.xlu0 0
    %3241 = vperm.xlu0 %3240, %v3200
    %v3242 = vpop.permute.xlu0 %3241
    %3243 = vset.pattern.permute.xlu0 0
    %3244 = vperm.xlu0 %3243, %v3201
    %v3245 = vpop.permute.xlu0 %3244
    %3246 = vset.pattern.permute.xlu0 0
    %3247 = vperm.xlu0 %3246, %v3202
    %v3248 = vpop.permute.xlu0 %3247
    %3249 = vset.pattern.permute.xlu0 0
    %3250 = vperm.xlu0 %3249, %v3203
    %v3251 = vpop.permute.xlu0 %3250
    %3252 = vset.pattern.permute.xlu0 0
    %3253 = vperm.xlu0 %3252, %v3204
    %v3254 = vpop.permute.xlu0 %3253
    %3255 = vset.pattern.permute.xlu0 0
    %3256 = vperm.xlu0 %3255, %v3205
    %v3257 = vpop.permute.xlu0 %3256
    %3258 = vset.pattern.permute.xlu0 0
    %3259 = vperm.xlu0 %3258, %v3206
    %v3260 = vpop.permute.xlu0 %3259
    %3261 = vset.pattern.permute.xlu0 0
    %3262 = vperm.xlu0 %3261, %v3207
    %v3263 = vpop.permute.xlu0 %3262
    %3264 = vset.pattern.permute.xlu0 0
    %3265 = vperm.xlu0 %3264, %v3208
    %v3266 = vpop.permute.xlu0 %3265
    %3267 = vset.pattern.permute.xlu0 0
    %3268 = vperm.xlu0 %3267, %v3209
    %v3269 = vpop.permute.xlu0 %3268
    %3270 = vset.pattern.permute.xlu0 0
    %3271 = vperm.xlu0 %3270, %v3210
    %v3272 = vpop.permute.xlu0 %3271
    %3273 = vset.pattern.permute.xlu0 0
    %3274 = vperm.xlu0 %3273, %v3211
    %v3275 = vpop.permute.xlu0 %3274
    %v3276 = vlaneseq
    %v3277 = vand.u32 %v3276, 127
    %v3278 = vlaneseq
    %v3279 = vshrl.u32 %v3278, 7
    %v3280 = vsub.s32 %v3277, %v3279
    %v3281 = vrot.slane %v3230, %v3280
    %v3282 = vlaneseq
    %v3283 = vshrl.u32 %v3282, 7
    %v3284 = vsub.s32 %v3277, %v3283
    %v3285 = vrot.slane %v3233, %v3284
    %v3286 = vlaneseq
    %v3287 = vshrl.u32 %v3286, 7
    %v3288 = vsub.s32 %v3277, %v3287
    %v3289 = vrot.slane %v3236, %v3288
    %v3290 = vlaneseq
    %v3291 = vshrl.u32 %v3290, 7
    %v3292 = vsub.s32 %v3277, %v3291
    %v3293 = vrot.slane %v3239, %v3292
    %v3294 = vlaneseq
    %v3295 = vshrl.u32 %v3294, 7
    %v3296 = vsub.s32 %v3277, %v3295
    %v3297 = vrot.slane %v3242, %v3296
    %v3298 = vlaneseq
    %v3299 = vshrl.u32 %v3298, 7
    %v3300 = vsub.s32 %v3277, %v3299
    %v3301 = vrot.slane %v3245, %v3300
    %v3302 = vlaneseq
    %v3303 = vshrl.u32 %v3302, 7
    %v3304 = vsub.s32 %v3277, %v3303
    %v3305 = vrot.slane %v3248, %v3304
    %v3306 = vlaneseq
    %v3307 = vshrl.u32 %v3306, 7
    %v3308 = vsub.s32 %v3277, %v3307
    %v3309 = vrot.slane %v3251, %v3308
    %v3310 = vlaneseq
    %v3311 = vshrl.u32 %v3310, 7
    %v3312 = vsub.s32 %v3277, %v3311
    %v3313 = vrot.slane %v3254, %v3312
    %v3314 = vlaneseq
    %v3315 = vshrl.u32 %v3314, 7
    %v3316 = vsub.s32 %v3277, %v3315
    %v3317 = vrot.slane %v3257, %v3316
    %v3318 = vlaneseq
    %v3319 = vshrl.u32 %v3318, 7
    %v3320 = vsub.s32 %v3277, %v3319
    %v3321 = vrot.slane %v3260, %v3320
    %v3322 = vlaneseq
    %v3323 = vshrl.u32 %v3322, 7
    %v3324 = vsub.s32 %v3277, %v3323
    %v3325 = vrot.slane %v3263, %v3324
    %v3326 = vlaneseq
    %v3327 = vshrl.u32 %v3326, 7
    %v3328 = vsub.s32 %v3277, %v3327
    %v3329 = vrot.slane %v3266, %v3328
    %v3330 = vlaneseq
    %v3331 = vshrl.u32 %v3330, 7
    %v3332 = vsub.s32 %v3277, %v3331
    %v3333 = vrot.slane %v3269, %v3332
    %v3334 = vlaneseq
    %v3335 = vshrl.u32 %v3334, 7
    %v3336 = vsub.s32 %v3277, %v3335
    %v3337 = vrot.slane %v3272, %v3336
    %v3338 = vlaneseq
    %v3339 = vshrl.u32 %v3338, 7
    %v3340 = vsub.s32 %v3277, %v3339
    %v3341 = vrot.slane %v3275, %v3340
    %v3342 = vsel %vm2856, %v3285, %v3281
    %v3343 = vsel %vm2859, %v3289, %v3342
    %v3344 = vsel %vm2862, %v3293, %v3343
    %v3345 = vsel %vm2865, %v3297, %v3344
    %v3346 = vsel %vm2868, %v3301, %v3345
    %v3347 = vsel %vm2871, %v3305, %v3346
    %v3348 = vsel %vm2874, %v3309, %v3347
    %v3349 = vsel %vm2856, %v3317, %v3313
    %v3350 = vsel %vm2859, %v3321, %v3349
    %v3351 = vsel %vm2862, %v3325, %v3350
    %v3352 = vsel %vm2865, %v3329, %v3351
    %v3353 = vsel %vm2868, %v3333, %v3352
    %v3354 = vsel %vm2871, %v3337, %v3353
    %v3355 = vsel %vm2874, %v3341, %v3354
    %v3358 = vsel %vm1199, %v3348, -inf
    %3359 = vmax.xlane.f32.xlu0 %v3358
    %v3360 = vpop.xlane.xlu0 %3359
    %v3361 = vsel %vm1199, %v3355, -inf
    %3362 = vmax.xlane.f32.xlu0 %v3361
    %v3363 = vpop.xlane.xlu0 %3362
    %v3366 = vlaneseq
    %v3367 = vshrl.u32 %v3366, 7
    %v3368 = vsub.s32 0, %v3367
    %v3369 = vrot.slane %v3360, %v3368
    %v3370 = vlaneseq
    %v3371 = vshrl.u32 %v3370, 7
    %v3372 = vsub.s32 1, %v3371
    %v3373 = vrot.slane %v3360, %v3372
    %v3374 = vlaneseq
    %v3375 = vshrl.u32 %v3374, 7
    %v3376 = vsub.s32 2, %v3375
    %v3377 = vrot.slane %v3360, %v3376
    %v3378 = vlaneseq
    %v3379 = vshrl.u32 %v3378, 7
    %v3380 = vsub.s32 3, %v3379
    %v3381 = vrot.slane %v3360, %v3380
    %v3382 = vlaneseq
    %v3383 = vshrl.u32 %v3382, 7
    %v3384 = vsub.s32 4, %v3383
    %v3385 = vrot.slane %v3360, %v3384
    %v3386 = vlaneseq
    %v3387 = vshrl.u32 %v3386, 7
    %v3388 = vsub.s32 5, %v3387
    %v3389 = vrot.slane %v3360, %v3388
    %v3390 = vlaneseq
    %v3391 = vshrl.u32 %v3390, 7
    %v3392 = vsub.s32 6, %v3391
    %v3393 = vrot.slane %v3360, %v3392
    %v3394 = vlaneseq
    %v3395 = vshrl.u32 %v3394, 7
    %v3396 = vsub.s32 7, %v3395
    %v3397 = vrot.slane %v3360, %v3396
    %v3398 = vlaneseq
    %v3399 = vshrl.u32 %v3398, 7
    %v3400 = vsub.s32 0, %v3399
    %v3401 = vrot.slane %v3363, %v3400
    %v3402 = vlaneseq
    %v3403 = vshrl.u32 %v3402, 7
    %v3404 = vsub.s32 1, %v3403
    %v3405 = vrot.slane %v3363, %v3404
    %v3406 = vlaneseq
    %v3407 = vshrl.u32 %v3406, 7
    %v3408 = vsub.s32 2, %v3407
    %v3409 = vrot.slane %v3363, %v3408
    %v3410 = vlaneseq
    %v3411 = vshrl.u32 %v3410, 7
    %v3412 = vsub.s32 3, %v3411
    %v3413 = vrot.slane %v3363, %v3412
    %v3414 = vlaneseq
    %v3415 = vshrl.u32 %v3414, 7
    %v3416 = vsub.s32 4, %v3415
    %v3417 = vrot.slane %v3363, %v3416
    %v3418 = vlaneseq
    %v3419 = vshrl.u32 %v3418, 7
    %v3420 = vsub.s32 5, %v3419
    %v3421 = vrot.slane %v3363, %v3420
    %v3422 = vlaneseq
    %v3423 = vshrl.u32 %v3422, 7
    %v3424 = vsub.s32 6, %v3423
    %v3425 = vrot.slane %v3363, %v3424
    %v3426 = vlaneseq
    %v3427 = vshrl.u32 %v3426, 7
    %v3428 = vsub.s32 7, %v3427
    %v3429 = vrot.slane %v3363, %v3428
    %v3446 = vsub.f32 %v3196, %v3369
    %v3447 = vsub.f32 %v3197, %v3373
    %v3448 = vsub.f32 %v3198, %v3377
    %v3449 = vsub.f32 %v3199, %v3381
    %v3450 = vsub.f32 %v3200, %v3385
    %v3451 = vsub.f32 %v3201, %v3389
    %v3452 = vsub.f32 %v3202, %v3393
    %v3453 = vsub.f32 %v3203, %v3397
    %v3454 = vsub.f32 %v3204, %v3401
    %v3455 = vsub.f32 %v3205, %v3405
    %v3456 = vsub.f32 %v3206, %v3409
    %v3457 = vsub.f32 %v3207, %v3413
    %v3458 = vsub.f32 %v3208, %v3417
    %v3459 = vsub.f32 %v3209, %v3421
    %v3460 = vsub.f32 %v3210, %v3425
    %v3461 = vsub.f32 %v3211, %v3429
    %v3462 = vmul.f32 %v3446, 1.442695
    %v3463 = vpow.pop %v3462
    %v3464 = vmul.f32 %v3447, 1.442695
    %v3465 = vpow.pop %v3464
    %v3466 = vmul.f32 %v3448, 1.442695
    %v3467 = vpow.pop %v3466
    %v3468 = vmul.f32 %v3449, 1.442695
    %v3469 = vpow.pop %v3468
    %v3470 = vmul.f32 %v3450, 1.442695
    %v3471 = vpow.pop %v3470
    %v3472 = vmul.f32 %v3451, 1.442695
    %v3473 = vpow.pop %v3472
    %v3474 = vmul.f32 %v3452, 1.442695
    %v3475 = vpow.pop %v3474
    %v3476 = vmul.f32 %v3453, 1.442695
    %v3477 = vpow.pop %v3476
    %v3478 = vmul.f32 %v3454, 1.442695
    %v3479 = vpow.pop %v3478
    %v3480 = vmul.f32 %v3455, 1.442695
    %v3481 = vpow.pop %v3480
    %v3482 = vmul.f32 %v3456, 1.442695
    %v3483 = vpow.pop %v3482
    %v3484 = vmul.f32 %v3457, 1.442695
    %v3485 = vpow.pop %v3484
    %v3486 = vmul.f32 %v3458, 1.442695
    %v3487 = vpow.pop %v3486
    %v3488 = vmul.f32 %v3459, 1.442695
    %v3489 = vpow.pop %v3488
    %v3490 = vmul.f32 %v3460, 1.442695
    %v3491 = vpow.pop %v3490
    %v3492 = vmul.f32 %v3461, 1.442695
    %v3493 = vpow.pop %v3492
    %3510 = vset.pattern.permute.xlu0 0
    %3511 = vperm.xlu0 %3510, %v3463
    %v3512 = vpop.permute.xlu0 %3511
    %3513 = vset.pattern.permute.xlu0 0
    %3514 = vperm.xlu0 %3513, %v3465
    %v3515 = vpop.permute.xlu0 %3514
    %3516 = vset.pattern.permute.xlu0 0
    %3517 = vperm.xlu0 %3516, %v3467
    %v3518 = vpop.permute.xlu0 %3517
    %3519 = vset.pattern.permute.xlu0 0
    %3520 = vperm.xlu0 %3519, %v3469
    %v3521 = vpop.permute.xlu0 %3520
    %3522 = vset.pattern.permute.xlu0 0
    %3523 = vperm.xlu0 %3522, %v3471
    %v3524 = vpop.permute.xlu0 %3523
    %3525 = vset.pattern.permute.xlu0 0
    %3526 = vperm.xlu0 %3525, %v3473
    %v3527 = vpop.permute.xlu0 %3526
    %3528 = vset.pattern.permute.xlu0 0
    %3529 = vperm.xlu0 %3528, %v3475
    %v3530 = vpop.permute.xlu0 %3529
    %3531 = vset.pattern.permute.xlu0 0
    %3532 = vperm.xlu0 %3531, %v3477
    %v3533 = vpop.permute.xlu0 %3532
    %3534 = vset.pattern.permute.xlu0 0
    %3535 = vperm.xlu0 %3534, %v3479
    %v3536 = vpop.permute.xlu0 %3535
    %3537 = vset.pattern.permute.xlu0 0
    %3538 = vperm.xlu0 %3537, %v3481
    %v3539 = vpop.permute.xlu0 %3538
    %3540 = vset.pattern.permute.xlu0 0
    %3541 = vperm.xlu0 %3540, %v3483
    %v3542 = vpop.permute.xlu0 %3541
    %3543 = vset.pattern.permute.xlu0 0
    %3544 = vperm.xlu0 %3543, %v3485
    %v3545 = vpop.permute.xlu0 %3544
    %3546 = vset.pattern.permute.xlu0 0
    %3547 = vperm.xlu0 %3546, %v3487
    %v3548 = vpop.permute.xlu0 %3547
    %3549 = vset.pattern.permute.xlu0 0
    %3550 = vperm.xlu0 %3549, %v3489
    %v3551 = vpop.permute.xlu0 %3550
    %3552 = vset.pattern.permute.xlu0 0
    %3553 = vperm.xlu0 %3552, %v3491
    %v3554 = vpop.permute.xlu0 %3553
    %3555 = vset.pattern.permute.xlu0 0
    %3556 = vperm.xlu0 %3555, %v3493
    %v3557 = vpop.permute.xlu0 %3556
    %v3558 = vlaneseq
    %v3559 = vshrl.u32 %v3558, 7
    %v3560 = vsub.s32 %v3277, %v3559
    %v3561 = vrot.slane %v3512, %v3560
    %v3562 = vlaneseq
    %v3563 = vshrl.u32 %v3562, 7
    %v3564 = vsub.s32 %v3277, %v3563
    %v3565 = vrot.slane %v3515, %v3564
    %v3566 = vlaneseq
    %v3567 = vshrl.u32 %v3566, 7
    %v3568 = vsub.s32 %v3277, %v3567
    %v3569 = vrot.slane %v3518, %v3568
    %v3570 = vlaneseq
    %v3571 = vshrl.u32 %v3570, 7
    %v3572 = vsub.s32 %v3277, %v3571
    %v3573 = vrot.slane %v3521, %v3572
    %v3574 = vlaneseq
    %v3575 = vshrl.u32 %v3574, 7
    %v3576 = vsub.s32 %v3277, %v3575
    %v3577 = vrot.slane %v3524, %v3576
    %v3578 = vlaneseq
    %v3579 = vshrl.u32 %v3578, 7
    %v3580 = vsub.s32 %v3277, %v3579
    %v3581 = vrot.slane %v3527, %v3580
    %v3582 = vlaneseq
    %v3583 = vshrl.u32 %v3582, 7
    %v3584 = vsub.s32 %v3277, %v3583
    %v3585 = vrot.slane %v3530, %v3584
    %v3586 = vlaneseq
    %v3587 = vshrl.u32 %v3586, 7
    %v3588 = vsub.s32 %v3277, %v3587
    %v3589 = vrot.slane %v3533, %v3588
    %v3590 = vlaneseq
    %v3591 = vshrl.u32 %v3590, 7
    %v3592 = vsub.s32 %v3277, %v3591
    %v3593 = vrot.slane %v3536, %v3592
    %v3594 = vlaneseq
    %v3595 = vshrl.u32 %v3594, 7
    %v3596 = vsub.s32 %v3277, %v3595
    %v3597 = vrot.slane %v3539, %v3596
    %v3598 = vlaneseq
    %v3599 = vshrl.u32 %v3598, 7
    %v3600 = vsub.s32 %v3277, %v3599
    %v3601 = vrot.slane %v3542, %v3600
    %v3602 = vlaneseq
    %v3603 = vshrl.u32 %v3602, 7
    %v3604 = vsub.s32 %v3277, %v3603
    %v3605 = vrot.slane %v3545, %v3604
    %v3606 = vlaneseq
    %v3607 = vshrl.u32 %v3606, 7
    %v3608 = vsub.s32 %v3277, %v3607
    %v3609 = vrot.slane %v3548, %v3608
    %v3610 = vlaneseq
    %v3611 = vshrl.u32 %v3610, 7
    %v3612 = vsub.s32 %v3277, %v3611
    %v3613 = vrot.slane %v3551, %v3612
    %v3614 = vlaneseq
    %v3615 = vshrl.u32 %v3614, 7
    %v3616 = vsub.s32 %v3277, %v3615
    %v3617 = vrot.slane %v3554, %v3616
    %v3618 = vlaneseq
    %v3619 = vshrl.u32 %v3618, 7
    %v3620 = vsub.s32 %v3277, %v3619
    %v3621 = vrot.slane %v3557, %v3620
    %v3622 = vsel %vm2856, %v3565, %v3561
    %v3623 = vsel %vm2859, %v3569, %v3622
    %v3624 = vsel %vm2862, %v3573, %v3623
    %v3625 = vsel %vm2865, %v3577, %v3624
    %v3626 = vsel %vm2868, %v3581, %v3625
    %v3627 = vsel %vm2871, %v3585, %v3626
    %v3628 = vsel %vm2874, %v3589, %v3627
    %v3629 = vsel %vm2856, %v3597, %v3593
    %v3630 = vsel %vm2859, %v3601, %v3629
    %v3631 = vsel %vm2862, %v3605, %v3630
    %v3632 = vsel %vm2865, %v3609, %v3631
    %v3633 = vsel %vm2868, %v3613, %v3632
    %v3634 = vsel %vm2871, %v3617, %v3633
    %v3635 = vsel %vm2874, %v3621, %v3634
    %v3638 = vsel %vm1199, %v3628, 0.0
    %3639 = vadd.xlane.f32.xlu0 %v3638
    %v3640 = vpop.xlane.xlu0 %3639
    %v3641 = vsel %vm1199, %v3635, 0.0
    %3642 = vadd.xlane.f32.xlu0 %v3641
    %v3643 = vpop.xlane.xlu0 %3642
    %v3646 = vlaneseq
    %v3647 = vshrl.u32 %v3646, 7
    %v3648 = vsub.s32 0, %v3647
    %v3649 = vrot.slane %v3640, %v3648
    %v3650 = vlaneseq
    %v3651 = vshrl.u32 %v3650, 7
    %v3652 = vsub.s32 1, %v3651
    %v3653 = vrot.slane %v3640, %v3652
    %v3654 = vlaneseq
    %v3655 = vshrl.u32 %v3654, 7
    %v3656 = vsub.s32 2, %v3655
    %v3657 = vrot.slane %v3640, %v3656
    %v3658 = vlaneseq
    %v3659 = vshrl.u32 %v3658, 7
    %v3660 = vsub.s32 3, %v3659
    %v3661 = vrot.slane %v3640, %v3660
    %v3662 = vlaneseq
    %v3663 = vshrl.u32 %v3662, 7
    %v3664 = vsub.s32 4, %v3663
    %v3665 = vrot.slane %v3640, %v3664
    %v3666 = vlaneseq
    %v3667 = vshrl.u32 %v3666, 7
    %v3668 = vsub.s32 5, %v3667
    %v3669 = vrot.slane %v3640, %v3668
    %v3670 = vlaneseq
    %v3671 = vshrl.u32 %v3670, 7
    %v3672 = vsub.s32 6, %v3671
    %v3673 = vrot.slane %v3640, %v3672
    %v3674 = vlaneseq
    %v3675 = vshrl.u32 %v3674, 7
    %v3676 = vsub.s32 7, %v3675
    %v3677 = vrot.slane %v3640, %v3676
    %v3678 = vlaneseq
    %v3679 = vshrl.u32 %v3678, 7
    %v3680 = vsub.s32 0, %v3679
    %v3681 = vrot.slane %v3643, %v3680
    %v3682 = vlaneseq
    %v3683 = vshrl.u32 %v3682, 7
    %v3684 = vsub.s32 1, %v3683
    %v3685 = vrot.slane %v3643, %v3684
    %v3686 = vlaneseq
    %v3687 = vshrl.u32 %v3686, 7
    %v3688 = vsub.s32 2, %v3687
    %v3689 = vrot.slane %v3643, %v3688
    %v3690 = vlaneseq
    %v3691 = vshrl.u32 %v3690, 7
    %v3692 = vsub.s32 3, %v3691
    %v3693 = vrot.slane %v3643, %v3692
    %v3694 = vlaneseq
    %v3695 = vshrl.u32 %v3694, 7
    %v3696 = vsub.s32 4, %v3695
    %v3697 = vrot.slane %v3643, %v3696
    %v3698 = vlaneseq
    %v3699 = vshrl.u32 %v3698, 7
    %v3700 = vsub.s32 5, %v3699
    %v3701 = vrot.slane %v3643, %v3700
    %v3702 = vlaneseq
    %v3703 = vshrl.u32 %v3702, 7
    %v3704 = vsub.s32 6, %v3703
    %v3705 = vrot.slane %v3643, %v3704
    %v3706 = vlaneseq
    %v3707 = vshrl.u32 %v3706, 7
    %v3708 = vsub.s32 7, %v3707
    %v3709 = vrot.slane %v3643, %v3708
    %v3726 = vrcp.pop %v3649
    %v3727 = vmul.f32 %v3463, %v3726
    %v3728 = vrcp.pop %v3653
    %v3729 = vmul.f32 %v3465, %v3728
    %v3730 = vrcp.pop %v3657
    %v3731 = vmul.f32 %v3467, %v3730
    %v3732 = vrcp.pop %v3661
    %v3733 = vmul.f32 %v3469, %v3732
    %v3734 = vrcp.pop %v3665
    %v3735 = vmul.f32 %v3471, %v3734
    %v3736 = vrcp.pop %v3669
    %v3737 = vmul.f32 %v3473, %v3736
    %v3738 = vrcp.pop %v3673
    %v3739 = vmul.f32 %v3475, %v3738
    %v3740 = vrcp.pop %v3677
    %v3741 = vmul.f32 %v3477, %v3740
    %v3742 = vrcp.pop %v3681
    %v3743 = vmul.f32 %v3479, %v3742
    %v3744 = vrcp.pop %v3685
    %v3745 = vmul.f32 %v3481, %v3744
    %v3746 = vrcp.pop %v3689
    %v3747 = vmul.f32 %v3483, %v3746
    %v3748 = vrcp.pop %v3693
    %v3749 = vmul.f32 %v3485, %v3748
    %v3750 = vrcp.pop %v3697
    %v3751 = vmul.f32 %v3487, %v3750
    %v3752 = vrcp.pop %v3701
    %v3753 = vmul.f32 %v3489, %v3752
    %v3754 = vrcp.pop %v3705
    %v3755 = vmul.f32 %v3491, %v3754
    %v3756 = vrcp.pop %v3709
    %v3757 = vmul.f32 %v3493, %v3756
    %3759 = vset.pattern.permute.xlu0 0
    %3760 = vperm.xlu0 %3759, %v3727
    %v3761 = vpop.permute.xlu0 %3760
    %3764 = vset.pattern.permute.xlu0 0
    %3765 = vperm.xlu0 %3764, %v3729
    %v3766 = vpop.permute.xlu0 %3765
    %3769 = vset.pattern.permute.xlu0 0
    %3770 = vperm.xlu0 %3769, %v3731
    %v3771 = vpop.permute.xlu0 %3770
    %3774 = vset.pattern.permute.xlu0 0
    %3775 = vperm.xlu0 %3774, %v3733
    %v3776 = vpop.permute.xlu0 %3775
    %3779 = vset.pattern.permute.xlu0 0
    %3780 = vperm.xlu0 %3779, %v3735
    %v3781 = vpop.permute.xlu0 %3780
    %3784 = vset.pattern.permute.xlu0 0
    %3785 = vperm.xlu0 %3784, %v3737
    %v3786 = vpop.permute.xlu0 %3785
    %3789 = vset.pattern.permute.xlu0 0
    %3790 = vperm.xlu0 %3789, %v3739
    %v3791 = vpop.permute.xlu0 %3790
    %3794 = vset.pattern.permute.xlu0 0
    %3795 = vperm.xlu0 %3794, %v3741
    %v3796 = vpop.permute.xlu0 %3795
    %3799 = vset.pattern.permute.xlu0 0
    %3800 = vperm.xlu0 %3799, %v3743
    %v3801 = vpop.permute.xlu0 %3800
    %3804 = vset.pattern.permute.xlu0 0
    %3805 = vperm.xlu0 %3804, %v3745
    %v3806 = vpop.permute.xlu0 %3805
    %3809 = vset.pattern.permute.xlu0 0
    %3810 = vperm.xlu0 %3809, %v3747
    %v3811 = vpop.permute.xlu0 %3810
    %3814 = vset.pattern.permute.xlu0 0
    %3815 = vperm.xlu0 %3814, %v3749
    %v3816 = vpop.permute.xlu0 %3815
    %3819 = vset.pattern.permute.xlu0 0
    %3820 = vperm.xlu0 %3819, %v3751
    %v3821 = vpop.permute.xlu0 %3820
    %3824 = vset.pattern.permute.xlu0 0
    %3825 = vperm.xlu0 %3824, %v3753
    %v3826 = vpop.permute.xlu0 %3825
    %3829 = vset.pattern.permute.xlu0 0
    %3830 = vperm.xlu0 %3829, %v3755
    %v3831 = vpop.permute.xlu0 %3830
    %3834 = vset.pattern.permute.xlu0 0
    %3835 = vperm.xlu0 %3834, %v3757
    %v3836 = vpop.permute.xlu0 %3835
    %v3838 = vmul.f32 %v3761, %v2672
    %v3839 = vmul.f32 %v3766, %v2673
    %v3840 = vmul.f32 %v3771, %v2674
    %v3841 = vmul.f32 %v3776, %v2675
    %v3842 = vmul.f32 %v3781, %v2676
    %v3843 = vmul.f32 %v3786, %v2677
    %v3844 = vmul.f32 %v3791, %v2678
    %v3845 = vmul.f32 %v3796, %v2679
    %v3846 = vmul.f32 %v3801, %v2680
    %v3847 = vmul.f32 %v3806, %v2681
    %v3848 = vmul.f32 %v3811, %v2682
    %v3849 = vmul.f32 %v3816, %v2683
    %v3850 = vmul.f32 %v3821, %v2684
    %v3851 = vmul.f32 %v3826, %v2685
    %v3852 = vmul.f32 %v3831, %v2686
    %v3853 = vmul.f32 %v3836, %v2687
    %v3854 = vsel %vm139, %v3838, 0.0
    %v3855 = vrot.slane %v3854, 4
    %v3856 = vadd.f32 %v3854, %v3855
    %v3857 = vrot.slane %v3856, 2
    %v3858 = vadd.f32 %v3856, %v3857
    %v3859 = vrot.slane %v3858, 1
    %v3860 = vadd.f32 %v3858, %v3859
    %v3861 = vsel %vm139, %v3839, 0.0
    %v3862 = vrot.slane %v3861, 4
    %v3863 = vadd.f32 %v3861, %v3862
    %v3864 = vrot.slane %v3863, 2
    %v3865 = vadd.f32 %v3863, %v3864
    %v3866 = vrot.slane %v3865, 1
    %v3867 = vadd.f32 %v3865, %v3866
    %v3868 = vsel %vm139, %v3840, 0.0
    %v3869 = vrot.slane %v3868, 4
    %v3870 = vadd.f32 %v3868, %v3869
    %v3871 = vrot.slane %v3870, 2
    %v3872 = vadd.f32 %v3870, %v3871
    %v3873 = vrot.slane %v3872, 1
    %v3874 = vadd.f32 %v3872, %v3873
    %v3875 = vsel %vm139, %v3841, 0.0
    %v3876 = vrot.slane %v3875, 4
    %v3877 = vadd.f32 %v3875, %v3876
    %v3878 = vrot.slane %v3877, 2
    %v3879 = vadd.f32 %v3877, %v3878
    %v3880 = vrot.slane %v3879, 1
    %v3881 = vadd.f32 %v3879, %v3880
    %v3882 = vsel %vm139, %v3842, 0.0
    %v3883 = vrot.slane %v3882, 4
    %v3884 = vadd.f32 %v3882, %v3883
    %v3885 = vrot.slane %v3884, 2
    %v3886 = vadd.f32 %v3884, %v3885
    %v3887 = vrot.slane %v3886, 1
    %v3888 = vadd.f32 %v3886, %v3887
    %v3889 = vsel %vm139, %v3843, 0.0
    %v3890 = vrot.slane %v3889, 4
    %v3891 = vadd.f32 %v3889, %v3890
    %v3892 = vrot.slane %v3891, 2
    %v3893 = vadd.f32 %v3891, %v3892
    %v3894 = vrot.slane %v3893, 1
    %v3895 = vadd.f32 %v3893, %v3894
    %v3896 = vsel %vm139, %v3844, 0.0
    %v3897 = vrot.slane %v3896, 4
    %v3898 = vadd.f32 %v3896, %v3897
    %v3899 = vrot.slane %v3898, 2
    %v3900 = vadd.f32 %v3898, %v3899
    %v3901 = vrot.slane %v3900, 1
    %v3902 = vadd.f32 %v3900, %v3901
    %v3903 = vsel %vm139, %v3845, 0.0
    %v3904 = vrot.slane %v3903, 4
    %v3905 = vadd.f32 %v3903, %v3904
    %v3906 = vrot.slane %v3905, 2
    %v3907 = vadd.f32 %v3905, %v3906
    %v3908 = vrot.slane %v3907, 1
    %v3909 = vadd.f32 %v3907, %v3908
    %v3910 = vsel %vm139, %v3846, 0.0
    %v3911 = vrot.slane %v3910, 4
    %v3912 = vadd.f32 %v3910, %v3911
    %v3913 = vrot.slane %v3912, 2
    %v3914 = vadd.f32 %v3912, %v3913
    %v3915 = vrot.slane %v3914, 1
    %v3916 = vadd.f32 %v3914, %v3915
    %v3917 = vsel %vm139, %v3847, 0.0
    %v3918 = vrot.slane %v3917, 4
    %v3919 = vadd.f32 %v3917, %v3918
    %v3920 = vrot.slane %v3919, 2
    %v3921 = vadd.f32 %v3919, %v3920
    %v3922 = vrot.slane %v3921, 1
    %v3923 = vadd.f32 %v3921, %v3922
    %v3924 = vsel %vm139, %v3848, 0.0
    %v3925 = vrot.slane %v3924, 4
    %v3926 = vadd.f32 %v3924, %v3925
    %v3927 = vrot.slane %v3926, 2
    %v3928 = vadd.f32 %v3926, %v3927
    %v3929 = vrot.slane %v3928, 1
    %v3930 = vadd.f32 %v3928, %v3929
    %v3931 = vsel %vm139, %v3849, 0.0
    %v3932 = vrot.slane %v3931, 4
    %v3933 = vadd.f32 %v3931, %v3932
    %v3934 = vrot.slane %v3933, 2
    %v3935 = vadd.f32 %v3933, %v3934
    %v3936 = vrot.slane %v3935, 1
    %v3937 = vadd.f32 %v3935, %v3936
    %v3938 = vsel %vm139, %v3850, 0.0
    %v3939 = vrot.slane %v3938, 4
    %v3940 = vadd.f32 %v3938, %v3939
    %v3941 = vrot.slane %v3940, 2
    %v3942 = vadd.f32 %v3940, %v3941
    %v3943 = vrot.slane %v3942, 1
    %v3944 = vadd.f32 %v3942, %v3943
    %v3945 = vsel %vm139, %v3851, 0.0
    %v3946 = vrot.slane %v3945, 4
    %v3947 = vadd.f32 %v3945, %v3946
    %v3948 = vrot.slane %v3947, 2
    %v3949 = vadd.f32 %v3947, %v3948
    %v3950 = vrot.slane %v3949, 1
    %v3951 = vadd.f32 %v3949, %v3950
    %v3952 = vsel %vm139, %v3852, 0.0
    %v3953 = vrot.slane %v3952, 4
    %v3954 = vadd.f32 %v3952, %v3953
    %v3955 = vrot.slane %v3954, 2
    %v3956 = vadd.f32 %v3954, %v3955
    %v3957 = vrot.slane %v3956, 1
    %v3958 = vadd.f32 %v3956, %v3957
    %v3959 = vsel %vm139, %v3853, 0.0
    %v3960 = vrot.slane %v3959, 4
    %v3961 = vadd.f32 %v3959, %v3960
    %v3962 = vrot.slane %v3961, 2
    %v3963 = vadd.f32 %v3961, %v3962
    %v3964 = vrot.slane %v3963, 1
    %v3965 = vadd.f32 %v3963, %v3964
    %v3966 = vld [vmem:[#allocation5 + $0x4] sm:$0x1]
    %v3967 = vld [vmem:[#allocation5 + $0x6] sm:$0x1]
    %v3968 = vlaneseq
    %v3969 = vshrl.u32 %v3968, 7
    %v3970 = vsub.s32 0, %v3969
    %v3971 = vrot.slane %v3966, %v3970
    %v3972 = vmul.f32 %v2801, %v3971
    %v3973 = vmul.f32 %v2802, %v3971
    %v3974 = vmul.f32 %v2803, %v3971
    %v3975 = vmul.f32 %v2804, %v3971
    %v3976 = vmul.f32 %v2805, %v3971
    %v3977 = vmul.f32 %v2806, %v3971
    %v3978 = vmul.f32 %v2807, %v3971
    %v3979 = vmul.f32 %v2808, %v3971
    %v3980 = vmul.f32 %v2809, %v3971
    %v3981 = vmul.f32 %v2810, %v3971
    %v3982 = vmul.f32 %v2811, %v3971
    %v3983 = vmul.f32 %v2812, %v3971
    %v3984 = vmul.f32 %v2813, %v3971
    %v3985 = vmul.f32 %v2814, %v3971
    %v3986 = vmul.f32 %v2815, %v3971
    %v3987 = vmul.f32 %v2816, %v3971
    %v4004 = vrot.slane %v3973, 7
    %v4005 = vsel %vm2856, %v4004, %v3972
    %v4006 = vrot.slane %v3974, 6
    %v4007 = vsel %vm2859, %v4006, %v4005
    %v4008 = vrot.slane %v3975, 5
    %v4009 = vsel %vm2862, %v4008, %v4007
    %v4010 = vrot.slane %v3976, 4
    %v4011 = vsel %vm2865, %v4010, %v4009
    %v4012 = vrot.slane %v3977, 3
    %v4013 = vsel %vm2868, %v4012, %v4011
    %v4014 = vrot.slane %v3978, 2
    %v4015 = vsel %vm2871, %v4014, %v4013
    %v4016 = vrot.slane %v3979, 1
    %v4017 = vsel %vm2874, %v4016, %v4015
    %v4018 = vrot.slane %v3981, 7
    %v4019 = vsel %vm2856, %v4018, %v3980
    %v4020 = vrot.slane %v3982, 6
    %v4021 = vsel %vm2859, %v4020, %v4019
    %v4022 = vrot.slane %v3983, 5
    %v4023 = vsel %vm2862, %v4022, %v4021
    %v4024 = vrot.slane %v3984, 4
    %v4025 = vsel %vm2865, %v4024, %v4023
    %v4026 = vrot.slane %v3985, 3
    %v4027 = vsel %vm2868, %v4026, %v4025
    %v4028 = vrot.slane %v3986, 2
    %v4029 = vsel %vm2871, %v4028, %v4027
    %v4030 = vrot.slane %v3987, 1
    %v4031 = vsel %vm2874, %v4030, %v4029
    %v4034 = vsel %vm139, %v4017, 0.0
    %4035 = vadd.xlane.f32.xlu0 %v4034
    %v4036 = vpop.xlane.xlu0 %4035
    %v4037 = vsel %vm139, %v4031, 0.0
    %4038 = vadd.xlane.f32.xlu0 %v4037
    %v4039 = vpop.xlane.xlu0 %4038
    %v4040 = vlaneseq
    %v4041 = vshrl.u32 %v4040, 7
    %v4042 = vsub.s32 0, %v4041
    %v4043 = vrot.slane %v3967, %v4042
    %v4044 = vmul.f32 %v2672, %v4043
    %v4045 = vmul.f32 %v2673, %v4043
    %v4046 = vmul.f32 %v2674, %v4043
    %v4047 = vmul.f32 %v2675, %v4043
    %v4048 = vmul.f32 %v2676, %v4043
    %v4049 = vmul.f32 %v2677, %v4043
    %v4050 = vmul.f32 %v2678, %v4043
    %v4051 = vmul.f32 %v2679, %v4043
    %v4052 = vmul.f32 %v2680, %v4043
    %v4053 = vmul.f32 %v2681, %v4043
    %v4054 = vmul.f32 %v2682, %v4043
    %v4055 = vmul.f32 %v2683, %v4043
    %v4056 = vmul.f32 %v2684, %v4043
    %v4057 = vmul.f32 %v2685, %v4043
    %v4058 = vmul.f32 %v2686, %v4043
    %v4059 = vmul.f32 %v2687, %v4043
    %v4060 = vsel %vm139, %v4044, 0.0
    %4061 = vadd.xlane.f32.xlu0 %v4060
    %v4062 = vpop.xlane.xlu0 %4061
    %v4063 = vsel %vm139, %v4045, 0.0
    %4064 = vadd.xlane.f32.xlu0 %v4063
    %v4065 = vpop.xlane.xlu0 %4064
    %v4066 = vsel %vm139, %v4046, 0.0
    %4067 = vadd.xlane.f32.xlu0 %v4066
    %v4068 = vpop.xlane.xlu0 %4067
    %v4069 = vsel %vm139, %v4047, 0.0
    %4070 = vadd.xlane.f32.xlu0 %v4069
    %v4071 = vpop.xlane.xlu0 %4070
    %v4072 = vsel %vm139, %v4048, 0.0
    %4073 = vadd.xlane.f32.xlu0 %v4072
    %v4074 = vpop.xlane.xlu0 %4073
    %v4075 = vsel %vm139, %v4049, 0.0
    %4076 = vadd.xlane.f32.xlu0 %v4075
    %v4077 = vpop.xlane.xlu0 %4076
    %v4078 = vsel %vm139, %v4050, 0.0
    %4079 = vadd.xlane.f32.xlu0 %v4078
    %v4080 = vpop.xlane.xlu0 %4079
    %v4081 = vsel %vm139, %v4051, 0.0
    %4082 = vadd.xlane.f32.xlu0 %v4081
    %v4083 = vpop.xlane.xlu0 %4082
    %v4084 = vsel %vm139, %v4052, 0.0
    %4085 = vadd.xlane.f32.xlu0 %v4084
    %v4086 = vpop.xlane.xlu0 %4085
    %v4087 = vsel %vm139, %v4053, 0.0
    %4088 = vadd.xlane.f32.xlu0 %v4087
    %v4089 = vpop.xlane.xlu0 %4088
    %v4090 = vsel %vm139, %v4054, 0.0
    %4091 = vadd.xlane.f32.xlu0 %v4090
    %v4092 = vpop.xlane.xlu0 %4091
    %v4093 = vsel %vm139, %v4055, 0.0
    %4094 = vadd.xlane.f32.xlu0 %v4093
    %v4095 = vpop.xlane.xlu0 %4094
    %v4096 = vsel %vm139, %v4056, 0.0
    %4097 = vadd.xlane.f32.xlu0 %v4096
    %v4098 = vpop.xlane.xlu0 %4097
    %v4099 = vsel %vm139, %v4057, 0.0
    %4100 = vadd.xlane.f32.xlu0 %v4099
    %v4101 = vpop.xlane.xlu0 %4100
    %v4102 = vsel %vm139, %v4058, 0.0
    %4103 = vadd.xlane.f32.xlu0 %v4102
    %v4104 = vpop.xlane.xlu0 %4103
    %v4105 = vsel %vm139, %v4059, 0.0
    %4106 = vadd.xlane.f32.xlu0 %v4105
    %v4107 = vpop.xlane.xlu0 %4106
    %s4109 = sor.u32 256, 8
    %4110 = vbcast.lane.b32.xlu0 %v2973, %s4109
    %v4111 = vpop.permute.xlu0 %4110
    %s4113 = sor.u32 256, 8
    %4114 = vbcast.lane.b32.xlu0 %v2980, %s4113
    %v4115 = vpop.permute.xlu0 %4114
    %s4117 = sor.u32 256, 8
    %4118 = vbcast.lane.b32.xlu0 %v2987, %s4117
    %v4119 = vpop.permute.xlu0 %4118
    %s4121 = sor.u32 256, 8
    %4122 = vbcast.lane.b32.xlu0 %v2994, %s4121
    %v4123 = vpop.permute.xlu0 %4122
    %s4125 = sor.u32 256, 8
    %4126 = vbcast.lane.b32.xlu0 %v3001, %s4125
    %v4127 = vpop.permute.xlu0 %4126
    %s4129 = sor.u32 256, 8
    %4130 = vbcast.lane.b32.xlu0 %v3008, %s4129
    %v4131 = vpop.permute.xlu0 %4130
    %s4133 = sor.u32 256, 8
    %4134 = vbcast.lane.b32.xlu0 %v3015, %s4133
    %v4135 = vpop.permute.xlu0 %4134
    %s4137 = sor.u32 256, 8
    %4138 = vbcast.lane.b32.xlu0 %v3022, %s4137
    %v4139 = vpop.permute.xlu0 %4138
    %s4141 = sor.u32 256, 8
    %4142 = vbcast.lane.b32.xlu0 %v3029, %s4141
    %v4143 = vpop.permute.xlu0 %4142
    %s4145 = sor.u32 256, 8
    %4146 = vbcast.lane.b32.xlu0 %v3036, %s4145
    %v4147 = vpop.permute.xlu0 %4146
    %s4149 = sor.u32 256, 8
    %4150 = vbcast.lane.b32.xlu0 %v3043, %s4149
    %v4151 = vpop.permute.xlu0 %4150
    %s4153 = sor.u32 256, 8
    %4154 = vbcast.lane.b32.xlu0 %v3050, %s4153
    %v4155 = vpop.permute.xlu0 %4154
    %s4157 = sor.u32 256, 8
    %4158 = vbcast.lane.b32.xlu0 %v3057, %s4157
    %v4159 = vpop.permute.xlu0 %4158
    %s4161 = sor.u32 256, 8
    %4162 = vbcast.lane.b32.xlu0 %v3064, %s4161
    %v4163 = vpop.permute.xlu0 %4162
    %s4165 = sor.u32 256, 8
    %4166 = vbcast.lane.b32.xlu0 %v3071, %s4165
    %v4167 = vpop.permute.xlu0 %4166
    %s4169 = sor.u32 256, 8
    %4170 = vbcast.lane.b32.xlu0 %v3078, %s4169
    %v4171 = vpop.permute.xlu0 %4170
    %v4188 = vadd.f32 %v4062, %v4111
    %v4189 = vadd.f32 %v4065, %v4115
    %v4190 = vadd.f32 %v4068, %v4119
    %v4191 = vadd.f32 %v4071, %v4123
    %v4192 = vadd.f32 %v4074, %v4127
    %v4193 = vadd.f32 %v4077, %v4131
    %v4194 = vadd.f32 %v4080, %v4135
    %v4195 = vadd.f32 %v4083, %v4139
    %v4196 = vadd.f32 %v4086, %v4143
    %v4197 = vadd.f32 %v4089, %v4147
    %v4198 = vadd.f32 %v4092, %v4151
    %v4199 = vadd.f32 %v4095, %v4155
    %v4200 = vadd.f32 %v4098, %v4159
    %v4201 = vadd.f32 %v4101, %v4163
    %v4202 = vadd.f32 %v4104, %v4167
    %v4203 = vadd.f32 %v4107, %v4171
    %v4206 = vlaneseq
    %v4207 = vshrl.u32 %v4206, 7
    %v4208 = vsub.s32 0, %v4207
    %v4209 = vrot.slane %v4036, %v4208
    %v4210 = vlaneseq
    %v4211 = vshrl.u32 %v4210, 7
    %v4212 = vsub.s32 1, %v4211
    %v4213 = vrot.slane %v4036, %v4212
    %v4214 = vlaneseq
    %v4215 = vshrl.u32 %v4214, 7
    %v4216 = vsub.s32 2, %v4215
    %v4217 = vrot.slane %v4036, %v4216
    %v4218 = vlaneseq
    %v4219 = vshrl.u32 %v4218, 7
    %v4220 = vsub.s32 3, %v4219
    %v4221 = vrot.slane %v4036, %v4220
    %v4222 = vlaneseq
    %v4223 = vshrl.u32 %v4222, 7
    %v4224 = vsub.s32 4, %v4223
    %v4225 = vrot.slane %v4036, %v4224
    %v4226 = vlaneseq
    %v4227 = vshrl.u32 %v4226, 7
    %v4228 = vsub.s32 5, %v4227
    %v4229 = vrot.slane %v4036, %v4228
    %v4230 = vlaneseq
    %v4231 = vshrl.u32 %v4230, 7
    %v4232 = vsub.s32 6, %v4231
    %v4233 = vrot.slane %v4036, %v4232
    %v4234 = vlaneseq
    %v4235 = vshrl.u32 %v4234, 7
    %v4236 = vsub.s32 7, %v4235
    %v4237 = vrot.slane %v4036, %v4236
    %v4238 = vlaneseq
    %v4239 = vshrl.u32 %v4238, 7
    %v4240 = vsub.s32 0, %v4239
    %v4241 = vrot.slane %v4039, %v4240
    %v4242 = vlaneseq
    %v4243 = vshrl.u32 %v4242, 7
    %v4244 = vsub.s32 1, %v4243
    %v4245 = vrot.slane %v4039, %v4244
    %v4246 = vlaneseq
    %v4247 = vshrl.u32 %v4246, 7
    %v4248 = vsub.s32 2, %v4247
    %v4249 = vrot.slane %v4039, %v4248
    %v4250 = vlaneseq
    %v4251 = vshrl.u32 %v4250, 7
    %v4252 = vsub.s32 3, %v4251
    %v4253 = vrot.slane %v4039, %v4252
    %v4254 = vlaneseq
    %v4255 = vshrl.u32 %v4254, 7
    %v4256 = vsub.s32 4, %v4255
    %v4257 = vrot.slane %v4039, %v4256
    %v4258 = vlaneseq
    %v4259 = vshrl.u32 %v4258, 7
    %v4260 = vsub.s32 5, %v4259
    %v4261 = vrot.slane %v4039, %v4260
    %v4262 = vlaneseq
    %v4263 = vshrl.u32 %v4262, 7
    %v4264 = vsub.s32 6, %v4263
    %v4265 = vrot.slane %v4039, %v4264
    %v4266 = vlaneseq
    %v4267 = vshrl.u32 %v4266, 7
    %v4268 = vsub.s32 7, %v4267
    %v4269 = vrot.slane %v4039, %v4268
    %v4286 = vadd.f32 %v4188, %v4209
    %v4287 = vadd.f32 %v4189, %v4213
    %v4288 = vadd.f32 %v4190, %v4217
    %v4289 = vadd.f32 %v4191, %v4221
    %v4290 = vadd.f32 %v4192, %v4225
    %v4291 = vadd.f32 %v4193, %v4229
    %v4292 = vadd.f32 %v4194, %v4233
    %v4293 = vadd.f32 %v4195, %v4237
    %v4294 = vadd.f32 %v4196, %v4241
    %v4295 = vadd.f32 %v4197, %v4245
    %v4296 = vadd.f32 %v4198, %v4249
    %v4297 = vadd.f32 %v4199, %v4253
    %v4298 = vadd.f32 %v4200, %v4257
    %v4299 = vadd.f32 %v4201, %v4261
    %v4300 = vadd.f32 %v4202, %v4265
    %v4301 = vadd.f32 %v4203, %v4269
    %4318 = vset.pattern.permute.xlu0 0
    %4319 = vperm.xlu0 %4318, %v4286
    %v4320 = vpop.permute.xlu0 %4319
    %4321 = vset.pattern.permute.xlu0 0
    %4322 = vperm.xlu0 %4321, %v4287
    %v4323 = vpop.permute.xlu0 %4322
    %4324 = vset.pattern.permute.xlu0 0
    %4325 = vperm.xlu0 %4324, %v4288
    %v4326 = vpop.permute.xlu0 %4325
    %4327 = vset.pattern.permute.xlu0 0
    %4328 = vperm.xlu0 %4327, %v4289
    %v4329 = vpop.permute.xlu0 %4328
    %4330 = vset.pattern.permute.xlu0 0
    %4331 = vperm.xlu0 %4330, %v4290
    %v4332 = vpop.permute.xlu0 %4331
    %4333 = vset.pattern.permute.xlu0 0
    %4334 = vperm.xlu0 %4333, %v4291
    %v4335 = vpop.permute.xlu0 %4334
    %4336 = vset.pattern.permute.xlu0 0
    %4337 = vperm.xlu0 %4336, %v4292
    %v4338 = vpop.permute.xlu0 %4337
    %4339 = vset.pattern.permute.xlu0 0
    %4340 = vperm.xlu0 %4339, %v4293
    %v4341 = vpop.permute.xlu0 %4340
    %4342 = vset.pattern.permute.xlu0 0
    %4343 = vperm.xlu0 %4342, %v4294
    %v4344 = vpop.permute.xlu0 %4343
    %4345 = vset.pattern.permute.xlu0 0
    %4346 = vperm.xlu0 %4345, %v4295
    %v4347 = vpop.permute.xlu0 %4346
    %4348 = vset.pattern.permute.xlu0 0
    %4349 = vperm.xlu0 %4348, %v4296
    %v4350 = vpop.permute.xlu0 %4349
    %4351 = vset.pattern.permute.xlu0 0
    %4352 = vperm.xlu0 %4351, %v4297
    %v4353 = vpop.permute.xlu0 %4352
    %4354 = vset.pattern.permute.xlu0 0
    %4355 = vperm.xlu0 %4354, %v4298
    %v4356 = vpop.permute.xlu0 %4355
    %4357 = vset.pattern.permute.xlu0 0
    %4358 = vperm.xlu0 %4357, %v4299
    %v4359 = vpop.permute.xlu0 %4358
    %4360 = vset.pattern.permute.xlu0 0
    %4361 = vperm.xlu0 %4360, %v4300
    %v4362 = vpop.permute.xlu0 %4361
    %4363 = vset.pattern.permute.xlu0 0
    %4364 = vperm.xlu0 %4363, %v4301
    %v4365 = vpop.permute.xlu0 %4364
    %v4366 = vlaneseq
    %v4367 = vshrl.u32 %v4366, 7
    %v4368 = vsub.s32 %v3277, %v4367
    %v4369 = vrot.slane %v4320, %v4368
    %v4370 = vlaneseq
    %v4371 = vshrl.u32 %v4370, 7
    %v4372 = vsub.s32 %v3277, %v4371
    %v4373 = vrot.slane %v4323, %v4372
    %v4374 = vlaneseq
    %v4375 = vshrl.u32 %v4374, 7
    %v4376 = vsub.s32 %v3277, %v4375
    %v4377 = vrot.slane %v4326, %v4376
    %v4378 = vlaneseq
    %v4379 = vshrl.u32 %v4378, 7
    %v4380 = vsub.s32 %v3277, %v4379
    %v4381 = vrot.slane %v4329, %v4380
    %v4382 = vlaneseq
    %v4383 = vshrl.u32 %v4382, 7
    %v4384 = vsub.s32 %v3277, %v4383
    %v4385 = vrot.slane %v4332, %v4384
    %v4386 = vlaneseq
    %v4387 = vshrl.u32 %v4386, 7
    %v4388 = vsub.s32 %v3277, %v4387
    %v4389 = vrot.slane %v4335, %v4388
    %v4390 = vlaneseq
    %v4391 = vshrl.u32 %v4390, 7
    %v4392 = vsub.s32 %v3277, %v4391
    %v4393 = vrot.slane %v4338, %v4392
    %v4394 = vlaneseq
    %v4395 = vshrl.u32 %v4394, 7
    %v4396 = vsub.s32 %v3277, %v4395
    %v4397 = vrot.slane %v4341, %v4396
    %v4398 = vlaneseq
    %v4399 = vshrl.u32 %v4398, 7
    %v4400 = vsub.s32 %v3277, %v4399
    %v4401 = vrot.slane %v4344, %v4400
    %v4402 = vlaneseq
    %v4403 = vshrl.u32 %v4402, 7
    %v4404 = vsub.s32 %v3277, %v4403
    %v4405 = vrot.slane %v4347, %v4404
    %v4406 = vlaneseq
    %v4407 = vshrl.u32 %v4406, 7
    %v4408 = vsub.s32 %v3277, %v4407
    %v4409 = vrot.slane %v4350, %v4408
    %v4410 = vlaneseq
    %v4411 = vshrl.u32 %v4410, 7
    %v4412 = vsub.s32 %v3277, %v4411
    %v4413 = vrot.slane %v4353, %v4412
    %v4414 = vlaneseq
    %v4415 = vshrl.u32 %v4414, 7
    %v4416 = vsub.s32 %v3277, %v4415
    %v4417 = vrot.slane %v4356, %v4416
    %v4418 = vlaneseq
    %v4419 = vshrl.u32 %v4418, 7
    %v4420 = vsub.s32 %v3277, %v4419
    %v4421 = vrot.slane %v4359, %v4420
    %v4422 = vlaneseq
    %v4423 = vshrl.u32 %v4422, 7
    %v4424 = vsub.s32 %v3277, %v4423
    %v4425 = vrot.slane %v4362, %v4424
    %v4426 = vlaneseq
    %v4427 = vshrl.u32 %v4426, 7
    %v4428 = vsub.s32 %v3277, %v4427
    %v4429 = vrot.slane %v4365, %v4428
    %v4430 = vsel %vm2856, %v4373, %v4369
    %v4431 = vsel %vm2859, %v4377, %v4430
    %v4432 = vsel %vm2862, %v4381, %v4431
    %v4433 = vsel %vm2865, %v4385, %v4432
    %v4434 = vsel %vm2868, %v4389, %v4433
    %v4435 = vsel %vm2871, %v4393, %v4434
    %v4436 = vsel %vm2874, %v4397, %v4435
    %v4437 = vsel %vm2856, %v4405, %v4401
    %v4438 = vsel %vm2859, %v4409, %v4437
    %v4439 = vsel %vm2862, %v4413, %v4438
    %v4440 = vsel %vm2865, %v4417, %v4439
    %v4441 = vsel %vm2868, %v4421, %v4440
    %v4442 = vsel %vm2871, %v4425, %v4441
    %v4443 = vsel %vm2874, %v4429, %v4442
    %v4446 = vsel %vm1199, %v4436, -inf
    %4447 = vmax.xlane.f32.xlu0 %v4446
    %v4448 = vpop.xlane.xlu0 %4447
    %v4449 = vsel %vm1199, %v4443, -inf
    %4450 = vmax.xlane.f32.xlu0 %v4449
    %v4451 = vpop.xlane.xlu0 %4450
    %v4454 = vlaneseq
    %v4455 = vshrl.u32 %v4454, 7
    %v4456 = vsub.s32 0, %v4455
    %v4457 = vrot.slane %v4448, %v4456
    %v4458 = vlaneseq
    %v4459 = vshrl.u32 %v4458, 7
    %v4460 = vsub.s32 1, %v4459
    %v4461 = vrot.slane %v4448, %v4460
    %v4462 = vlaneseq
    %v4463 = vshrl.u32 %v4462, 7
    %v4464 = vsub.s32 2, %v4463
    %v4465 = vrot.slane %v4448, %v4464
    %v4466 = vlaneseq
    %v4467 = vshrl.u32 %v4466, 7
    %v4468 = vsub.s32 3, %v4467
    %v4469 = vrot.slane %v4448, %v4468
    %v4470 = vlaneseq
    %v4471 = vshrl.u32 %v4470, 7
    %v4472 = vsub.s32 4, %v4471
    %v4473 = vrot.slane %v4448, %v4472
    %v4474 = vlaneseq
    %v4475 = vshrl.u32 %v4474, 7
    %v4476 = vsub.s32 5, %v4475
    %v4477 = vrot.slane %v4448, %v4476
    %v4478 = vlaneseq
    %v4479 = vshrl.u32 %v4478, 7
    %v4480 = vsub.s32 6, %v4479
    %v4481 = vrot.slane %v4448, %v4480
    %v4482 = vlaneseq
    %v4483 = vshrl.u32 %v4482, 7
    %v4484 = vsub.s32 7, %v4483
    %v4485 = vrot.slane %v4448, %v4484
    %v4486 = vlaneseq
    %v4487 = vshrl.u32 %v4486, 7
    %v4488 = vsub.s32 0, %v4487
    %v4489 = vrot.slane %v4451, %v4488
    %v4490 = vlaneseq
    %v4491 = vshrl.u32 %v4490, 7
    %v4492 = vsub.s32 1, %v4491
    %v4493 = vrot.slane %v4451, %v4492
    %v4494 = vlaneseq
    %v4495 = vshrl.u32 %v4494, 7
    %v4496 = vsub.s32 2, %v4495
    %v4497 = vrot.slane %v4451, %v4496
    %v4498 = vlaneseq
    %v4499 = vshrl.u32 %v4498, 7
    %v4500 = vsub.s32 3, %v4499
    %v4501 = vrot.slane %v4451, %v4500
    %v4502 = vlaneseq
    %v4503 = vshrl.u32 %v4502, 7
    %v4504 = vsub.s32 4, %v4503
    %v4505 = vrot.slane %v4451, %v4504
    %v4506 = vlaneseq
    %v4507 = vshrl.u32 %v4506, 7
    %v4508 = vsub.s32 5, %v4507
    %v4509 = vrot.slane %v4451, %v4508
    %v4510 = vlaneseq
    %v4511 = vshrl.u32 %v4510, 7
    %v4512 = vsub.s32 6, %v4511
    %v4513 = vrot.slane %v4451, %v4512
    %v4514 = vlaneseq
    %v4515 = vshrl.u32 %v4514, 7
    %v4516 = vsub.s32 7, %v4515
    %v4517 = vrot.slane %v4451, %v4516
    %v4534 = vsub.f32 %v4286, %v4457
    %v4535 = vsub.f32 %v4287, %v4461
    %v4536 = vsub.f32 %v4288, %v4465
    %v4537 = vsub.f32 %v4289, %v4469
    %v4538 = vsub.f32 %v4290, %v4473
    %v4539 = vsub.f32 %v4291, %v4477
    %v4540 = vsub.f32 %v4292, %v4481
    %v4541 = vsub.f32 %v4293, %v4485
    %v4542 = vsub.f32 %v4294, %v4489
    %v4543 = vsub.f32 %v4295, %v4493
    %v4544 = vsub.f32 %v4296, %v4497
    %v4545 = vsub.f32 %v4297, %v4501
    %v4546 = vsub.f32 %v4298, %v4505
    %v4547 = vsub.f32 %v4299, %v4509
    %v4548 = vsub.f32 %v4300, %v4513
    %v4549 = vsub.f32 %v4301, %v4517
    %v4550 = vmul.f32 %v4534, 1.442695
    %v4551 = vpow.pop %v4550
    %v4552 = vmul.f32 %v4535, 1.442695
    %v4553 = vpow.pop %v4552
    %v4554 = vmul.f32 %v4536, 1.442695
    %v4555 = vpow.pop %v4554
    %v4556 = vmul.f32 %v4537, 1.442695
    %v4557 = vpow.pop %v4556
    %v4558 = vmul.f32 %v4538, 1.442695
    %v4559 = vpow.pop %v4558
    %v4560 = vmul.f32 %v4539, 1.442695
    %v4561 = vpow.pop %v4560
    %v4562 = vmul.f32 %v4540, 1.442695
    %v4563 = vpow.pop %v4562
    %v4564 = vmul.f32 %v4541, 1.442695
    %v4565 = vpow.pop %v4564
    %v4566 = vmul.f32 %v4542, 1.442695
    %v4567 = vpow.pop %v4566
    %v4568 = vmul.f32 %v4543, 1.442695
    %v4569 = vpow.pop %v4568
    %v4570 = vmul.f32 %v4544, 1.442695
    %v4571 = vpow.pop %v4570
    %v4572 = vmul.f32 %v4545, 1.442695
    %v4573 = vpow.pop %v4572
    %v4574 = vmul.f32 %v4546, 1.442695
    %v4575 = vpow.pop %v4574
    %v4576 = vmul.f32 %v4547, 1.442695
    %v4577 = vpow.pop %v4576
    %v4578 = vmul.f32 %v4548, 1.442695
    %v4579 = vpow.pop %v4578
    %v4580 = vmul.f32 %v4549, 1.442695
    %v4581 = vpow.pop %v4580
    %4598 = vset.pattern.permute.xlu0 0
    %4599 = vperm.xlu0 %4598, %v4551
    %v4600 = vpop.permute.xlu0 %4599
    %4601 = vset.pattern.permute.xlu0 0
    %4602 = vperm.xlu0 %4601, %v4553
    %v4603 = vpop.permute.xlu0 %4602
    %4604 = vset.pattern.permute.xlu0 0
    %4605 = vperm.xlu0 %4604, %v4555
    %v4606 = vpop.permute.xlu0 %4605
    %4607 = vset.pattern.permute.xlu0 0
    %4608 = vperm.xlu0 %4607, %v4557
    %v4609 = vpop.permute.xlu0 %4608
    %4610 = vset.pattern.permute.xlu0 0
    %4611 = vperm.xlu0 %4610, %v4559
    %v4612 = vpop.permute.xlu0 %4611
    %4613 = vset.pattern.permute.xlu0 0
    %4614 = vperm.xlu0 %4613, %v4561
    %v4615 = vpop.permute.xlu0 %4614
    %4616 = vset.pattern.permute.xlu0 0
    %4617 = vperm.xlu0 %4616, %v4563
    %v4618 = vpop.permute.xlu0 %4617
    %4619 = vset.pattern.permute.xlu0 0
    %4620 = vperm.xlu0 %4619, %v4565
    %v4621 = vpop.permute.xlu0 %4620
    %4622 = vset.pattern.permute.xlu0 0
    %4623 = vperm.xlu0 %4622, %v4567
    %v4624 = vpop.permute.xlu0 %4623
    %4625 = vset.pattern.permute.xlu0 0
    %4626 = vperm.xlu0 %4625, %v4569
    %v4627 = vpop.permute.xlu0 %4626
    %4628 = vset.pattern.permute.xlu0 0
    %4629 = vperm.xlu0 %4628, %v4571
    %v4630 = vpop.permute.xlu0 %4629
    %4631 = vset.pattern.permute.xlu0 0
    %4632 = vperm.xlu0 %4631, %v4573
    %v4633 = vpop.permute.xlu0 %4632
    %4634 = vset.pattern.permute.xlu0 0
    %4635 = vperm.xlu0 %4634, %v4575
    %v4636 = vpop.permute.xlu0 %4635
    %4637 = vset.pattern.permute.xlu0 0
    %4638 = vperm.xlu0 %4637, %v4577
    %v4639 = vpop.permute.xlu0 %4638
    %4640 = vset.pattern.permute.xlu0 0
    %4641 = vperm.xlu0 %4640, %v4579
    %v4642 = vpop.permute.xlu0 %4641
    %4643 = vset.pattern.permute.xlu0 0
    %4644 = vperm.xlu0 %4643, %v4581
    %v4645 = vpop.permute.xlu0 %4644
    %v4646 = vlaneseq
    %v4647 = vshrl.u32 %v4646, 7
    %v4648 = vsub.s32 %v3277, %v4647
    %v4649 = vrot.slane %v4600, %v4648
    %v4650 = vlaneseq
    %v4651 = vshrl.u32 %v4650, 7
    %v4652 = vsub.s32 %v3277, %v4651
    %v4653 = vrot.slane %v4603, %v4652
    %v4654 = vlaneseq
    %v4655 = vshrl.u32 %v4654, 7
    %v4656 = vsub.s32 %v3277, %v4655
    %v4657 = vrot.slane %v4606, %v4656
    %v4658 = vlaneseq
    %v4659 = vshrl.u32 %v4658, 7
    %v4660 = vsub.s32 %v3277, %v4659
    %v4661 = vrot.slane %v4609, %v4660
    %v4662 = vlaneseq
    %v4663 = vshrl.u32 %v4662, 7
    %v4664 = vsub.s32 %v3277, %v4663
    %v4665 = vrot.slane %v4612, %v4664
    %v4666 = vlaneseq
    %v4667 = vshrl.u32 %v4666, 7
    %v4668 = vsub.s32 %v3277, %v4667
    %v4669 = vrot.slane %v4615, %v4668
    %v4670 = vlaneseq
    %v4671 = vshrl.u32 %v4670, 7
    %v4672 = vsub.s32 %v3277, %v4671
    %v4673 = vrot.slane %v4618, %v4672
    %v4674 = vlaneseq
    %v4675 = vshrl.u32 %v4674, 7
    %v4676 = vsub.s32 %v3277, %v4675
    %v4677 = vrot.slane %v4621, %v4676
    %v4678 = vlaneseq
    %v4679 = vshrl.u32 %v4678, 7
    %v4680 = vsub.s32 %v3277, %v4679
    %v4681 = vrot.slane %v4624, %v4680
    %v4682 = vlaneseq
    %v4683 = vshrl.u32 %v4682, 7
    %v4684 = vsub.s32 %v3277, %v4683
    %v4685 = vrot.slane %v4627, %v4684
    %v4686 = vlaneseq
    %v4687 = vshrl.u32 %v4686, 7
    %v4688 = vsub.s32 %v3277, %v4687
    %v4689 = vrot.slane %v4630, %v4688
    %v4690 = vlaneseq
    %v4691 = vshrl.u32 %v4690, 7
    %v4692 = vsub.s32 %v3277, %v4691
    %v4693 = vrot.slane %v4633, %v4692
    %v4694 = vlaneseq
    %v4695 = vshrl.u32 %v4694, 7
    %v4696 = vsub.s32 %v3277, %v4695
    %v4697 = vrot.slane %v4636, %v4696
    %v4698 = vlaneseq
    %v4699 = vshrl.u32 %v4698, 7
    %v4700 = vsub.s32 %v3277, %v4699
    %v4701 = vrot.slane %v4639, %v4700
    %v4702 = vlaneseq
    %v4703 = vshrl.u32 %v4702, 7
    %v4704 = vsub.s32 %v3277, %v4703
    %v4705 = vrot.slane %v4642, %v4704
    %v4706 = vlaneseq
    %v4707 = vshrl.u32 %v4706, 7
    %v4708 = vsub.s32 %v3277, %v4707
    %v4709 = vrot.slane %v4645, %v4708
    %v4710 = vsel %vm2856, %v4653, %v4649
    %v4711 = vsel %vm2859, %v4657, %v4710
    %v4712 = vsel %vm2862, %v4661, %v4711
    %v4713 = vsel %vm2865, %v4665, %v4712
    %v4714 = vsel %vm2868, %v4669, %v4713
    %v4715 = vsel %vm2871, %v4673, %v4714
    %v4716 = vsel %vm2874, %v4677, %v4715
    %v4717 = vsel %vm2856, %v4685, %v4681
    %v4718 = vsel %vm2859, %v4689, %v4717
    %v4719 = vsel %vm2862, %v4693, %v4718
    %v4720 = vsel %vm2865, %v4697, %v4719
    %v4721 = vsel %vm2868, %v4701, %v4720
    %v4722 = vsel %vm2871, %v4705, %v4721
    %v4723 = vsel %vm2874, %v4709, %v4722
    %v4726 = vsel %vm1199, %v4716, 0.0
    %4727 = vadd.xlane.f32.xlu0 %v4726
    %v4728 = vpop.xlane.xlu0 %4727
    %v4729 = vsel %vm1199, %v4723, 0.0
    %4730 = vadd.xlane.f32.xlu0 %v4729
    %v4731 = vpop.xlane.xlu0 %4730
    %v4734 = vlaneseq
    %v4735 = vshrl.u32 %v4734, 7
    %v4736 = vsub.s32 0, %v4735
    %v4737 = vrot.slane %v4728, %v4736
    %v4738 = vlaneseq
    %v4739 = vshrl.u32 %v4738, 7
    %v4740 = vsub.s32 1, %v4739
    %v4741 = vrot.slane %v4728, %v4740
    %v4742 = vlaneseq
    %v4743 = vshrl.u32 %v4742, 7
    %v4744 = vsub.s32 2, %v4743
    %v4745 = vrot.slane %v4728, %v4744
    %v4746 = vlaneseq
    %v4747 = vshrl.u32 %v4746, 7
    %v4748 = vsub.s32 3, %v4747
    %v4749 = vrot.slane %v4728, %v4748
    %v4750 = vlaneseq
    %v4751 = vshrl.u32 %v4750, 7
    %v4752 = vsub.s32 4, %v4751
    %v4753 = vrot.slane %v4728, %v4752
    %v4754 = vlaneseq
    %v4755 = vshrl.u32 %v4754, 7
    %v4756 = vsub.s32 5, %v4755
    %v4757 = vrot.slane %v4728, %v4756
    %v4758 = vlaneseq
    %v4759 = vshrl.u32 %v4758, 7
    %v4760 = vsub.s32 6, %v4759
    %v4761 = vrot.slane %v4728, %v4760
    %v4762 = vlaneseq
    %v4763 = vshrl.u32 %v4762, 7
    %v4764 = vsub.s32 7, %v4763
    %v4765 = vrot.slane %v4728, %v4764
    %v4766 = vlaneseq
    %v4767 = vshrl.u32 %v4766, 7
    %v4768 = vsub.s32 0, %v4767
    %v4769 = vrot.slane %v4731, %v4768
    %v4770 = vlaneseq
    %v4771 = vshrl.u32 %v4770, 7
    %v4772 = vsub.s32 1, %v4771
    %v4773 = vrot.slane %v4731, %v4772
    %v4774 = vlaneseq
    %v4775 = vshrl.u32 %v4774, 7
    %v4776 = vsub.s32 2, %v4775
    %v4777 = vrot.slane %v4731, %v4776
    %v4778 = vlaneseq
    %v4779 = vshrl.u32 %v4778, 7
    %v4780 = vsub.s32 3, %v4779
    %v4781 = vrot.slane %v4731, %v4780
    %v4782 = vlaneseq
    %v4783 = vshrl.u32 %v4782, 7
    %v4784 = vsub.s32 4, %v4783
    %v4785 = vrot.slane %v4731, %v4784
    %v4786 = vlaneseq
    %v4787 = vshrl.u32 %v4786, 7
    %v4788 = vsub.s32 5, %v4787
    %v4789 = vrot.slane %v4731, %v4788
    %v4790 = vlaneseq
    %v4791 = vshrl.u32 %v4790, 7
    %v4792 = vsub.s32 6, %v4791
    %v4793 = vrot.slane %v4731, %v4792
    %v4794 = vlaneseq
    %v4795 = vshrl.u32 %v4794, 7
    %v4796 = vsub.s32 7, %v4795
    %v4797 = vrot.slane %v4731, %v4796
    %v4814 = vrcp.pop %v4737
    %v4815 = vmul.f32 %v4551, %v4814
    %v4816 = vrcp.pop %v4741
    %v4817 = vmul.f32 %v4553, %v4816
    %v4818 = vrcp.pop %v4745
    %v4819 = vmul.f32 %v4555, %v4818
    %v4820 = vrcp.pop %v4749
    %v4821 = vmul.f32 %v4557, %v4820
    %v4822 = vrcp.pop %v4753
    %v4823 = vmul.f32 %v4559, %v4822
    %v4824 = vrcp.pop %v4757
    %v4825 = vmul.f32 %v4561, %v4824
    %v4826 = vrcp.pop %v4761
    %v4827 = vmul.f32 %v4563, %v4826
    %v4828 = vrcp.pop %v4765
    %v4829 = vmul.f32 %v4565, %v4828
    %v4830 = vrcp.pop %v4769
    %v4831 = vmul.f32 %v4567, %v4830
    %v4832 = vrcp.pop %v4773
    %v4833 = vmul.f32 %v4569, %v4832
    %v4834 = vrcp.pop %v4777
    %v4835 = vmul.f32 %v4571, %v4834
    %v4836 = vrcp.pop %v4781
    %v4837 = vmul.f32 %v4573, %v4836
    %v4838 = vrcp.pop %v4785
    %v4839 = vmul.f32 %v4575, %v4838
    %v4840 = vrcp.pop %v4789
    %v4841 = vmul.f32 %v4577, %v4840
    %v4842 = vrcp.pop %v4793
    %v4843 = vmul.f32 %v4579, %v4842
    %v4844 = vrcp.pop %v4797
    %v4845 = vmul.f32 %v4581, %v4844
    %4847 = vset.pattern.permute.xlu0 0
    %4848 = vperm.xlu0 %4847, %v4815
    %v4849 = vpop.permute.xlu0 %4848
    %4852 = vset.pattern.permute.xlu0 0
    %4853 = vperm.xlu0 %4852, %v4817
    %v4854 = vpop.permute.xlu0 %4853
    %4857 = vset.pattern.permute.xlu0 0
    %4858 = vperm.xlu0 %4857, %v4819
    %v4859 = vpop.permute.xlu0 %4858
    %4862 = vset.pattern.permute.xlu0 0
    %4863 = vperm.xlu0 %4862, %v4821
    %v4864 = vpop.permute.xlu0 %4863
    %4867 = vset.pattern.permute.xlu0 0
    %4868 = vperm.xlu0 %4867, %v4823
    %v4869 = vpop.permute.xlu0 %4868
    %4872 = vset.pattern.permute.xlu0 0
    %4873 = vperm.xlu0 %4872, %v4825
    %v4874 = vpop.permute.xlu0 %4873
    %4877 = vset.pattern.permute.xlu0 0
    %4878 = vperm.xlu0 %4877, %v4827
    %v4879 = vpop.permute.xlu0 %4878
    %4882 = vset.pattern.permute.xlu0 0
    %4883 = vperm.xlu0 %4882, %v4829
    %v4884 = vpop.permute.xlu0 %4883
    %4887 = vset.pattern.permute.xlu0 0
    %4888 = vperm.xlu0 %4887, %v4831
    %v4889 = vpop.permute.xlu0 %4888
    %4892 = vset.pattern.permute.xlu0 0
    %4893 = vperm.xlu0 %4892, %v4833
    %v4894 = vpop.permute.xlu0 %4893
    %4897 = vset.pattern.permute.xlu0 0
    %4898 = vperm.xlu0 %4897, %v4835
    %v4899 = vpop.permute.xlu0 %4898
    %4902 = vset.pattern.permute.xlu0 0
    %4903 = vperm.xlu0 %4902, %v4837
    %v4904 = vpop.permute.xlu0 %4903
    %4907 = vset.pattern.permute.xlu0 0
    %4908 = vperm.xlu0 %4907, %v4839
    %v4909 = vpop.permute.xlu0 %4908
    %4912 = vset.pattern.permute.xlu0 0
    %4913 = vperm.xlu0 %4912, %v4841
    %v4914 = vpop.permute.xlu0 %4913
    %4917 = vset.pattern.permute.xlu0 0
    %4918 = vperm.xlu0 %4917, %v4843
    %v4919 = vpop.permute.xlu0 %4918
    %4922 = vset.pattern.permute.xlu0 0
    %4923 = vperm.xlu0 %4922, %v4845
    %v4924 = vpop.permute.xlu0 %4923
    %v4926 = vmul.f32 %v4849, %v2672
    %v4927 = vmul.f32 %v4854, %v2673
    %v4928 = vmul.f32 %v4859, %v2674
    %v4929 = vmul.f32 %v4864, %v2675
    %v4930 = vmul.f32 %v4869, %v2676
    %v4931 = vmul.f32 %v4874, %v2677
    %v4932 = vmul.f32 %v4879, %v2678
    %v4933 = vmul.f32 %v4884, %v2679
    %v4934 = vmul.f32 %v4889, %v2680
    %v4935 = vmul.f32 %v4894, %v2681
    %v4936 = vmul.f32 %v4899, %v2682
    %v4937 = vmul.f32 %v4904, %v2683
    %v4938 = vmul.f32 %v4909, %v2684
    %v4939 = vmul.f32 %v4914, %v2685
    %v4940 = vmul.f32 %v4919, %v2686
    %v4941 = vmul.f32 %v4924, %v2687
    %v4942 = vsel %vm139, %v4926, 0.0
    %v4943 = vrot.slane %v4942, 4
    %v4944 = vadd.f32 %v4942, %v4943
    %v4945 = vrot.slane %v4944, 2
    %v4946 = vadd.f32 %v4944, %v4945
    %v4947 = vrot.slane %v4946, 1
    %v4948 = vadd.f32 %v4946, %v4947
    %v4949 = vsel %vm139, %v4927, 0.0
    %v4950 = vrot.slane %v4949, 4
    %v4951 = vadd.f32 %v4949, %v4950
    %v4952 = vrot.slane %v4951, 2
    %v4953 = vadd.f32 %v4951, %v4952
    %v4954 = vrot.slane %v4953, 1
    %v4955 = vadd.f32 %v4953, %v4954
    %v4956 = vsel %vm139, %v4928, 0.0
    %v4957 = vrot.slane %v4956, 4
    %v4958 = vadd.f32 %v4956, %v4957
    %v4959 = vrot.slane %v4958, 2
    %v4960 = vadd.f32 %v4958, %v4959
    %v4961 = vrot.slane %v4960, 1
    %v4962 = vadd.f32 %v4960, %v4961
    %v4963 = vsel %vm139, %v4929, 0.0
    %v4964 = vrot.slane %v4963, 4
    %v4965 = vadd.f32 %v4963, %v4964
    %v4966 = vrot.slane %v4965, 2
    %v4967 = vadd.f32 %v4965, %v4966
    %v4968 = vrot.slane %v4967, 1
    %v4969 = vadd.f32 %v4967, %v4968
    %v4970 = vsel %vm139, %v4930, 0.0
    %v4971 = vrot.slane %v4970, 4
    %v4972 = vadd.f32 %v4970, %v4971
    %v4973 = vrot.slane %v4972, 2
    %v4974 = vadd.f32 %v4972, %v4973
    %v4975 = vrot.slane %v4974, 1
    %v4976 = vadd.f32 %v4974, %v4975
    %v4977 = vsel %vm139, %v4931, 0.0
    %v4978 = vrot.slane %v4977, 4
    %v4979 = vadd.f32 %v4977, %v4978
    %v4980 = vrot.slane %v4979, 2
    %v4981 = vadd.f32 %v4979, %v4980
    %v4982 = vrot.slane %v4981, 1
    %v4983 = vadd.f32 %v4981, %v4982
    %v4984 = vsel %vm139, %v4932, 0.0
    %v4985 = vrot.slane %v4984, 4
    %v4986 = vadd.f32 %v4984, %v4985
    %v4987 = vrot.slane %v4986, 2
    %v4988 = vadd.f32 %v4986, %v4987
    %v4989 = vrot.slane %v4988, 1
    %v4990 = vadd.f32 %v4988, %v4989
    %v4991 = vsel %vm139, %v4933, 0.0
    %v4992 = vrot.slane %v4991, 4
    %v4993 = vadd.f32 %v4991, %v4992
    %v4994 = vrot.slane %v4993, 2
    %v4995 = vadd.f32 %v4993, %v4994
    %v4996 = vrot.slane %v4995, 1
    %v4997 = vadd.f32 %v4995, %v4996
    %v4998 = vsel %vm139, %v4934, 0.0
    %v4999 = vrot.slane %v4998, 4
    %v5000 = vadd.f32 %v4998, %v4999
    %v5001 = vrot.slane %v5000, 2
    %v5002 = vadd.f32 %v5000, %v5001
    %v5003 = vrot.slane %v5002, 1
    %v5004 = vadd.f32 %v5002, %v5003
    %v5005 = vsel %vm139, %v4935, 0.0
    %v5006 = vrot.slane %v5005, 4
    %v5007 = vadd.f32 %v5005, %v5006
    %v5008 = vrot.slane %v5007, 2
    %v5009 = vadd.f32 %v5007, %v5008
    %v5010 = vrot.slane %v5009, 1
    %v5011 = vadd.f32 %v5009, %v5010
    %v5012 = vsel %vm139, %v4936, 0.0
    %v5013 = vrot.slane %v5012, 4
    %v5014 = vadd.f32 %v5012, %v5013
    %v5015 = vrot.slane %v5014, 2
    %v5016 = vadd.f32 %v5014, %v5015
    %v5017 = vrot.slane %v5016, 1
    %v5018 = vadd.f32 %v5016, %v5017
    %v5019 = vsel %vm139, %v4937, 0.0
    %v5020 = vrot.slane %v5019, 4
    %v5021 = vadd.f32 %v5019, %v5020
    %v5022 = vrot.slane %v5021, 2
    %v5023 = vadd.f32 %v5021, %v5022
    %v5024 = vrot.slane %v5023, 1
    %v5025 = vadd.f32 %v5023, %v5024
    %v5026 = vsel %vm139, %v4938, 0.0
    %v5027 = vrot.slane %v5026, 4
    %v5028 = vadd.f32 %v5026, %v5027
    %v5029 = vrot.slane %v5028, 2
    %v5030 = vadd.f32 %v5028, %v5029
    %v5031 = vrot.slane %v5030, 1
    %v5032 = vadd.f32 %v5030, %v5031
    %v5033 = vsel %vm139, %v4939, 0.0
    %v5034 = vrot.slane %v5033, 4
    %v5035 = vadd.f32 %v5033, %v5034
    %v5036 = vrot.slane %v5035, 2
    %v5037 = vadd.f32 %v5035, %v5036
    %v5038 = vrot.slane %v5037, 1
    %v5039 = vadd.f32 %v5037, %v5038
    %v5040 = vsel %vm139, %v4940, 0.0
    %v5041 = vrot.slane %v5040, 4
    %v5042 = vadd.f32 %v5040, %v5041
    %v5043 = vrot.slane %v5042, 2
    %v5044 = vadd.f32 %v5042, %v5043
    %v5045 = vrot.slane %v5044, 1
    %v5046 = vadd.f32 %v5044, %v5045
    %v5047 = vsel %vm139, %v4941, 0.0
    %v5048 = vrot.slane %v5047, 4
    %v5049 = vadd.f32 %v5047, %v5048
    %v5050 = vrot.slane %v5049, 2
    %v5051 = vadd.f32 %v5049, %v5050
    %v5052 = vrot.slane %v5051, 1
    %v5053 = vadd.f32 %v5051, %v5052
    %v5070 = vsel %vm2856, %v3867, %v3860
    %v5071 = vsel %vm2859, %v3874, %v5070
    %v5072 = vsel %vm2862, %v3881, %v5071
    %v5073 = vsel %vm2865, %v3888, %v5072
    %v5074 = vsel %vm2868, %v3895, %v5073
    %v5075 = vsel %vm2871, %v3902, %v5074
    %v5076 = vsel %vm2874, %v3909, %v5075
    %v5077 = vsel %vm2856, %v3923, %v3916
    %v5078 = vsel %vm2859, %v3930, %v5077
    %v5079 = vsel %vm2862, %v3937, %v5078
    %v5080 = vsel %vm2865, %v3944, %v5079
    %v5081 = vsel %vm2868, %v3951, %v5080
    %v5082 = vsel %vm2871, %v3958, %v5081
    %v5083 = vsel %vm2874, %v3965, %v5082
    %v5102 = vsel %vm2856, %v4955, %v4948
    %v5103 = vsel %vm2859, %v4962, %v5102
    %v5104 = vsel %vm2862, %v4969, %v5103
    %v5105 = vsel %vm2865, %v4976, %v5104
    %v5106 = vsel %vm2868, %v4983, %v5105
    %v5107 = vsel %vm2871, %v4990, %v5106
    %v5108 = vsel %vm2874, %v4997, %v5107
    %v5109 = vsel %vm2856, %v5011, %v5004
    %v5110 = vsel %vm2859, %v5018, %v5109
    %v5111 = vsel %vm2862, %v5025, %v5110
    %v5112 = vsel %vm2865, %v5032, %v5111
    %v5113 = vsel %vm2868, %v5039, %v5112
    %v5114 = vsel %vm2871, %v5046, %v5113
    %v5115 = vsel %vm2874, %v5053, %v5114
    %5116 = vrot.lane.b32.xlu0 %v5108, 32
    %v5117 = vpop.permute.xlu0 %5116
    %5118 = vrot.lane.b32.xlu0 %v5115, 32
    %v5119 = vpop.permute.xlu0 %5118
    %v5122 = vsel %vm139, %v5076, %v5117
    %v5123 = vsel %vm139, %v5083, %v5119
    %v5124 = vld [vmem:[%s7] sm:$0xff]
    %v5125 = vld [vmem:[%s7 + $0x8] sm:$0xff]
    %v5126 = vld [vmem:[%s7 + $0x10] sm:$0xff]
    %v5127 = vld [vmem:[%s7 + $0x18] sm:$0xff]
    %v5128 = vld [vmem:[%s7 + $0x20] sm:$0xff]
    %v5129 = vld [vmem:[%s7 + $0x28] sm:$0xff]
    %v5130 = vld [vmem:[%s7 + $0x30] sm:$0xff]
    %v5131 = vld [vmem:[%s7 + $0x38] sm:$0xff]
    %v5132 = vld [vmem:[%s8] sm:$0x1]
    %v5134 = vlaneseq
    %v5135 = vshrl.u32 %v5134, 7
    %v5136 = vsub.s32 0, %v5135
    %v5137 = vrot.slane %v5132, %v5136
    %vm5139 = vcmask 523264
    %v5141 = vsel %vm5139, %v5122, 0
    %v5144 = vsel %vm5139, %v5123, 0
    %5146 = vmatprep.subr.mxu0 0.0
    %5147 = vmatpush1.msra.mxu0 0.0
    %5148 = vmatprep.subr.mxu0 0.0
    %5149 = vmatpush1.msra.mxu0 0.0
    %5150 = vmatprep.subr.mxu0 0.0
    %5151 = vmatpush1.msra.mxu0 0.0
    %5152 = vmatprep.subr.mxu0 0.0
    %5153 = vmatpush1.msra.mxu0 0.0
    %5154 = vmatprep.subr.mxu0 0.0
    %5155 = vmatpush1.msra.mxu0 0.0
    %5156 = vmatprep.subr.mxu0 0.0
    %5157 = vmatpush1.msra.mxu0 0.0
    %5158 = vmatprep.subr.mxu0 0.0
    %5159 = vmatpush1.msra.mxu0 0.0
    %5160 = vmatprep.subr.mxu0 0.0
    %5161 = vmatpush1.msra.mxu0 0.0
    %5162 = vmatprep.subr.mxu0 0.0
    %5163 = vmatpush1.msra.mxu0 %v5131
    %5164 = vmatprep.subr.mxu0 0.0
    %5165 = vmatpush1.msra.mxu0 %v5130
    %5166 = vmatprep.subr.mxu0 0.0
    %5167 = vmatpush1.msra.mxu0 %v5129
    %5168 = vmatprep.subr.mxu0 0.0
    %5169 = vmatpush1.msra.mxu0 %v5128
    %5170 = vmatprep.subr.mxu0 0.0
    %5171 = vmatpush1.msra.mxu0 %v5127
    %5172 = vmatprep.subr.mxu0 0.0
    %5173 = vmatpush1.msra.mxu0 %v5126
    %5174 = vmatprep.subr.mxu0 0.0
    %5175 = vmatpush1.msra.mxu0 %v5125
    %5176 = vmatprep.subr.mxu0 0.0
    %5177 = vmatpush1.msra.mxu0 %v5124
    %5178 = vmatprep.subr.mxu0 0.0
    %5179 = vmatpush2.msra.mxu0 0.0
    %5180 = vmatprep.subr.mxu0 0.0
    %5181 = vmatpush2.msra.mxu0 0.0
    %5182 = vmatprep.subr.mxu0 0.0
    %5183 = vmatpush2.msra.mxu0 0.0
    %5184 = vmatprep.subr.mxu0 0.0
    %5185 = vmatpush2.msra.mxu0 0.0
    %5186 = vmatprep.subr.mxu0 0.0
    %5187 = vmatpush2.msra.mxu0 0.0
    %5188 = vmatprep.subr.mxu0 0.0
    %5189 = vmatpush2.msra.mxu0 0.0
    %5190 = vmatprep.subr.mxu0 0.0
    %5191 = vmatpush2.msra.mxu0 0.0
    %5192 = vmatprep.subr.mxu0 0.0
    %5193 = vmatpush2.msra.mxu0 0.0
    %5194 = vmatprep.subr.mxu0 0.0
    %5195 = vmatpush2.msra.mxu0 0.0
    %5196 = vmatprep.subr.mxu0 0.0
    %5197 = vmatpush2.msra.mxu0 0.0
    %5198 = vmatprep.subr.mxu0 0.0
    %5199 = vmatpush2.msra.mxu0 0.0
    %5200 = vmatprep.subr.mxu0 0.0
    %5201 = vmatpush2.msra.mxu0 0.0
    %5202 = vmatprep.subr.mxu0 0.0
    %5203 = vmatpush2.msra.mxu0 0.0
    %5204 = vmatprep.subr.mxu0 0.0
    %5205 = vmatpush2.msra.mxu0 0.0
    %5206 = vmatprep.subr.mxu0 0.0
    %5207 = vmatpush2.msra.mxu0 0.0
    %5208 = vmatprep.subr.mxu0 0.0
    %5209 = vmatpush2.msra.mxu0 0.0
    %5210 = vmatprep.mubr.f32.mxu0 0.0
    %5211 = vmatmul.mubr.f32.gmra.mxu0 %v5141
    %v5212 = vpop.f32.mrf.mxu0
    %v5213 = vadd.f32 %v5137, %v5212
    %v5214 = vpop.f32.mrf.mxu0
    %5215 = vmatprep.mubr.f32.mxu0 0.0
    %5216 = vmatmul.mubr.f32.gmra.mxu0 %v5144
    %v5217 = vpop.f32.mrf.mxu0
    %v5218 = vadd.f32 %v5137, %v5217
    %v5219 = vpop.f32.mrf.mxu0
    %5220 = vdwg.mxu0
    %v5237 = vsel %vm2856, %v666, %v659
    %v5238 = vsel %vm2859, %v673, %v5237
    %v5239 = vsel %vm2862, %v680, %v5238
    %v5240 = vsel %vm2865, %v687, %v5239
    %v5241 = vsel %vm2868, %v694, %v5240
    %v5242 = vsel %vm2871, %v701, %v5241
    %v5243 = vsel %vm2874, %v708, %v5242
    %v5244 = vsel %vm2856, %v722, %v715
    %v5245 = vsel %vm2859, %v729, %v5244
    %v5246 = vsel %vm2862, %v736, %v5245
    %v5247 = vsel %vm2865, %v743, %v5246
    %v5248 = vsel %vm2868, %v750, %v5247
    %v5249 = vsel %vm2871, %v757, %v5248
    %v5250 = vsel %vm2874, %v764, %v5249
    %5251 = vrot.lane.b32.xlu0 %v5243, 16
    %v5252 = vpop.permute.xlu0 %5251
    %5253 = vrot.lane.b32.xlu0 %v5250, 16
    %v5254 = vpop.permute.xlu0 %5253
    %v5257 = vadd.s32 %v3277, 4294967248
    %v5258 = vlaneseq
    %v5259 = vshrl.u32 %v5258, 7
    %v5260 = vsub.s32 %v5257, %v5259
    %v5261 = vrot.slane %v3761, %v5260
    %v5262 = vlaneseq
    %v5263 = vshrl.u32 %v5262, 7
    %v5264 = vsub.s32 %v5257, %v5263
    %v5265 = vrot.slane %v3766, %v5264
    %v5266 = vlaneseq
    %v5267 = vshrl.u32 %v5266, 7
    %v5268 = vsub.s32 %v5257, %v5267
    %v5269 = vrot.slane %v3771, %v5268
    %v5270 = vlaneseq
    %v5271 = vshrl.u32 %v5270, 7
    %v5272 = vsub.s32 %v5257, %v5271
    %v5273 = vrot.slane %v3776, %v5272
    %v5274 = vlaneseq
    %v5275 = vshrl.u32 %v5274, 7
    %v5276 = vsub.s32 %v5257, %v5275
    %v5277 = vrot.slane %v3781, %v5276
    %v5278 = vlaneseq
    %v5279 = vshrl.u32 %v5278, 7
    %v5280 = vsub.s32 %v5257, %v5279
    %v5281 = vrot.slane %v3786, %v5280
    %v5282 = vlaneseq
    %v5283 = vshrl.u32 %v5282, 7
    %v5284 = vsub.s32 %v5257, %v5283
    %v5285 = vrot.slane %v3791, %v5284
    %v5286 = vlaneseq
    %v5287 = vshrl.u32 %v5286, 7
    %v5288 = vsub.s32 %v5257, %v5287
    %v5289 = vrot.slane %v3796, %v5288
    %v5290 = vlaneseq
    %v5291 = vshrl.u32 %v5290, 7
    %v5292 = vsub.s32 %v5257, %v5291
    %v5293 = vrot.slane %v3801, %v5292
    %v5294 = vlaneseq
    %v5295 = vshrl.u32 %v5294, 7
    %v5296 = vsub.s32 %v5257, %v5295
    %v5297 = vrot.slane %v3806, %v5296
    %v5298 = vlaneseq
    %v5299 = vshrl.u32 %v5298, 7
    %v5300 = vsub.s32 %v5257, %v5299
    %v5301 = vrot.slane %v3811, %v5300
    %v5302 = vlaneseq
    %v5303 = vshrl.u32 %v5302, 7
    %v5304 = vsub.s32 %v5257, %v5303
    %v5305 = vrot.slane %v3816, %v5304
    %v5306 = vlaneseq
    %v5307 = vshrl.u32 %v5306, 7
    %v5308 = vsub.s32 %v5257, %v5307
    %v5309 = vrot.slane %v3821, %v5308
    %v5310 = vlaneseq
    %v5311 = vshrl.u32 %v5310, 7
    %v5312 = vsub.s32 %v5257, %v5311
    %v5313 = vrot.slane %v3826, %v5312
    %v5314 = vlaneseq
    %v5315 = vshrl.u32 %v5314, 7
    %v5316 = vsub.s32 %v5257, %v5315
    %v5317 = vrot.slane %v3831, %v5316
    %v5318 = vlaneseq
    %v5319 = vshrl.u32 %v5318, 7
    %v5320 = vsub.s32 %v5257, %v5319
    %v5321 = vrot.slane %v3836, %v5320
    %v5322 = vsel %vm2856, %v5265, %v5261
    %v5323 = vsel %vm2859, %v5269, %v5322
    %v5324 = vsel %vm2862, %v5273, %v5323
    %v5325 = vsel %vm2865, %v5277, %v5324
    %v5326 = vsel %vm2868, %v5281, %v5325
    %v5327 = vsel %vm2871, %v5285, %v5326
    %v5328 = vsel %vm2874, %v5289, %v5327
    %v5329 = vsel %vm2856, %v5297, %v5293
    %v5330 = vsel %vm2859, %v5301, %v5329
    %v5331 = vsel %vm2862, %v5305, %v5330
    %v5332 = vsel %vm2865, %v5309, %v5331
    %v5333 = vsel %vm2868, %v5313, %v5332
    %v5334 = vsel %vm2871, %v5317, %v5333
    %v5335 = vsel %vm2874, %v5321, %v5334
    %v5338 = vadd.s32 %v3277, 4294967240
    %v5339 = vlaneseq
    %v5340 = vshrl.u32 %v5339, 7
    %v5341 = vsub.s32 %v5338, %v5340
    %v5342 = vrot.slane %v4849, %v5341
    %v5343 = vlaneseq
    %v5344 = vshrl.u32 %v5343, 7
    %v5345 = vsub.s32 %v5338, %v5344
    %v5346 = vrot.slane %v4854, %v5345
    %v5347 = vlaneseq
    %v5348 = vshrl.u32 %v5347, 7
    %v5349 = vsub.s32 %v5338, %v5348
    %v5350 = vrot.slane %v4859, %v5349
    %v5351 = vlaneseq
    %v5352 = vshrl.u32 %v5351, 7
    %v5353 = vsub.s32 %v5338, %v5352
    %v5354 = vrot.slane %v4864, %v5353
    %v5355 = vlaneseq
    %v5356 = vshrl.u32 %v5355, 7
    %v5357 = vsub.s32 %v5338, %v5356
    %v5358 = vrot.slane %v4869, %v5357
    %v5359 = vlaneseq
    %v5360 = vshrl.u32 %v5359, 7
    %v5361 = vsub.s32 %v5338, %v5360
    %v5362 = vrot.slane %v4874, %v5361
    %v5363 = vlaneseq
    %v5364 = vshrl.u32 %v5363, 7
    %v5365 = vsub.s32 %v5338, %v5364
    %v5366 = vrot.slane %v4879, %v5365
    %v5367 = vlaneseq
    %v5368 = vshrl.u32 %v5367, 7
    %v5369 = vsub.s32 %v5338, %v5368
    %v5370 = vrot.slane %v4884, %v5369
    %v5371 = vlaneseq
    %v5372 = vshrl.u32 %v5371, 7
    %v5373 = vsub.s32 %v5338, %v5372
    %v5374 = vrot.slane %v4889, %v5373
    %v5375 = vlaneseq
    %v5376 = vshrl.u32 %v5375, 7
    %v5377 = vsub.s32 %v5338, %v5376
    %v5378 = vrot.slane %v4894, %v5377
    %v5379 = vlaneseq
    %v5380 = vshrl.u32 %v5379, 7
    %v5381 = vsub.s32 %v5338, %v5380
    %v5382 = vrot.slane %v4899, %v5381
    %v5383 = vlaneseq
    %v5384 = vshrl.u32 %v5383, 7
    %v5385 = vsub.s32 %v5338, %v5384
    %v5386 = vrot.slane %v4904, %v5385
    %v5387 = vlaneseq
    %v5388 = vshrl.u32 %v5387, 7
    %v5389 = vsub.s32 %v5338, %v5388
    %v5390 = vrot.slane %v4909, %v5389
    %v5391 = vlaneseq
    %v5392 = vshrl.u32 %v5391, 7
    %v5393 = vsub.s32 %v5338, %v5392
    %v5394 = vrot.slane %v4914, %v5393
    %v5395 = vlaneseq
    %v5396 = vshrl.u32 %v5395, 7
    %v5397 = vsub.s32 %v5338, %v5396
    %v5398 = vrot.slane %v4919, %v5397
    %v5399 = vlaneseq
    %v5400 = vshrl.u32 %v5399, 7
    %v5401 = vsub.s32 %v5338, %v5400
    %v5402 = vrot.slane %v4924, %v5401
    %v5403 = vsel %vm2856, %v5346, %v5342
    %v5404 = vsel %vm2859, %v5350, %v5403
    %v5405 = vsel %vm2862, %v5354, %v5404
    %v5406 = vsel %vm2865, %v5358, %v5405
    %v5407 = vsel %vm2868, %v5362, %v5406
    %v5408 = vsel %vm2871, %v5366, %v5407
    %v5409 = vsel %vm2874, %v5370, %v5408
    %v5410 = vsel %vm2856, %v5378, %v5374
    %v5411 = vsel %vm2859, %v5382, %v5410
    %v5412 = vsel %vm2862, %v5386, %v5411
    %v5413 = vsel %vm2865, %v5390, %v5412
    %v5414 = vsel %vm2868, %v5394, %v5413
    %v5415 = vsel %vm2871, %v5398, %v5414
    %v5416 = vsel %vm2874, %v5402, %v5415
    %vm5419 = vcmask 130048
    %v5420 = vsel %vm5419, %v5213, %v5252
    %v5421 = vsel %vm5419, %v5218, %v5254
    %vm5422 = vcmask 392192
    %v5423 = vsel %vm5422, %v5420, %v5328
    %v5424 = vsel %vm5422, %v5421, %v5335
    %vm5425 = vcmask 457728
    %v5426 = vsel %vm5425, %v5423, %v5409
    %v5427 = vsel %vm5425, %v5424, %v5416
    %5428 = vst.msk [vmem:[#allocation7] sm:$0xff] %vm5139, %v5426
    %5429 = vst.msk [vmem:[#allocation7 + $0x8] sm:$0xff] %vm5139, %v5427
    // Predicated region
    $region46: #{tpu_custom_call.1} parent=1 // pred_check
      _
    $region47: #{tpu_custom_call.1} parent=1 // pred_check_branch
      %5431 = sbr.rel (0) target = $region49
    $region48: #{tpu_custom_call.1} parent=1 // pred_region
      %s5433 = ssub.s32 256, 256
      %5434 = vsyncadd [#allocation4], %s5433
      %s5435 = sshll.u32 [#allocation7], 4
      %s5436 = int_to_ptr.vmem [resolvable:$true] %s5435
      %5441 = dma.vmem_to_hbm [thread:$0]  %s5436, 256, %s9, [#allocation4], 128, 128, 8
    $region49: #{tpu_custom_call.1} parent=1 // pred_fallthru
      _
    // Predicated region
    $region50: #{tpu_custom_call.1} parent=1 // pred_check
      _
    $region51: #{tpu_custom_call.1} parent=1 // pred_check_branch
      %5443 = sbr.rel (0) target = $region53
    $region52: #{tpu_custom_call.1} parent=1 // pred_region
      %5444 = dma.done [#allocation4], 256
    $region53: #{tpu_custom_call.1} parent=1 // pred_fallthru
      _
    %5445 = vsyncpa [#allocation3], 1
    %5446 = vsyncpa [#allocation6], 1
    %5447 = vsyncpa [#allocation4], 1

</llo_original>
